<compile_context>
chip_gen: v6e
topology: v6e:2x2x1
jax: 0.10.0
libtpu: 0.0.40
codegen_flags: <defaults>
</compile_context>

<pallas_src>
import functools
import math

import jax
import jax.numpy as jnp
from jax import lax
from jax.experimental import pallas as pl
from jax.experimental.pallas import tpu as pltpu

DIM = 256            # module value: 4096 (shrunk for the small self-test, same structure)
NUM_HEADS = 8
HEAD_DIM = DIM // NUM_HEADS
MLP_HIDDEN = 4 * DIM
OUT_DIM = 128        # module value: 512 (shrunk proportionally)
LN_EPS = 1e-5        # torch.nn.LayerNorm default


# ------------------------------ Generation-aware VMEM / tile policy ----------------------------
@functools.lru_cache(maxsize=1)
def _vmem_limit_bytes():
    """Scoped-VMEM budget ~= 0.75x physical capacity (96 MiB v5e/v6e, 48 MiB v7x)."""
    cap = 64 * 1024 * 1024                              # conservative fallback (v7x-sized)
    try:
        cap = int(pltpu.get_tpu_info().vmem_capacity_bytes)
    except Exception:
        pass
    return max(32 * 1024 * 1024, min((cap * 3) // 4, 96 * 1024 * 1024))


def _select_tiles(M, K, N, *, x_bytes, out_bytes, use_scratch, fuse_ln,
                  has_bias, add_residual, limit):
    """Pick (tm, tn) so the per-step VMEM footprint fits ~70% of the scoped limit."""
    budget = int(limit * 0.70)
    tm_cands = [c for c in (512, 256, 128, 64, 32, 16, 8) if M % c == 0] or [M]
    tn_cands = [c for c in (1024, 512, 256, 128) if N % c == 0] or [N]

    def footprint(tm, tn):
        f = 2 * tm * K * x_bytes                      # lhs row panel (double-buffered)
        if use_scratch:
            f += tm * K * 2                           # bf16 LN / downcast cache (single)
        if fuse_ln:
            f += 2 * 2 * K * 4                        # gamma + beta (double-buffered)
        f += 2 * K * tn * 2                           # bf16 weight tile (double-buffered)
        if has_bias:
            f += 2 * tn * 4
        if add_residual:
            f += 2 * tm * tn * 4
        f += 2 * tm * tn * out_bytes                  # output tile (double-buffered)
        return f

    # Prefer large tm first (weights are re-streamed once per row tile), then large tn.
    for tm in tm_cands:
        for tn in tn_cands:
            if footprint(tm, tn) <= budget:
                return tm, tn
    return tm_cands[-1], tn_cands[-1]


# ---------------- Fused (LayerNorm?) + Linear (+bias, +GELU, +residual) kernel ----------------
def _linear_kernel(*refs, fuse_ln, activation, add_residual, has_bias, use_scratch):
    it = iter(refs)
    x_ref = next(it)
    if fuse_ln:
        g_ref = next(it)
        be_ref = next(it)
    w_ref = next(it)
    bias_ref = next(it) if has_bias else None
    res_ref = next(it) if add_residual else None
    o_ref = next(it)
    xn_ref = next(it) if use_scratch else None

    if use_scratch:
        # Normalize / downcast this row panel once (first column tile of the row tile) and
        # reuse the bf16 cache for every output-column tile.  Column axis is "arbitrary".
        @pl.when(pl.program_id(1) == 0)
        def _():
            xv = x_ref[...].astype(jnp.float32)
            if fuse_ln:
                mu = jnp.mean(xv, axis=-1, keepdims=True)
                var = jnp.mean(jnp.square(xv - mu), axis=-1, keepdims=True)
                xv = (xv - mu) * lax.rsqrt(var + LN_EPS) * g_ref[...] + be_ref[...]
            xn_ref[...] = xv.astype(jnp.bfloat16)
        lhs = xn_ref[...]
    else:
        lhs = x_ref[...]                               # already bf16

    r = jnp.dot(lhs, w_ref[...], preferred_element_type=jnp.float32)   # bf16 x bf16 -> f32
    if has_bias:
        r = r + bias_ref[...]
    if activation == "gelu":
        # exact (erf) GELU to match torch.nn.GELU default
        r = 0.5 * r * (1.0 + lax.erf(r * (1.0 / math.sqrt(2.0))))
    if add_residual:
        r = r + res_ref[...]
    o_ref[...] = r.astype(o_ref.dtype)


def fused_linear(x, w, bias=None, *, gamma=None, beta=None, residual=None,
                 activation=None, out_dtype=jnp.float32, tm=None, tn=None):
    """y = [residual +] act( (LN(x) if gamma else x) @ w [+ bias] )

    x: (M, K) f32/bf16, w: (K, N) bf16, bias: (1, N) f32, residual: (M, N) f32,
    gamma/beta: (1, K) f32.  Grid is (row tiles, column tiles).
    """
    M, K = x.shape
    Kw, N = w.shape
    assert K == Kw
    fuse_ln = gamma is not None
    has_bias = bias is not None
    add_residual = residual is not None
    use_scratch = fuse_ln or x.dtype != jnp.bfloat16

    limit = _vmem_limit_bytes()
    auto_tm, auto_tn = _select_tiles(
        M, K, N, x_bytes=x.dtype.itemsize, out_bytes=jnp.dtype(out_dtype).itemsize,
        use_scratch=use_scratch, fuse_ln=fuse_ln, has_bias=has_bias,
        add_residual=add_residual, limit=limit)
    tm = tm or auto_tm
    tn = tn or auto_tn
    assert M % tm == 0 and N % tn == 0, (M, tm, N, tn)

    arrays = [x]
    in_specs = [pl.BlockSpec((tm, K), lambda i, j: (i, 0))]      # re-fetched only per row tile
    if fuse_ln:
        arrays += [gamma, beta]
        in_specs += [pl.BlockSpec((1, K), lambda i, j: (0, 0))] * 2
    arrays.append(w)
    in_specs.append(pl.BlockSpec((K, tn), lambda i, j: (0, j)))
    if has_bias:
        arrays.append(bias)
        in_specs.append(pl.BlockSpec((1, tn), lambda i, j: (0, j)))
    if add_residual:
        arrays.append(residual)
        in_specs.append(pl.BlockSpec((tm, tn), lambda i, j: (i, j)))

    scratch = [pltpu.VMEM((tm, K), jnp.bfloat16)] if use_scratch else []
    kernel = functools.partial(_linear_kernel, fuse_ln=fuse_ln, activation=activation,
                               add_residual=add_residual, has_bias=has_bias,
                               use_scratch=use_scratch)
    # Row-tile axis is always "parallel" (megacore).  The column sweep must stay ordered when
    # the LN/bf16 cache is filled at j == 0 ("arbitrary"); scratch-free calls are fully parallel.
    semantics = ("parallel", "arbitrary") if use_scratch else ("parallel", "parallel")
    return pl.pallas_call(
        kernel,
        out_shape=jax.ShapeDtypeStruct((M, N), out_dtype),
        grid_spec=pltpu.PrefetchScalarGridSpec(
            num_scalar_prefetch=0,
            grid=(M // tm, N // tn),
            in_specs=in_specs,
            out_specs=pl.BlockSpec((tm, tn), lambda i, j: (i, j)),
            scratch_shapes=scratch,
        ),
        compiler_params=pltpu.CompilerParams(
            dimension_semantics=semantics,
            vmem_limit_bytes=limit,
        ),
    )(*arrays)


# -------------------- Attention kernel: all heads of one batch element per step -----------------
def _attention_kernel(qkv_ref, o_ref, *, scale, num_heads, head_dim):
    # qkv_ref: (1, T, 3C) bf16 straight from the qkv matmul (no XLA transpose);
    # o_ref:   (1, T, C)  bf16 head-concatenated output (feeds proj via a pure reshape).
    C = num_heads * head_dim
    qkv = qkv_ref[0]                                   # (T, 3C)
    outs = []
    for h in range(num_heads):                         # static loop; static lane slices per head
        q = qkv[:, h * head_dim:(h + 1) * head_dim]
        k = qkv[:, C + h * head_dim:C + (h + 1) * head_dim]
        v = qkv[:, 2 * C + h * head_dim:2 * C + (h + 1) * head_dim]
        q = (q.astype(jnp.float32) * scale).astype(jnp.bfloat16)   # fold scale into q
        s = jnp.einsum("td,sd->ts", q, k, preferred_element_type=jnp.float32)
        m = jnp.max(s, axis=-1, keepdims=True)
        p = jnp.exp(s - m)
        denom = jnp.sum(p, axis=-1, keepdims=True)
        p = p * pl.reciprocal(denom, approx=True)      # EUP reciprocal instead of VALU divide
        outs.append(jnp.dot(p.astype(jnp.bfloat16), v, preferred_element_type=jnp.float32))
    # single lane-dense store of the head-concatenated output
    o_ref[0] = jnp.concatenate(outs, axis=-1).astype(o_ref.dtype)


def attention(qkv_btc, scale, num_heads, head_dim):
    # qkv_btc: (B, T, 3C) bf16 -> (B, T, C) bf16
    B, T, threeC = qkv_btc.shape
    C = num_heads * head_dim
    assert threeC == 3 * C
    kernel = functools.partial(_attention_kernel, scale=scale,
                               num_heads=num_heads, head_dim=head_dim)
    return pl.pallas_call(
        kernel,
        out_shape=jax.ShapeDtypeStruct((B, T, C), jnp.bfloat16),
        grid=(B,),
        in_specs=[pl.BlockSpec((1, T, threeC), lambda b: (b, 0, 0))],
        out_specs=pl.BlockSpec((1, T, C), lambda b: (b, 0, 0)),
        compiler_params=pltpu.CompilerParams(
            dimension_semantics=("parallel",),
            vmem_limit_bytes=_vmem_limit_bytes(),
        ),
    )(qkv_btc)


# --------------------------------------- Full forward ------------------------------------------
def eeg_transformer_forward(x, p):
    B, N, C = x.shape
    cls = jnp.broadcast_to(p["cls_token"], (B, 1, C))
    x = jnp.concatenate([x, cls], axis=1)                       # cls appended at the END (as in torch)
    T = N + 1
    M = B * T
    xf = x.reshape(M, C)                                        # f32 residual stream

    # --- Block: attention branch (pre-norm, LN1 fused into qkv matmul; qkv_bias=False) ---
    qkv = fused_linear(xf, p["qkv_w"], gamma=p["ln1_g"], beta=p["ln1_b"],
                       out_dtype=jnp.bfloat16)                  # (M, 3C) bf16
    qkv = qkv.reshape(B, T, 3 * C)                              # pure view, no transpose
    a = attention(qkv, HEAD_DIM ** -0.5, NUM_HEADS, HEAD_DIM)   # (B, T, C) bf16
    a = a.reshape(M, C)                                         # pure view, no transpose
    # proj + residual add fused; dropout/drop_path = identity (eval)
    x1 = fused_linear(a, p["proj_w"], bias=p["proj_b"], residual=xf)        # (M, C) f32

    # --- Block: MLP branch (pre-norm, LN2 + GELU fused; residual fused into second matmul) ---
    h = fused_linear(x1, p["mlp_w1"], bias=p["mlp_b1"], gamma=p["ln2_g"], beta=p["ln2_b"],
                     activation="gelu", out_dtype=jnp.bfloat16)             # (M, 4C) bf16
    x2 = fused_linear(h, p["mlp_w2"], bias=p["mlp_b2"], residual=x1)        # (M, C) f32

    # --- Head: take cls token (last position), fc1 ---
    cls_out = x2.reshape(B, T, C)[:, -1, :].astype(jnp.bfloat16)            # (B, C)
    return fused_linear(cls_out, p["fc1_w"], bias=p["fc1_b"])               # (B, OUT_DIM) f32


# --------------------------------------- Param init --------------------------------------------
def init_params(key):
    ks = jax.random.split(key, 8)

    def lin(k, fan_in, fan_out):
        bound = 1.0 / math.sqrt(fan_in)                         # torch Linear default init
        kw, kb = jax.random.split(k)
        w = jax.random.uniform(kw, (fan_in, fan_out), jnp.float32, -bound, bound)
        b = jax.random.uniform(kb, (1, fan_out), jnp.float32, -bound, bound)
        return w.astype(jnp.bfloat16), b                        # weights stored bf16 in HBM

    qkv_w, _ = lin(ks[0], DIM, 3 * DIM)                         # qkv_bias=False -> no bias
    proj_w, proj_b = lin(ks[1], DIM, DIM)
    mlp_w1, mlp_b1 = lin(ks[2], DIM, MLP_HIDDEN)
    mlp_w2, mlp_b2 = lin(ks[3], MLP_HIDDEN, DIM)
    fc1_w, fc1_b = lin(ks[4], DIM, OUT_DIM)
    cls_token = 0.02 * jax.random.normal(ks[5], (1, 1, DIM), jnp.float32)
    return dict(
        cls_token=cls_token,
        ln1_g=jnp.ones((1, DIM), jnp.float32), ln1_b=jnp.zeros((1, DIM), jnp.float32),
        ln2_g=jnp.ones((1, DIM), jnp.float32), ln2_b=jnp.zeros((1, DIM), jnp.float32),
        qkv_w=qkv_w, proj_w=proj_w, proj_b=proj_b,
        mlp_w1=mlp_w1, mlp_b1=mlp_b1, mlp_w2=mlp_w2, mlp_b2=mlp_b2,
        fc1_w=fc1_w, fc1_b=fc1_b,
    )


# ----------------------------- Pure-JAX reference (bf16 matmuls, f32 acc) ----------------------
def reference_forward(x, p):
    B, N, C = x.shape
    bf16, f32 = jnp.bfloat16, jnp.float32
    cls = jnp.broadcast_to(p["cls_token"], (B, 1, C))
    x = jnp.concatenate([x, cls], 1)
    T = N + 1

    def ln(v, g, b):
        mu = v.mean(-1, keepdims=True)
        var = ((v - mu) ** 2).mean(-1, keepdims=True)
        return (v - mu) / jnp.sqrt(var + LN_EPS) * g + b

    def mm(a, w):
        return jnp.dot(a.astype(bf16), w.astype(bf16), preferred_element_type=f32)

    h = ln(x, p["ln1_g"], p["ln1_b"])
    qkv = mm(h.reshape(B * T, C), p["qkv_w"])
    qkv = qkv.reshape(B, T, 3, NUM_HEADS, HEAD_DIM).transpose(2, 0, 3, 1, 4)
    q, k, v = qkv[0], qkv[1], qkv[2]
    s = jnp.einsum("bhtd,bhsd->bhts", q.astype(bf16), k.astype(bf16),
                   preferred_element_type=f32) * HEAD_DIM ** -0.5
    attn = jax.nn.softmax(s, -1)
    a = jnp.einsum("bhts,bhsd->bhtd", attn.astype(bf16), v.astype(bf16),
                   preferred_element_type=f32)
    a = a.transpose(0, 2, 1, 3).reshape(B, T, C)
    a = mm(a.reshape(B * T, C), p["proj_w"]).reshape(B, T, C) + p["proj_b"]
    x = x + a
    h = ln(x, p["ln2_g"], p["ln2_b"])
    h = mm(h.reshape(B * T, C), p["mlp_w1"]) + p["mlp_b1"]
    h = jax.nn.gelu(h, approximate=False)
    h = mm(h, p["mlp_w2"]).reshape(B, T, C) + p["mlp_b2"]
    x = x + h
    cls_out = x[:, -1, :]
    return mm(cls_out, p["fc1_w"]) + p["fc1_b"]


if __name__ == "__main__":
    B, N = 2, 8
    x = jax.random.normal(jax.random.PRNGKey(0), (B, N, DIM), jnp.float32)
    params = init_params(jax.random.PRNGKey(42))

    fwd = jax.jit(eeg_transformer_forward)
    out = jax.block_until_ready(fwd(x, params))
    assert out.shape == (B, OUT_DIM), out.shape

    ref = reference_forward(x, params)
    err = float(jnp.max(jnp.abs(out - ref)))
    if not (err < 2e-2):   # bf16 matmuls + approx softmax reciprocal; also catches NaN
        raise SystemExit(f"mismatch vs reference: max abs err {err}")
    print("KERNEL_OK")
</pallas_src>

<mosaic_0001>
module attributes {stable_mosaic.version = 11 : i64} {
  func.func @_linear_kernel(%arg0: i32, %arg1: i32, %arg2: memref<18x256xf32, #tpu.memory_space<vmem>>, %arg3: memref<1x256xf32, #tpu.memory_space<vmem>>, %arg4: memref<1x256xf32, #tpu.memory_space<vmem>>, %arg5: memref<256x256xbf16, #tpu.memory_space<vmem>>, %arg6: memref<18x256xbf16, #tpu.memory_space<vmem>>, %arg7: memref<18x256xbf16, #tpu.memory_space<vmem>>) attributes {dimension_semantics = [#tpu.dimension_semantics<parallel>, #tpu.dimension_semantics<arbitrary>], iteration_bounds = array<i64: 1, 3>, scalar_prefetch = 0 : i64, scratch_operands = 1 : i64, tpu.core_type = #tpu.core_type<tc>, window_params = [{transform_indices = @transform_0, window_bounds = array<i64: 18, 256>}, {pipeline_mode = #tpu.pipeline_mode<synchronous>, transform_indices = @transform_1, window_bounds = array<i64: 1, 256>}, {pipeline_mode = #tpu.pipeline_mode<synchronous>, transform_indices = @transform_2, window_bounds = array<i64: 1, 256>}, {transform_indices = @transform_3, window_bounds = array<i64: 256, 256>}, {transform_indices = @transform_4, window_bounds = array<i64: 18, 256>}]} {
    %c0_i32 = arith.constant 0 : i32
    %0 = arith.cmpi eq, %arg1, %c0_i32 : i32
    %1 = arith.extui %0 : i1 to i32
    %c0_i32_0 = arith.constant 0 : i32
    %2 = arith.cmpi ne, %1, %c0_i32_0 : i32
    scf.if %2 {
      %c0_6 = arith.constant 0 : index
      %c0_7 = arith.constant 0 : index
      %8 = vector.load %arg2[%c0_6, %c0_7] : memref<18x256xf32, #tpu.memory_space<vmem>>, vector<18x256xf32>
      %cst_8 = arith.constant dense<0.000000e+00> : vector<18xf32>
      %9 = vector.multi_reduction <add>, %8, %cst_8 [1] : vector<18x256xf32> to vector<18xf32>
      %10 = vector.shape_cast %9 : vector<18xf32> to vector<18x1xf32>
      %cst_9 = arith.constant 2.560000e+02 : f32
      %11 = vector.broadcast %cst_9 : f32 to vector<18x1xf32>
      %12 = arith.divf %10, %11 : vector<18x1xf32>
      %13 = vector.broadcast %12 : vector<18x1xf32> to vector<18x256xf32>
      %14 = arith.subf %8, %13 : vector<18x256xf32>
      %15 = arith.mulf %14, %14 : vector<18x256xf32>
      %cst_10 = arith.constant dense<0.000000e+00> : vector<18xf32>
      %16 = vector.multi_reduction <add>, %15, %cst_10 [1] : vector<18x256xf32> to vector<18xf32>
      %17 = vector.shape_cast %16 : vector<18xf32> to vector<18x1xf32>
      %cst_11 = arith.constant 2.560000e+02 : f32
      %18 = vector.broadcast %cst_11 : f32 to vector<18x1xf32>
      %19 = arith.divf %17, %18 : vector<18x1xf32>
      %20 = vector.broadcast %12 : vector<18x1xf32> to vector<18x256xf32>
      %21 = arith.subf %8, %20 : vector<18x256xf32>
      %cst_12 = arith.constant 9.99999974E-6 : f32
      %22 = vector.broadcast %cst_12 : f32 to vector<18x1xf32>
      %23 = arith.addf %19, %22 : vector<18x1xf32>
      %24 = math.rsqrt %23 : vector<18x1xf32>
      %25 = vector.broadcast %24 : vector<18x1xf32> to vector<18x256xf32>
      %26 = arith.mulf %21, %25 : vector<18x256xf32>
      %c0_13 = arith.constant 0 : index
      %c0_14 = arith.constant 0 : index
      %27 = vector.load %arg3[%c0_13, %c0_14] : memref<1x256xf32, #tpu.memory_space<vmem>>, vector<1x256xf32>
      %28 = vector.broadcast %27 : vector<1x256xf32> to vector<18x256xf32>
      %29 = arith.mulf %26, %28 : vector<18x256xf32>
      %c0_15 = arith.constant 0 : index
      %c0_16 = arith.constant 0 : index
      %30 = vector.load %arg4[%c0_15, %c0_16] : memref<1x256xf32, #tpu.memory_space<vmem>>, vector<1x256xf32>
      %31 = vector.broadcast %30 : vector<1x256xf32> to vector<18x256xf32>
      %32 = arith.addf %29, %31 : vector<18x256xf32>
      %33 = arith.truncf %32 : vector<18x256xf32> to vector<18x256xbf16>
      %c0_17 = arith.constant 0 : index
      %c0_18 = arith.constant 0 : index
      %34 = vector.load %arg7[%c0_17, %c0_18] : memref<18x256xbf16, #tpu.memory_space<vmem>>, vector<18x256xbf16>
      tpu.vector_store %arg7[%c0_17, %c0_18], %33 {strides = array<i32>} : memref<18x256xbf16, #tpu.memory_space<vmem>>, vector<18x256xbf16>,
    } else {
    }
    %c0 = arith.constant 0 : index
    %c0_1 = arith.constant 0 : index
    %3 = vector.load %arg7[%c0, %c0_1] : memref<18x256xbf16, #tpu.memory_space<vmem>>, vector<18x256xbf16>
    %c0_2 = arith.constant 0 : index
    %c0_3 = arith.constant 0 : index
    %4 = vector.load %arg5[%c0_2, %c0_3] : memref<256x256xbf16, #tpu.memory_space<vmem>>, vector<256x256xbf16>
    %cst = arith.constant dense<0.000000e+00> : vector<18x256xf32>
    %5 = tpu.matmul %3, %4, %cst {dimension_numbers = #tpu.dot_dimension_numbers<[1], [0], [0], [1], [0, 0, 1, 1], [], []>} : vector<18x256xbf16>, vector<256x256xbf16>, vector<18x256xf32> -> vector<18x256xf32>
    %6 = arith.truncf %5 : vector<18x256xf32> to vector<18x256xbf16>
    %c0_4 = arith.constant 0 : index
    %c0_5 = arith.constant 0 : index
    %7 = vector.load %arg6[%c0_4, %c0_5] : memref<18x256xbf16, #tpu.memory_space<vmem>>, vector<18x256xbf16>
    tpu.vector_store %arg6[%c0_4, %c0_5], %6 {strides = array<i32>} : memref<18x256xbf16, #tpu.memory_space<vmem>>, vector<18x256xbf16>,
    return
  }
  func.func @transform_0(%arg0: i32, %arg1: i32) -> (i32, i32) {
    %c0_i32 = arith.constant 0 : i32
    %c0_i32_0 = arith.constant 0 : i32
    return %arg0, %c0_i32 : i32, i32
  }
  func.func @transform_1(%arg0: i32, %arg1: i32) -> (i32, i32) {
    %c0_i32 = arith.constant 0 : i32
    %c0_i32_0 = arith.constant 0 : i32
    %c0_i32_1 = arith.constant 0 : i32
    return %c0_i32, %c0_i32_0 : i32, i32
  }
  func.func @transform_2(%arg0: i32, %arg1: i32) -> (i32, i32) {
    %c0_i32 = arith.constant 0 : i32
    %c0_i32_0 = arith.constant 0 : i32
    %c0_i32_1 = arith.constant 0 : i32
    return %c0_i32, %c0_i32_0 : i32, i32
  }
  func.func @transform_3(%arg0: i32, %arg1: i32) -> (i32, i32) {
    %c0_i32 = arith.constant 0 : i32
    %c0_i32_0 = arith.constant 0 : i32
    return %c0_i32, %arg1 : i32, i32
  }
  func.func @transform_4(%arg0: i32, %arg1: i32) -> (i32, i32) {
    %c0_i32 = arith.constant 0 : i32
    return %arg0, %arg1 : i32, i32
  }
}

module attributes {stable_mosaic.version = 11 : i64} {
  func.func @_linear_kernel(%arg0: i32, %arg1: i32, %arg2: memref<18x256xbf16, #tpu.memory_space<vmem>>, %arg3: memref<256x256xbf16, #tpu.memory_space<vmem>>, %arg4: memref<1x256xf32, #tpu.memory_space<vmem>>, %arg5: memref<18x256xf32, #tpu.memory_space<vmem>>, %arg6: memref<18x256xf32, #tpu.memory_space<vmem>>) attributes {dimension_semantics = [#tpu.dimension_semantics<parallel>, #tpu.dimension_semantics<parallel>], iteration_bounds = array<i64: 1, 1>, scalar_prefetch = 0 : i64, scratch_operands = 0 : i64, tpu.core_type = #tpu.core_type<tc>, window_params = [{transform_indices = @transform_0, window_bounds = array<i64: 18, 256>}, {transform_indices = @transform_1, window_bounds = array<i64: 256, 256>}, {transform_indices = @transform_2, window_bounds = array<i64: 1, 256>}, {transform_indices = @transform_3, window_bounds = array<i64: 18, 256>}, {transform_indices = @transform_4, window_bounds = array<i64: 18, 256>}]} {
    %c0 = arith.constant 0 : index
    %c0_0 = arith.constant 0 : index
    %0 = vector.load %arg2[%c0, %c0_0] : memref<18x256xbf16, #tpu.memory_space<vmem>>, vector<18x256xbf16>
    %c0_1 = arith.constant 0 : index
    %c0_2 = arith.constant 0 : index
    %1 = vector.load %arg3[%c0_1, %c0_2] : memref<256x256xbf16, #tpu.memory_space<vmem>>, vector<256x256xbf16>
    %cst = arith.constant dense<0.000000e+00> : vector<18x256xf32>
    %2 = tpu.matmul %0, %1, %cst {dimension_numbers = #tpu.dot_dimension_numbers<[1], [0], [0], [1], [0, 0, 1, 1], [], []>} : vector<18x256xbf16>, vector<256x256xbf16>, vector<18x256xf32> -> vector<18x256xf32>
    %c0_3 = arith.constant 0 : index
    %c0_4 = arith.constant 0 : index
    %3 = vector.load %arg4[%c0_3, %c0_4] : memref<1x256xf32, #tpu.memory_space<vmem>>, vector<1x256xf32>
    %4 = vector.broadcast %3 : vector<1x256xf32> to vector<18x256xf32>
    %5 = arith.addf %2, %4 : vector<18x256xf32>
    %c0_5 = arith.constant 0 : index
    %c0_6 = arith.constant 0 : index
    %6 = vector.load %arg5[%c0_5, %c0_6] : memref<18x256xf32, #tpu.memory_space<vmem>>, vector<18x256xf32>
    %7 = arith.addf %5, %6 : vector<18x256xf32>
    %c0_7 = arith.constant 0 : index
    %c0_8 = arith.constant 0 : index
    %8 = vector.load %arg6[%c0_7, %c0_8] : memref<18x256xf32, #tpu.memory_space<vmem>>, vector<18x256xf32>
    tpu.vector_store %arg6[%c0_7, %c0_8], %7 {strides = array<i32>} : memref<18x256xf32, #tpu.memory_space<vmem>>, vector<18x256xf32>,
    return
  }
  func.func @transform_0(%arg0: i32, %arg1: i32) -> (i32, i32) {
    %c0_i32 = arith.constant 0 : i32
    %c0_i32_0 = arith.constant 0 : i32
    return %arg0, %c0_i32 : i32, i32
  }
  func.func @transform_1(%arg0: i32, %arg1: i32) -> (i32, i32) {
    %c0_i32 = arith.constant 0 : i32
    %c0_i32_0 = arith.constant 0 : i32
    return %c0_i32, %arg1 : i32, i32
  }
  func.func @transform_2(%arg0: i32, %arg1: i32) -> (i32, i32) {
    %c0_i32 = arith.constant 0 : i32
    %c0_i32_0 = arith.constant 0 : i32
    return %c0_i32, %arg1 : i32, i32
  }
  func.func @transform_3(%arg0: i32, %arg1: i32) -> (i32, i32) {
    %c0_i32 = arith.constant 0 : i32
    return %arg0, %arg1 : i32, i32
  }
  func.func @transform_4(%arg0: i32, %arg1: i32) -> (i32, i32) {
    %c0_i32 = arith.constant 0 : i32
    return %arg0, %arg1 : i32, i32
  }
}

module attributes {stable_mosaic.version = 11 : i64} {
  func.func @_attention_kernel(%arg0: i32, %arg1: memref<1x9x768xbf16, #tpu.memory_space<vmem>>, %arg2: memref<1x9x256xbf16, #tpu.memory_space<vmem>>) attributes {dimension_semantics = [#tpu.dimension_semantics<parallel>], iteration_bounds = array<i64: 2>, scalar_prefetch = 0 : i64, scratch_operands = 0 : i64, tpu.core_type = #tpu.core_type<tc>, window_params = [{transform_indices = @transform_0, window_bounds = array<i64: 1, 9, 768>}, {transform_indices = @transform_1, window_bounds = array<i64: 1, 9, 256>}]} {
    %c0 = arith.constant 0 : index
    %c0_0 = arith.constant 0 : index
    %c0_1 = arith.constant 0 : index
    %0 = vector.load %arg1[%c0, %c0_0, %c0_1] : memref<1x9x768xbf16, #tpu.memory_space<vmem>>, vector<1x9x768xbf16>
    %1 = vector.shape_cast %0 : vector<1x9x768xbf16> to vector<9x768xbf16>
    %2 = vector.extract_strided_slice %1 {offsets = [0, 0], sizes = [9, 32], strides = [1, 1]} : vector<9x768xbf16> to vector<9x32xbf16>
    %3 = vector.extract_strided_slice %1 {offsets = [0, 256], sizes = [9, 32], strides = [1, 1]} : vector<9x768xbf16> to vector<9x32xbf16>
    %4 = vector.extract_strided_slice %1 {offsets = [0, 512], sizes = [9, 32], strides = [1, 1]} : vector<9x768xbf16> to vector<9x32xbf16>
    %5 = arith.extf %2 : vector<9x32xbf16> to vector<9x32xf32>
    %cst = arith.constant 0.176776692 : f32
    %6 = vector.broadcast %cst : f32 to vector<9x32xf32>
    %7 = arith.mulf %5, %6 : vector<9x32xf32>
    %8 = arith.truncf %7 : vector<9x32xf32> to vector<9x32xbf16>
    "tpu.trace_start"() <{level = 10 : i32, message = "td,sd->ts"}> : () -> ()
    %cst_2 = arith.constant dense<0.000000e+00> : vector<9x9xf32>
    %9 = tpu.matmul %8, %3, %cst_2 {dimension_numbers = #tpu.dot_dimension_numbers<[1], [1], [0], [0], [0, 0, 1, 0], [], []>} : vector<9x32xbf16>, vector<9x32xbf16>, vector<9x9xf32> -> vector<9x9xf32>
    "tpu.trace_stop"() : () -> ()
    %cst_3 = arith.constant dense<0xFF800000> : vector<9xf32>
    %10 = vector.multi_reduction <maximumf>, %9, %cst_3 [1] : vector<9x9xf32> to vector<9xf32>
    %11 = vector.shape_cast %10 : vector<9xf32> to vector<9x1xf32>
    %12 = vector.broadcast %11 : vector<9x1xf32> to vector<9x9xf32>
    %13 = arith.subf %9, %12 : vector<9x9xf32>
    %14 = math.exp %13 : vector<9x9xf32>
    %cst_4 = arith.constant dense<0.000000e+00> : vector<9xf32>
    %15 = vector.multi_reduction <add>, %14, %cst_4 [1] : vector<9x9xf32> to vector<9xf32>
    %16 = vector.shape_cast %15 : vector<9xf32> to vector<9x1xf32>
    %17 = tpu.reciprocal %16 {approx = true} : vector<9x1xf32> -> vector<9x1xf32>
    %18 = vector.broadcast %17 : vector<9x1xf32> to vector<9x9xf32>
    %19 = arith.mulf %14, %18 : vector<9x9xf32>
    %20 = arith.truncf %19 : vector<9x9xf32> to vector<9x9xbf16>
    %cst_5 = arith.constant dense<0.000000e+00> : vector<9x32xf32>
    %21 = tpu.matmul %20, %4, %cst_5 {dimension_numbers = #tpu.dot_dimension_numbers<[1], [0], [0], [1], [0, 0, 1, 1], [], []>} : vector<9x9xbf16>, vector<9x32xbf16>, vector<9x32xf32> -> vector<9x32xf32>
    %22 = vector.extract_strided_slice %1 {offsets = [0, 32], sizes = [9, 32], strides = [1, 1]} : vector<9x768xbf16> to vector<9x32xbf16>
    %23 = vector.extract_strided_slice %1 {offsets = [0, 288], sizes = [9, 32], strides = [1, 1]} : vector<9x768xbf16> to vector<9x32xbf16>
    %24 = vector.extract_strided_slice %1 {offsets = [0, 544], sizes = [9, 32], strides = [1, 1]} : vector<9x768xbf16> to vector<9x32xbf16>
    %25 = arith.extf %22 : vector<9x32xbf16> to vector<9x32xf32>
    %cst_6 = arith.constant 0.176776692 : f32
    %26 = vector.broadcast %cst_6 : f32 to vector<9x32xf32>
    %27 = arith.mulf %25, %26 : vector<9x32xf32>
    %28 = arith.truncf %27 : vector<9x32xf32> to vector<9x32xbf16>
    "tpu.trace_start"() <{level = 10 : i32, message = "td,sd->ts"}> : () -> ()
    %cst_7 = arith.constant dense<0.000000e+00> : vector<9x9xf32>
    %29 = tpu.matmul %28, %23, %cst_7 {dimension_numbers = #tpu.dot_dimension_numbers<[1], [1], [0], [0], [0, 0, 1, 0], [], []>} : vector<9x32xbf16>, vector<9x32xbf16>, vector<9x9xf32> -> vector<9x9xf32>
    "tpu.trace_stop"() : () -> ()
    %cst_8 = arith.constant dense<0xFF800000> : vector<9xf32>
    %30 = vector.multi_reduction <maximumf>, %29, %cst_8 [1] : vector<9x9xf32> to vector<9xf32>
    %31 = vector.shape_cast %30 : vector<9xf32> to vector<9x1xf32>
    %32 = vector.broadcast %31 : vector<9x1xf32> to vector<9x9xf32>
    %33 = arith.subf %29, %32 : vector<9x9xf32>
    %34 = math.exp %33 : vector<9x9xf32>
    %cst_9 = arith.constant dense<0.000000e+00> : vector<9xf32>
    %35 = vector.multi_reduction <add>, %34, %cst_9 [1] : vector<9x9xf32> to vector<9xf32>
    %36 = vector.shape_cast %35 : vector<9xf32> to vector<9x1xf32>
    %37 = tpu.reciprocal %36 {approx = true} : vector<9x1xf32> -> vector<9x1xf32>
    %38 = vector.broadcast %37 : vector<9x1xf32> to vector<9x9xf32>
    %39 = arith.mulf %34, %38 : vector<9x9xf32>
    %40 = arith.truncf %39 : vector<9x9xf32> to vector<9x9xbf16>
    %cst_10 = arith.constant dense<0.000000e+00> : vector<9x32xf32>
    %41 = tpu.matmul %40, %24, %cst_10 {dimension_numbers = #tpu.dot_dimension_numbers<[1], [0], [0], [1], [0, 0, 1, 1], [], []>} : vector<9x9xbf16>, vector<9x32xbf16>, vector<9x32xf32> -> vector<9x32xf32>
    %42 = vector.extract_strided_slice %1 {offsets = [0, 64], sizes = [9, 32], strides = [1, 1]} : vector<9x768xbf16> to vector<9x32xbf16>
    %43 = vector.extract_strided_slice %1 {offsets = [0, 320], sizes = [9, 32], strides = [1, 1]} : vector<9x768xbf16> to vector<9x32xbf16>
    %44 = vector.extract_strided_slice %1 {offsets = [0, 576], sizes = [9, 32], strides = [1, 1]} : vector<9x768xbf16> to vector<9x32xbf16>
    %45 = arith.extf %42 : vector<9x32xbf16> to vector<9x32xf32>
    %cst_11 = arith.constant 0.176776692 : f32
    %46 = vector.broadcast %cst_11 : f32 to vector<9x32xf32>
    %47 = arith.mulf %45, %46 : vector<9x32xf32>
    %48 = arith.truncf %47 : vector<9x32xf32> to vector<9x32xbf16>
    "tpu.trace_start"() <{level = 10 : i32, message = "td,sd->ts"}> : () -> ()
    %cst_12 = arith.constant dense<0.000000e+00> : vector<9x9xf32>
    %49 = tpu.matmul %48, %43, %cst_12 {dimension_numbers = #tpu.dot_dimension_numbers<[1], [1], [0], [0], [0, 0, 1, 0], [], []>} : vector<9x32xbf16>, vector<9x32xbf16>, vector<9x9xf32> -> vector<9x9xf32>
    "tpu.trace_stop"() : () -> ()
    %cst_13 = arith.constant dense<0xFF800000> : vector<9xf32>
    %50 = vector.multi_reduction <maximumf>, %49, %cst_13 [1] : vector<9x9xf32> to vector<9xf32>
    %51 = vector.shape_cast %50 : vector<9xf32> to vector<9x1xf32>
    %52 = vector.broadcast %51 : vector<9x1xf32> to vector<9x9xf32>
    %53 = arith.subf %49, %52 : vector<9x9xf32>
    %54 = math.exp %53 : vector<9x9xf32>
    %cst_14 = arith.constant dense<0.000000e+00> : vector<9xf32>
    %55 = vector.multi_reduction <add>, %54, %cst_14 [1] : vector<9x9xf32> to vector<9xf32>
    %56 = vector.shape_cast %55 : vector<9xf32> to vector<9x1xf32>
    %57 = tpu.reciprocal %56 {approx = true} : vector<9x1xf32> -> vector<9x1xf32>
    %58 = vector.broadcast %57 : vector<9x1xf32> to vector<9x9xf32>
    %59 = arith.mulf %54, %58 : vector<9x9xf32>
    %60 = arith.truncf %59 : vector<9x9xf32> to vector<9x9xbf16>
    %cst_15 = arith.constant dense<0.000000e+00> : vector<9x32xf32>
    %61 = tpu.matmul %60, %44, %cst_15 {dimension_numbers = #tpu.dot_dimension_numbers<[1], [0], [0], [1], [0, 0, 1, 1], [], []>} : vector<9x9xbf16>, vector<9x32xbf16>, vector<9x32xf32> -> vector<9x32xf32>
    %62 = vector.extract_strided_slice %1 {offsets = [0, 96], sizes = [9, 32], strides = [1, 1]} : vector<9x768xbf16> to vector<9x32xbf16>
    %63 = vector.extract_strided_slice %1 {offsets = [0, 352], sizes = [9, 32], strides = [1, 1]} : vector<9x768xbf16> to vector<9x32xbf16>
    %64 = vector.extract_strided_slice %1 {offsets = [0, 608], sizes = [9, 32], strides = [1, 1]} : vector<9x768xbf16> to vector<9x32xbf16>
    %65 = arith.extf %62 : vector<9x32xbf16> to vector<9x32xf32>
    %cst_16 = arith.constant 0.176776692 : f32
    %66 = vector.broadcast %cst_16 : f32 to vector<9x32xf32>
    %67 = arith.mulf %65, %66 : vector<9x32xf32>
    %68 = arith.truncf %67 : vector<9x32xf32> to vector<9x32xbf16>
    "tpu.trace_start"() <{level = 10 : i32, message = "td,sd->ts"}> : () -> ()
    %cst_17 = arith.constant dense<0.000000e+00> : vector<9x9xf32>
    %69 = tpu.matmul %68, %63, %cst_17 {dimension_numbers = #tpu.dot_dimension_numbers<[1], [1], [0], [0], [0, 0, 1, 0], [], []>} : vector<9x32xbf16>, vector<9x32xbf16>, vector<9x9xf32> -> vector<9x9xf32>
    "tpu.trace_stop"() : () -> ()
    %cst_18 = arith.constant dense<0xFF800000> : vector<9xf32>
    %70 = vector.multi_reduction <maximumf>, %69, %cst_18 [1] : vector<9x9xf32> to vector<9xf32>
    %71 = vector.shape_cast %70 : vector<9xf32> to vector<9x1xf32>
    %72 = vector.broadcast %71 : vector<9x1xf32> to vector<9x9xf32>
    %73 = arith.subf %69, %72 : vector<9x9xf32>
    %74 = math.exp %73 : vector<9x9xf32>
    %cst_19 = arith.constant dense<0.000000e+00> : vector<9xf32>
    %75 = vector.multi_reduction <add>, %74, %cst_19 [1] : vector<9x9xf32> to vector<9xf32>
    %76 = vector.shape_cast %75 : vector<9xf32> to vector<9x1xf32>
    %77 = tpu.reciprocal %76 {approx = true} : vector<9x1xf32> -> vector<9x1xf32>
    %78 = vector.broadcast %77 : vector<9x1xf32> to vector<9x9xf32>
    %79 = arith.mulf %74, %78 : vector<9x9xf32>
    %80 = arith.truncf %79 : vector<9x9xf32> to vector<9x9xbf16>
    %cst_20 = arith.constant dense<0.000000e+00> : vector<9x32xf32>
    %81 = tpu.matmul %80, %64, %cst_20 {dimension_numbers = #tpu.dot_dimension_numbers<[1], [0], [0], [1], [0, 0, 1, 1], [], []>} : vector<9x9xbf16>, vector<9x32xbf16>, vector<9x32xf32> -> vector<9x32xf32>
    %82 = vector.extract_strided_slice %1 {offsets = [0, 128], sizes = [9, 32], strides = [1, 1]} : vector<9x768xbf16> to vector<9x32xbf16>
    %83 = vector.extract_strided_slice %1 {offsets = [0, 384], sizes = [9, 32], strides = [1, 1]} : vector<9x768xbf16> to vector<9x32xbf16>
    %84 = vector.extract_strided_slice %1 {offsets = [0, 640], sizes = [9, 32], strides = [1, 1]} : vector<9x768xbf16> to vector<9x32xbf16>
    %85 = arith.extf %82 : vector<9x32xbf16> to vector<9x32xf32>
    %cst_21 = arith.constant 0.176776692 : f32
    %86 = vector.broadcast %cst_21 : f32 to vector<9x32xf32>
    %87 = arith.mulf %85, %86 : vector<9x32xf32>
    %88 = arith.truncf %87 : vector<9x32xf32> to vector<9x32xbf16>
    "tpu.trace_start"() <{level = 10 : i32, message = "td,sd->ts"}> : () -> ()
    %cst_22 = arith.constant dense<0.000000e+00> : vector<9x9xf32>
    %89 = tpu.matmul %88, %83, %cst_22 {dimension_numbers = #tpu.dot_dimension_numbers<[1], [1], [0], [0], [0, 0, 1, 0], [], []>} : vector<9x32xbf16>, vector<9x32xbf16>, vector<9x9xf32> -> vector<9x9xf32>
    "tpu.trace_stop"() : () -> ()
    %cst_23 = arith.constant dense<0xFF800000> : vector<9xf32>
    %90 = vector.multi_reduction <maximumf>, %89, %cst_23 [1] : vector<9x9xf32> to vector<9xf32>
    %91 = vector.shape_cast %90 : vector<9xf32> to vector<9x1xf32>
    %92 = vector.broadcast %91 : vector<9x1xf32> to vector<9x9xf32>
    %93 = arith.subf %89, %92 : vector<9x9xf32>
    %94 = math.exp %93 : vector<9x9xf32>
    %cst_24 = arith.constant dense<0.000000e+00> : vector<9xf32>
    %95 = vector.multi_reduction <add>, %94, %cst_24 [1] : vector<9x9xf32> to vector<9xf32>
    %96 = vector.shape_cast %95 : vector<9xf32> to vector<9x1xf32>
    %97 = tpu.reciprocal %96 {approx = true} : vector<9x1xf32> -> vector<9x1xf32>
    %98 = vector.broadcast %97 : vector<9x1xf32> to vector<9x9xf32>
    %99 = arith.mulf %94, %98 : vector<9x9xf32>
    %100 = arith.truncf %99 : vector<9x9xf32> to vector<9x9xbf16>
    %cst_25 = arith.constant dense<0.000000e+00> : vector<9x32xf32>
    %101 = tpu.matmul %100, %84, %cst_25 {dimension_numbers = #tpu.dot_dimension_numbers<[1], [0], [0], [1], [0, 0, 1, 1], [], []>} : vector<9x9xbf16>, vector<9x32xbf16>, vector<9x32xf32> -> vector<9x32xf32>
    %102 = vector.extract_strided_slice %1 {offsets = [0, 160], sizes = [9, 32], strides = [1, 1]} : vector<9x768xbf16> to vector<9x32xbf16>
    %103 = vector.extract_strided_slice %1 {offsets = [0, 416], sizes = [9, 32], strides = [1, 1]} : vector<9x768xbf16> to vector<9x32xbf16>
    %104 = vector.extract_strided_slice %1 {offsets = [0, 672], sizes = [9, 32], strides = [1, 1]} : vector<9x768xbf16> to vector<9x32xbf16>
    %105 = arith.extf %102 : vector<9x32xbf16> to vector<9x32xf32>
    %cst_26 = arith.constant 0.176776692 : f32
    %106 = vector.broadcast %cst_26 : f32 to vector<9x32xf32>
    %107 = arith.mulf %105, %106 : vector<9x32xf32>
    %108 = arith.truncf %107 : vector<9x32xf32> to vector<9x32xbf16>
    "tpu.trace_start"() <{level = 10 : i32, message = "td,sd->ts"}> : () -> ()
    %cst_27 = arith.constant dense<0.000000e+00> : vector<9x9xf32>
    %109 = tpu.matmul %108, %103, %cst_27 {dimension_numbers = #tpu.dot_dimension_numbers<[1], [1], [0], [0], [0, 0, 1, 0], [], []>} : vector<9x32xbf16>, vector<9x32xbf16>, vector<9x9xf32> -> vector<9x9xf32>
    "tpu.trace_stop"() : () -> ()
    %cst_28 = arith.constant dense<0xFF800000> : vector<9xf32>
    %110 = vector.multi_reduction <maximumf>, %109, %cst_28 [1] : vector<9x9xf32> to vector<9xf32>
    %111 = vector.shape_cast %110 : vector<9xf32> to vector<9x1xf32>
    %112 = vector.broadcast %111 : vector<9x1xf32> to vector<9x9xf32>
    %113 = arith.subf %109, %112 : vector<9x9xf32>
    %114 = math.exp %113 : vector<9x9xf32>
    %cst_29 = arith.constant dense<0.000000e+00> : vector<9xf32>
    %115 = vector.multi_reduction <add>, %114, %cst_29 [1] : vector<9x9xf32> to vector<9xf32>
    %116 = vector.shape_cast %115 : vector<9xf32> to vector<9x1xf32>
    %117 = tpu.reciprocal %116 {approx = true} : vector<9x1xf32> -> vector<9x1xf32>
    %118 = vector.broadcast %117 : vector<9x1xf32> to vector<9x9xf32>
    %119 = arith.mulf %114, %118 : vector<9x9xf32>
    %120 = arith.truncf %119 : vector<9x9xf32> to vector<9x9xbf16>
    %cst_30 = arith.constant dense<0.000000e+00> : vector<9x32xf32>
    %121 = tpu.matmul %120, %104, %cst_30 {dimension_numbers = #tpu.dot_dimension_numbers<[1], [0], [0], [1], [0, 0, 1, 1], [], []>} : vector<9x9xbf16>, vector<9x32xbf16>, vector<9x32xf32> -> vector<9x32xf32>
    %122 = vector.extract_strided_slice %1 {offsets = [0, 192], sizes = [9, 32], strides = [1, 1]} : vector<9x768xbf16> to vector<9x32xbf16>
    %123 = vector.extract_strided_slice %1 {offsets = [0, 448], sizes = [9, 32], strides = [1, 1]} : vector<9x768xbf16> to vector<9x32xbf16>
    %124 = vector.extract_strided_slice %1 {offsets = [0, 704], sizes = [9, 32], strides = [1, 1]} : vector<9x768xbf16> to vector<9x32xbf16>
    %125 = arith.extf %122 : vector<9x32xbf16> to vector<9x32xf32>
    %cst_31 = arith.constant 0.176776692 : f32
    %126 = vector.broadcast %cst_31 : f32 to vector<9x32xf32>
    %127 = arith.mulf %125, %126 : vector<9x32xf32>
    %128 = arith.truncf %127 : vector<9x32xf32> to vector<9x32xbf16>
    "tpu.trace_start"() <{level = 10 : i32, message = "td,sd->ts"}> : () -> ()
    %cst_32 = arith.constant dense<0.000000e+00> : vector<9x9xf32>
    %129 = tpu.matmul %128, %123, %cst_32 {dimension_numbers = #tpu.dot_dimension_numbers<[1], [1], [0], [0], [0, 0, 1, 0], [], []>} : vector<9x32xbf16>, vector<9x32xbf16>, vector<9x9xf32> -> vector<9x9xf32>
    "tpu.trace_stop"() : () -> ()
    %cst_33 = arith.constant dense<0xFF800000> : vector<9xf32>
    %130 = vector.multi_reduction <maximumf>, %129, %cst_33 [1] : vector<9x9xf32> to vector<9xf32>
    %131 = vector.shape_cast %130 : vector<9xf32> to vector<9x1xf32>
    %132 = vector.broadcast %131 : vector<9x1xf32> to vector<9x9xf32>
    %133 = arith.subf %129, %132 : vector<9x9xf32>
    %134 = math.exp %133 : vector<9x9xf32>
    %cst_34 = arith.constant dense<0.000000e+00> : vector<9xf32>
    %135 = vector.multi_reduction <add>, %134, %cst_34 [1] : vector<9x9xf32> to vector<9xf32>
    %136 = vector.shape_cast %135 : vector<9xf32> to vector<9x1xf32>
    %137 = tpu.reciprocal %136 {approx = true} : vector<9x1xf32> -> vector<9x1xf32>
    %138 = vector.broadcast %137 : vector<9x1xf32> to vector<9x9xf32>
    %139 = arith.mulf %134, %138 : vector<9x9xf32>
    %140 = arith.truncf %139 : vector<9x9xf32> to vector<9x9xbf16>
    %cst_35 = arith.constant dense<0.000000e+00> : vector<9x32xf32>
    %141 = tpu.matmul %140, %124, %cst_35 {dimension_numbers = #tpu.dot_dimension_numbers<[1], [0], [0], [1], [0, 0, 1, 1], [], []>} : vector<9x9xbf16>, vector<9x32xbf16>, vector<9x32xf32> -> vector<9x32xf32>
    %142 = vector.extract_strided_slice %1 {offsets = [0, 224], sizes = [9, 32], strides = [1, 1]} : vector<9x768xbf16> to vector<9x32xbf16>
    %143 = vector.extract_strided_slice %1 {offsets = [0, 480], sizes = [9, 32], strides = [1, 1]} : vector<9x768xbf16> to vector<9x32xbf16>
    %144 = vector.extract_strided_slice %1 {offsets = [0, 736], sizes = [9, 32], strides = [1, 1]} : vector<9x768xbf16> to vector<9x32xbf16>
    %145 = arith.extf %142 : vector<9x32xbf16> to vector<9x32xf32>
    %cst_36 = arith.constant 0.176776692 : f32
    %146 = vector.broadcast %cst_36 : f32 to vector<9x32xf32>
    %147 = arith.mulf %145, %146 : vector<9x32xf32>
    %148 = arith.truncf %147 : vector<9x32xf32> to vector<9x32xbf16>
    "tpu.trace_start"() <{level = 10 : i32, message = "td,sd->ts"}> : () -> ()
    %cst_37 = arith.constant dense<0.000000e+00> : vector<9x9xf32>
    %149 = tpu.matmul %148, %143, %cst_37 {dimension_numbers = #tpu.dot_dimension_numbers<[1], [1], [0], [0], [0, 0, 1, 0], [], []>} : vector<9x32xbf16>, vector<9x32xbf16>, vector<9x9xf32> -> vector<9x9xf32>
    "tpu.trace_stop"() : () -> ()
    %cst_38 = arith.constant dense<0xFF800000> : vector<9xf32>
    %150 = vector.multi_reduction <maximumf>, %149, %cst_38 [1] : vector<9x9xf32> to vector<9xf32>
    %151 = vector.shape_cast %150 : vector<9xf32> to vector<9x1xf32>
    %152 = vector.broadcast %151 : vector<9x1xf32> to vector<9x9xf32>
    %153 = arith.subf %149, %152 : vector<9x9xf32>
    %154 = math.exp %153 : vector<9x9xf32>
    %cst_39 = arith.constant dense<0.000000e+00> : vector<9xf32>
    %155 = vector.multi_reduction <add>, %154, %cst_39 [1] : vector<9x9xf32> to vector<9xf32>
    %156 = vector.shape_cast %155 : vector<9xf32> to vector<9x1xf32>
    %157 = tpu.reciprocal %156 {approx = true} : vector<9x1xf32> -> vector<9x1xf32>
    %158 = vector.broadcast %157 : vector<9x1xf32> to vector<9x9xf32>
    %159 = arith.mulf %154, %158 : vector<9x9xf32>
    %160 = arith.truncf %159 : vector<9x9xf32> to vector<9x9xbf16>
    %cst_40 = arith.constant dense<0.000000e+00> : vector<9x32xf32>
    %161 = tpu.matmul %160, %144, %cst_40 {dimension_numbers = #tpu.dot_dimension_numbers<[1], [0], [0], [1], [0, 0, 1, 1], [], []>} : vector<9x9xbf16>, vector<9x32xbf16>, vector<9x32xf32> -> vector<9x32xf32>
    %162 = tpu.concatenate %21, %41, %61, %81, %101, %121, %141, %161 in 1 : vector<9x32xf32>, vector<9x32xf32>, vector<9x32xf32>, vector<9x32xf32>, vector<9x32xf32>, vector<9x32xf32>, vector<9x32xf32>, vector<9x32xf32> -> vector<9x256xf32>
    %163 = arith.truncf %162 : vector<9x256xf32> to vector<9x256xbf16>
    %c0_41 = arith.constant 0 : index
    %c0_42 = arith.constant 0 : index
    %c0_43 = arith.constant 0 : index
    %164 = vector.load %arg2[%c0_41, %c0_42, %c0_43] : memref<1x9x256xbf16, #tpu.memory_space<vmem>>, vector<1x9x256xbf16>
    %165 = vector.shape_cast %164 : vector<1x9x256xbf16> to vector<9x256xbf16>
    %166 = vector.shape_cast %163 : vector<9x256xbf16> to vector<1x9x256xbf16>
    tpu.vector_store %arg2[%c0_41, %c0_42, %c0_43], %166 {strides = array<i32>} : memref<1x9x256xbf16, #tpu.memory_space<vmem>>, vector<1x9x256xbf16>,
    return
  }
  func.func @transform_0(%arg0: i32) -> (i32, i32, i32) {
    %c0_i32 = arith.constant 0 : i32
    %c0_i32_0 = arith.constant 0 : i32
    %c0_i32_1 = arith.constant 0 : i32
    return %arg0, %c0_i32, %c0_i32_0 : i32, i32, i32
  }
  func.func @transform_1(%arg0: i32) -> (i32, i32, i32) {
    %c0_i32 = arith.constant 0 : i32
    %c0_i32_0 = arith.constant 0 : i32
    %c0_i32_1 = arith.constant 0 : i32
    return %arg0, %c0_i32, %c0_i32_0 : i32, i32, i32
  }
}

module attributes {stable_mosaic.version = 11 : i64} {
  func.func @_linear_kernel(%arg0: i32, %arg1: i32, %arg2: memref<18x256xf32, #tpu.memory_space<vmem>>, %arg3: memref<1x256xf32, #tpu.memory_space<vmem>>, %arg4: memref<1x256xf32, #tpu.memory_space<vmem>>, %arg5: memref<256x1024xbf16, #tpu.memory_space<vmem>>, %arg6: memref<1x1024xf32, #tpu.memory_space<vmem>>, %arg7: memref<18x1024xbf16, #tpu.memory_space<vmem>>, %arg8: memref<18x256xbf16, #tpu.memory_space<vmem>>) attributes {dimension_semantics = [#tpu.dimension_semantics<parallel>, #tpu.dimension_semantics<arbitrary>], iteration_bounds = array<i64: 1, 1>, scalar_prefetch = 0 : i64, scratch_operands = 1 : i64, tpu.core_type = #tpu.core_type<tc>, window_params = [{transform_indices = @transform_0, window_bounds = array<i64: 18, 256>}, {pipeline_mode = #tpu.pipeline_mode<synchronous>, transform_indices = @transform_1, window_bounds = array<i64: 1, 256>}, {pipeline_mode = #tpu.pipeline_mode<synchronous>, transform_indices = @transform_2, window_bounds = array<i64: 1, 256>}, {transform_indices = @transform_3, window_bounds = array<i64: 256, 1024>}, {transform_indices = @transform_4, window_bounds = array<i64: 1, 1024>}, {transform_indices = @transform_5, window_bounds = array<i64: 18, 1024>}]} {
    %c0_i32 = arith.constant 0 : i32
    %0 = arith.cmpi eq, %arg1, %c0_i32 : i32
    %1 = arith.extui %0 : i1 to i32
    %c0_i32_0 = arith.constant 0 : i32
    %2 = arith.cmpi ne, %1, %c0_i32_0 : i32
    scf.if %2 {
      %c0_11 = arith.constant 0 : index
      %c0_12 = arith.constant 0 : index
      %19 = vector.load %arg2[%c0_11, %c0_12] : memref<18x256xf32, #tpu.memory_space<vmem>>, vector<18x256xf32>
      %cst_13 = arith.constant dense<0.000000e+00> : vector<18xf32>
      %20 = vector.multi_reduction <add>, %19, %cst_13 [1] : vector<18x256xf32> to vector<18xf32>
      %21 = vector.shape_cast %20 : vector<18xf32> to vector<18x1xf32>
      %cst_14 = arith.constant 2.560000e+02 : f32
      %22 = vector.broadcast %cst_14 : f32 to vector<18x1xf32>
      %23 = arith.divf %21, %22 : vector<18x1xf32>
      %24 = vector.broadcast %23 : vector<18x1xf32> to vector<18x256xf32>
      %25 = arith.subf %19, %24 : vector<18x256xf32>
      %26 = arith.mulf %25, %25 : vector<18x256xf32>
      %cst_15 = arith.constant dense<0.000000e+00> : vector<18xf32>
      %27 = vector.multi_reduction <add>, %26, %cst_15 [1] : vector<18x256xf32> to vector<18xf32>
      %28 = vector.shape_cast %27 : vector<18xf32> to vector<18x1xf32>
      %cst_16 = arith.constant 2.560000e+02 : f32
      %29 = vector.broadcast %cst_16 : f32 to vector<18x1xf32>
      %30 = arith.divf %28, %29 : vector<18x1xf32>
      %31 = vector.broadcast %23 : vector<18x1xf32> to vector<18x256xf32>
      %32 = arith.subf %19, %31 : vector<18x256xf32>
      %cst_17 = arith.constant 9.99999974E-6 : f32
      %33 = vector.broadcast %cst_17 : f32 to vector<18x1xf32>
      %34 = arith.addf %30, %33 : vector<18x1xf32>
      %35 = math.rsqrt %34 : vector<18x1xf32>
      %36 = vector.broadcast %35 : vector<18x1xf32> to vector<18x256xf32>
      %37 = arith.mulf %32, %36 : vector<18x256xf32>
      %c0_18 = arith.constant 0 : index
      %c0_19 = arith.constant 0 : index
      %38 = vector.load %arg3[%c0_18, %c0_19] : memref<1x256xf32, #tpu.memory_space<vmem>>, vector<1x256xf32>
      %39 = vector.broadcast %38 : vector<1x256xf32> to vector<18x256xf32>
      %40 = arith.mulf %37, %39 : vector<18x256xf32>
      %c0_20 = arith.constant 0 : index
      %c0_21 = arith.constant 0 : index
      %41 = vector.load %arg4[%c0_20, %c0_21] : memref<1x256xf32, #tpu.memory_space<vmem>>, vector<1x256xf32>
      %42 = vector.broadcast %41 : vector<1x256xf32> to vector<18x256xf32>
      %43 = arith.addf %40, %42 : vector<18x256xf32>
      %44 = arith.truncf %43 : vector<18x256xf32> to vector<18x256xbf16>
      %c0_22 = arith.constant 0 : index
      %c0_23 = arith.constant 0 : index
      %45 = vector.load %arg8[%c0_22, %c0_23] : memref<18x256xbf16, #tpu.memory_space<vmem>>, vector<18x256xbf16>
      tpu.vector_store %arg8[%c0_22, %c0_23], %44 {strides = array<i32>} : memref<18x256xbf16, #tpu.memory_space<vmem>>, vector<18x256xbf16>,
    } else {
    }
    %c0 = arith.constant 0 : index
    %c0_1 = arith.constant 0 : index
    %3 = vector.load %arg8[%c0, %c0_1] : memref<18x256xbf16, #tpu.memory_space<vmem>>, vector<18x256xbf16>
    %c0_2 = arith.constant 0 : index
    %c0_3 = arith.constant 0 : index
    %4 = vector.load %arg5[%c0_2, %c0_3] : memref<256x1024xbf16, #tpu.memory_space<vmem>>, vector<256x1024xbf16>
    %cst = arith.constant dense<0.000000e+00> : vector<18x1024xf32>
    %5 = tpu.matmul %3, %4, %cst {dimension_numbers = #tpu.dot_dimension_numbers<[1], [0], [0], [1], [0, 0, 1, 1], [], []>} : vector<18x256xbf16>, vector<256x1024xbf16>, vector<18x1024xf32> -> vector<18x1024xf32>
    %c0_4 = arith.constant 0 : index
    %c0_5 = arith.constant 0 : index
    %6 = vector.load %arg6[%c0_4, %c0_5] : memref<1x1024xf32, #tpu.memory_space<vmem>>, vector<1x1024xf32>
    %7 = vector.broadcast %6 : vector<1x1024xf32> to vector<18x1024xf32>
    %8 = arith.addf %5, %7 : vector<18x1024xf32>
    %cst_6 = arith.constant 5.000000e-01 : f32
    %9 = vector.broadcast %cst_6 : f32 to vector<18x1024xf32>
    %10 = arith.mulf %9, %8 : vector<18x1024xf32>
    %cst_7 = arith.constant 0.707106769 : f32
    %11 = vector.broadcast %cst_7 : f32 to vector<18x1024xf32>
    %12 = arith.mulf %8, %11 : vector<18x1024xf32>
    %13 = math.erf %12 : vector<18x1024xf32>
    %cst_8 = arith.constant 1.000000e+00 : f32
    %14 = vector.broadcast %cst_8 : f32 to vector<18x1024xf32>
    %15 = arith.addf %14, %13 : vector<18x1024xf32>
    %16 = arith.mulf %10, %15 : vector<18x1024xf32>
    %17 = arith.truncf %16 : vector<18x1024xf32> to vector<18x1024xbf16>
    %c0_9 = arith.constant 0 : index
    %c0_10 = arith.constant 0 : index
    %18 = vector.load %arg7[%c0_9, %c0_10] : memref<18x1024xbf16, #tpu.memory_space<vmem>>, vector<18x1024xbf16>
    tpu.vector_store %arg7[%c0_9, %c0_10], %17 {strides = array<i32>} : memref<18x1024xbf16, #tpu.memory_space<vmem>>, vector<18x1024xbf16>,
    return
  }
  func.func @transform_0(%arg0: i32, %arg1: i32) -> (i32, i32) {
    %c0_i32 = arith.constant 0 : i32
    %c0_i32_0 = arith.constant 0 : i32
    return %arg0, %c0_i32 : i32, i32
  }
  func.func @transform_1(%arg0: i32, %arg1: i32) -> (i32, i32) {
    %c0_i32 = arith.constant 0 : i32
    %c0_i32_0 = arith.constant 0 : i32
    %c0_i32_1 = arith.constant 0 : i32
    return %c0_i32, %c0_i32_0 : i32, i32
  }
  func.func @transform_2(%arg0: i32, %arg1: i32) -> (i32, i32) {
    %c0_i32 = arith.constant 0 : i32
    %c0_i32_0 = arith.constant 0 : i32
    %c0_i32_1 = arith.constant 0 : i32
    return %c0_i32, %c0_i32_0 : i32, i32
  }
  func.func @transform_3(%arg0: i32, %arg1: i32) -> (i32, i32) {
    %c0_i32 = arith.constant 0 : i32
    %c0_i32_0 = arith.constant 0 : i32
    return %c0_i32, %arg1 : i32, i32
  }
  func.func @transform_4(%arg0: i32, %arg1: i32) -> (i32, i32) {
    %c0_i32 = arith.constant 0 : i32
    %c0_i32_0 = arith.constant 0 : i32
    return %c0_i32, %arg1 : i32, i32
  }
  func.func @transform_5(%arg0: i32, %arg1: i32) -> (i32, i32) {
    %c0_i32 = arith.constant 0 : i32
    return %arg0, %arg1 : i32, i32
  }
}

module attributes {stable_mosaic.version = 11 : i64} {
  func.func @_linear_kernel(%arg0: i32, %arg1: i32, %arg2: memref<18x1024xbf16, #tpu.memory_space<vmem>>, %arg3: memref<1024x256xbf16, #tpu.memory_space<vmem>>, %arg4: memref<1x256xf32, #tpu.memory_space<vmem>>, %arg5: memref<18x256xf32, #tpu.memory_space<vmem>>, %arg6: memref<18x256xf32, #tpu.memory_space<vmem>>) attributes {dimension_semantics = [#tpu.dimension_semantics<parallel>, #tpu.dimension_semantics<parallel>], iteration_bounds = array<i64: 1, 1>, scalar_prefetch = 0 : i64, scratch_operands = 0 : i64, tpu.core_type = #tpu.core_type<tc>, window_params = [{transform_indices = @transform_0, window_bounds = array<i64: 18, 1024>}, {transform_indices = @transform_1, window_bounds = array<i64: 1024, 256>}, {transform_indices = @transform_2, window_bounds = array<i64: 1, 256>}, {transform_indices = @transform_3, window_bounds = array<i64: 18, 256>}, {transform_indices = @transform_4, window_bounds = array<i64: 18, 256>}]} {
    %c0 = arith.constant 0 : index
    %c0_0 = arith.constant 0 : index
    %0 = vector.load %arg2[%c0, %c0_0] : memref<18x1024xbf16, #tpu.memory_space<vmem>>, vector<18x1024xbf16>
    %c0_1 = arith.constant 0 : index
    %c0_2 = arith.constant 0 : index
    %1 = vector.load %arg3[%c0_1, %c0_2] : memref<1024x256xbf16, #tpu.memory_space<vmem>>, vector<1024x256xbf16>
    %cst = arith.constant dense<0.000000e+00> : vector<18x256xf32>
    %2 = tpu.matmul %0, %1, %cst {dimension_numbers = #tpu.dot_dimension_numbers<[1], [0], [0], [1], [0, 0, 1, 1], [], []>} : vector<18x1024xbf16>, vector<1024x256xbf16>, vector<18x256xf32> -> vector<18x256xf32>
    %c0_3 = arith.constant 0 : index
    %c0_4 = arith.constant 0 : index
    %3 = vector.load %arg4[%c0_3, %c0_4] : memref<1x256xf32, #tpu.memory_space<vmem>>, vector<1x256xf32>
    %4 = vector.broadcast %3 : vector<1x256xf32> to vector<18x256xf32>
    %5 = arith.addf %2, %4 : vector<18x256xf32>
    %c0_5 = arith.constant 0 : index
    %c0_6 = arith.constant 0 : index
    %6 = vector.load %arg5[%c0_5, %c0_6] : memref<18x256xf32, #tpu.memory_space<vmem>>, vector<18x256xf32>
    %7 = arith.addf %5, %6 : vector<18x256xf32>
    %c0_7 = arith.constant 0 : index
    %c0_8 = arith.constant 0 : index
    %8 = vector.load %arg6[%c0_7, %c0_8] : memref<18x256xf32, #tpu.memory_space<vmem>>, vector<18x256xf32>
    tpu.vector_store %arg6[%c0_7, %c0_8], %7 {strides = array<i32>} : memref<18x256xf32, #tpu.memory_space<vmem>>, vector<18x256xf32>,
    return
  }
  func.func @transform_0(%arg0: i32, %arg1: i32) -> (i32, i32) {
    %c0_i32 = arith.constant 0 : i32
    %c0_i32_0 = arith.constant 0 : i32
    return %arg0, %c0_i32 : i32, i32
  }
  func.func @transform_1(%arg0: i32, %arg1: i32) -> (i32, i32) {
    %c0_i32 = arith.constant 0 : i32
    %c0_i32_0 = arith.constant 0 : i32
    return %c0_i32, %arg1 : i32, i32
  }
  func.func @transform_2(%arg0: i32, %arg1: i32) -> (i32, i32) {
    %c0_i32 = arith.constant 0 : i32
    %c0_i32_0 = arith.constant 0 : i32
    return %c0_i32, %arg1 : i32, i32
  }
  func.func @transform_3(%arg0: i32, %arg1: i32) -> (i32, i32) {
    %c0_i32 = arith.constant 0 : i32
    return %arg0, %arg1 : i32, i32
  }
  func.func @transform_4(%arg0: i32, %arg1: i32) -> (i32, i32) {
    %c0_i32 = arith.constant 0 : i32
    return %arg0, %arg1 : i32, i32
  }
}

module attributes {stable_mosaic.version = 11 : i64} {
  func.func @_linear_kernel(%arg0: i32, %arg1: i32, %arg2: memref<2x256xbf16, #tpu.memory_space<vmem>>, %arg3: memref<256x128xbf16, #tpu.memory_space<vmem>>, %arg4: memref<1x128xf32, #tpu.memory_space<vmem>>, %arg5: memref<2x128xf32, #tpu.memory_space<vmem>>) attributes {dimension_semantics = [#tpu.dimension_semantics<parallel>, #tpu.dimension_semantics<parallel>], iteration_bounds = array<i64: 1, 1>, scalar_prefetch = 0 : i64, scratch_operands = 0 : i64, tpu.core_type = #tpu.core_type<tc>, window_params = [{transform_indices = @transform_0, window_bounds = array<i64: 2, 256>}, {transform_indices = @transform_1, window_bounds = array<i64: 256, 128>}, {transform_indices = @transform_2, window_bounds = array<i64: 1, 128>}, {transform_indices = @transform_3, window_bounds = array<i64: 2, 128>}]} {
    %c0 = arith.constant 0 : index
    %c0_0 = arith.constant 0 : index
    %0 = vector.load %arg2[%c0, %c0_0] : memref<2x256xbf16, #tpu.memory_space<vmem>>, vector<2x256xbf16>
    %c0_1 = arith.constant 0 : index
    %c0_2 = arith.constant 0 : index
    %1 = vector.load %arg3[%c0_1, %c0_2] : memref<256x128xbf16, #tpu.memory_space<vmem>>, vector<256x128xbf16>
    %cst = arith.constant dense<0.000000e+00> : vector<2x128xf32>
    %2 = tpu.matmul %0, %1, %cst {dimension_numbers = #tpu.dot_dimension_numbers<[1], [0], [0], [1], [0, 0, 1, 1], [], []>} : vector<2x256xbf16>, vector<256x128xbf16>, vector<2x128xf32> -> vector<2x128xf32>
    %c0_3 = arith.constant 0 : index
    %c0_4 = arith.constant 0 : index
    %3 = vector.load %arg4[%c0_3, %c0_4] : memref<1x128xf32, #tpu.memory_space<vmem>>, vector<1x128xf32>
    %4 = vector.broadcast %3 : vector<1x128xf32> to vector<2x128xf32>
    %5 = arith.addf %2, %4 : vector<2x128xf32>
    %c0_5 = arith.constant 0 : index
    %c0_6 = arith.constant 0 : index
    %6 = vector.load %arg5[%c0_5, %c0_6] : memref<2x128xf32, #tpu.memory_space<vmem>>, vector<2x128xf32>
    tpu.vector_store %arg5[%c0_5, %c0_6], %5 {strides = array<i32>} : memref<2x128xf32, #tpu.memory_space<vmem>>, vector<2x128xf32>,
    return
  }
  func.func @transform_0(%arg0: i32, %arg1: i32) -> (i32, i32) {
    %c0_i32 = arith.constant 0 : i32
    %c0_i32_0 = arith.constant 0 : i32
    return %arg0, %c0_i32 : i32, i32
  }
  func.func @transform_1(%arg0: i32, %arg1: i32) -> (i32, i32) {
    %c0_i32 = arith.constant 0 : i32
    %c0_i32_0 = arith.constant 0 : i32
    return %c0_i32, %arg1 : i32, i32
  }
  func.func @transform_2(%arg0: i32, %arg1: i32) -> (i32, i32) {
    %c0_i32 = arith.constant 0 : i32
    %c0_i32_0 = arith.constant 0 : i32
    return %c0_i32, %arg1 : i32, i32
  }
  func.func @transform_3(%arg0: i32, %arg1: i32) -> (i32, i32) {
    %c0_i32 = arith.constant 0 : i32
    return %arg0, %arg1 : i32, i32
  }
}

</mosaic_0001>

<llo_original>
// kernel: eeg_transformer_forward.8
$region0: #{eeg_transformer_forward.8}
  #allocation0 [shape = 'u32[]', space=smem, size = 0x4, offset = 0x4, fixed_abs, tag = 'smem constant byte address 0x4 - core index']
  #allocation1 [shape = 'u32[144,128]{1,0:T(1,128)}', space=vmem, size = 0x12000, scoped, tag = 'internal scratch']
  %s0 = inlined_call_operand.vmem [shape: bf16[18,256], index: 0, kind: input, shape index: {}]
  %s1 = inlined_call_operand.vmem [shape: bf16[256,256], index: 1, kind: input, shape index: {}]
  %s2 = inlined_call_operand.vmem [shape: f32[1,256], index: 2, kind: input, shape index: {}]
  %s3 = inlined_call_operand.vmem [shape: f32[18,256], index: 3, kind: input, shape index: {}]
  %s4 = inlined_call_operand.vmem [shape: f32[18,256], index: 4, kind: output, shape index: {}]
  %s5 = sld [smem:[#allocation0]]
  $region26: #{eeg_transformer_forward.8} parent=0
    _
  %s7 = ssub.s32 1, %s5
  %s8 = scalar_select 0, %s7, %s5
  // Predicated region
  $region2: #{eeg_transformer_forward.8} parent=0 // pred_check
    _
  $region3: #{eeg_transformer_forward.8} parent=0 // pred_check_branch
    %10 = sbr.rel (0) target = $region5
  $region4: #{eeg_transformer_forward.8} parent=0 // pred_region
    _
  $region5: #{eeg_transformer_forward.8} parent=0 // pred_fallthru
    _
  // Predicated region
  $region6: #{eeg_transformer_forward.8} parent=0 // pred_check
    _
  $region7: #{eeg_transformer_forward.8} parent=0 // pred_check_branch
    %12 = sbr.rel (0) target = $region9
  $region8: #{eeg_transformer_forward.8} parent=0 // pred_region
    _
  $region9: #{eeg_transformer_forward.8} parent=0 // pred_fallthru
    _
  // Predicated region
  $region10: #{eeg_transformer_forward.8} parent=0 // pred_check
    _
  $region11: #{eeg_transformer_forward.8} parent=0 // pred_check_branch
    %14 = sbr.rel (0) target = $region13
  $region12: #{eeg_transformer_forward.8} parent=0 // pred_region
    _
  $region13: #{eeg_transformer_forward.8} parent=0 // pred_fallthru
    _
  // Predicated region
  $region14: #{eeg_transformer_forward.8} parent=0 // pred_check
    _
  $region15: #{eeg_transformer_forward.8} parent=0 // pred_check_branch
    %16 = sbr.rel (0) target = $region17
  $region16: #{eeg_transformer_forward.8} parent=0 // pred_region
    _
  $region17: #{eeg_transformer_forward.8} parent=0 // pred_fallthru
    _
  %v17 = vld [vmem:[%s0] sm:$0xff]
  %v18 = vld [vmem:[%s0 + $0x8] sm:$0xff]
  %v19 = vld [vmem:[%s0 + $0x10] sm:$0x11]
  %v20 = vld [vmem:[%s1] sm:$0xff]
  %v21 = vld [vmem:[%s1 + $0x8] sm:$0xff]
  %v22 = vld [vmem:[%s1 + $0x10] sm:$0xff]
  %v23 = vld [vmem:[%s1 + $0x18] sm:$0xff]
  %v24 = vld [vmem:[%s1 + $0x20] sm:$0xff]
  %v25 = vld [vmem:[%s1 + $0x28] sm:$0xff]
  %v26 = vld [vmem:[%s1 + $0x30] sm:$0xff]
  %v27 = vld [vmem:[%s1 + $0x38] sm:$0xff]
  %v28 = vld [vmem:[%s1 + $0x40] sm:$0xff]
  %v29 = vld [vmem:[%s1 + $0x48] sm:$0xff]
  %v30 = vld [vmem:[%s1 + $0x50] sm:$0xff]
  %v31 = vld [vmem:[%s1 + $0x58] sm:$0xff]
  %v32 = vld [vmem:[%s1 + $0x60] sm:$0xff]
  %v33 = vld [vmem:[%s1 + $0x68] sm:$0xff]
  %v34 = vld [vmem:[%s1 + $0x70] sm:$0xff]
  %v35 = vld [vmem:[%s1 + $0x78] sm:$0xff]
  %v36 = vld [vmem:[%s1 + $0x80] sm:$0xff]
  %v37 = vld [vmem:[%s1 + $0x88] sm:$0xff]
  %v38 = vld [vmem:[%s1 + $0x90] sm:$0xff]
  %v39 = vld [vmem:[%s1 + $0x98] sm:$0xff]
  %v40 = vld [vmem:[%s1 + $0xa0] sm:$0xff]
  %v41 = vld [vmem:[%s1 + $0xa8] sm:$0xff]
  %v42 = vld [vmem:[%s1 + $0xb0] sm:$0xff]
  %v43 = vld [vmem:[%s1 + $0xb8] sm:$0xff]
  %v44 = vld [vmem:[%s1 + $0xc0] sm:$0xff]
  %v45 = vld [vmem:[%s1 + $0xc8] sm:$0xff]
  %v46 = vld [vmem:[%s1 + $0xd0] sm:$0xff]
  %v47 = vld [vmem:[%s1 + $0xd8] sm:$0xff]
  %v48 = vld [vmem:[%s1 + $0xe0] sm:$0xff]
  %v49 = vld [vmem:[%s1 + $0xe8] sm:$0xff]
  %v50 = vld [vmem:[%s1 + $0xf0] sm:$0xff]
  %v51 = vld [vmem:[%s1 + $0xf8] sm:$0xff]
  %v52 = vld [vmem:[%s2] sm:$0x3]
  %v54 = vlaneseq
  %v55 = vshrl.u32 %v54, 7
  %v56 = vsub.s32 0, %v55
  %v57 = vrot.slane %v52, %v56
  %v58 = vlaneseq
  %v59 = vshrl.u32 %v58, 7
  %v60 = vsub.s32 1, %v59
  %v61 = vrot.slane %v52, %v60
  %v67 = vunpack.c.l.b16 %v17
  %v68 = vunpack.c.h.b16 %v17
  %v69 = vunpack.c.l.b16 %v18
  %v70 = vunpack.c.h.b16 %v18
  %v71 = vunpack.c.l.b16 %v19
  %v72 = vunpack.c.h.b16 %v19
  %v73 = vpack.c.b16 %v69, %v67
  %v74 = vpack.c.b16 %v70, %v68
  %v75 = vpack.c.b16 %v71, %v71
  %v76 = vpack.c.b16 %v72, %v72
  %v113 = vunpack.c.l.b16 %v20
  %v114 = vunpack.c.h.b16 %v20
  %v115 = vunpack.c.l.b16 %v21
  %v116 = vunpack.c.h.b16 %v21
  %v117 = vunpack.c.l.b16 %v22
  %v118 = vunpack.c.h.b16 %v22
  %v119 = vunpack.c.l.b16 %v23
  %v120 = vunpack.c.h.b16 %v23
  %v121 = vunpack.c.l.b16 %v24
  %v122 = vunpack.c.h.b16 %v24
  %v123 = vunpack.c.l.b16 %v25
  %v124 = vunpack.c.h.b16 %v25
  %v125 = vunpack.c.l.b16 %v26
  %v126 = vunpack.c.h.b16 %v26
  %v127 = vunpack.c.l.b16 %v27
  %v128 = vunpack.c.h.b16 %v27
  %v129 = vunpack.c.l.b16 %v28
  %v130 = vunpack.c.h.b16 %v28
  %v131 = vunpack.c.l.b16 %v29
  %v132 = vunpack.c.h.b16 %v29
  %v133 = vunpack.c.l.b16 %v30
  %v134 = vunpack.c.h.b16 %v30
  %v135 = vunpack.c.l.b16 %v31
  %v136 = vunpack.c.h.b16 %v31
  %v137 = vunpack.c.l.b16 %v32
  %v138 = vunpack.c.h.b16 %v32
  %v139 = vunpack.c.l.b16 %v33
  %v140 = vunpack.c.h.b16 %v33
  %v141 = vunpack.c.l.b16 %v34
  %v142 = vunpack.c.h.b16 %v34
  %v143 = vunpack.c.l.b16 %v35
  %v144 = vunpack.c.h.b16 %v35
  %v145 = vunpack.c.l.b16 %v36
  %v146 = vunpack.c.h.b16 %v36
  %v147 = vunpack.c.l.b16 %v37
  %v148 = vunpack.c.h.b16 %v37
  %v149 = vunpack.c.l.b16 %v38
  %v150 = vunpack.c.h.b16 %v38
  %v151 = vunpack.c.l.b16 %v39
  %v152 = vunpack.c.h.b16 %v39
  %v153 = vunpack.c.l.b16 %v40
  %v154 = vunpack.c.h.b16 %v40
  %v155 = vunpack.c.l.b16 %v41
  %v156 = vunpack.c.h.b16 %v41
  %v157 = vunpack.c.l.b16 %v42
  %v158 = vunpack.c.h.b16 %v42
  %v159 = vunpack.c.l.b16 %v43
  %v160 = vunpack.c.h.b16 %v43
  %v161 = vunpack.c.l.b16 %v44
  %v162 = vunpack.c.h.b16 %v44
  %v163 = vunpack.c.l.b16 %v45
  %v164 = vunpack.c.h.b16 %v45
  %v165 = vunpack.c.l.b16 %v46
  %v166 = vunpack.c.h.b16 %v46
  %v167 = vunpack.c.l.b16 %v47
  %v168 = vunpack.c.h.b16 %v47
  %v169 = vunpack.c.l.b16 %v48
  %v170 = vunpack.c.h.b16 %v48
  %v171 = vunpack.c.l.b16 %v49
  %v172 = vunpack.c.h.b16 %v49
  %v173 = vunpack.c.l.b16 %v50
  %v174 = vunpack.c.h.b16 %v50
  %v175 = vunpack.c.l.b16 %v51
  %v176 = vunpack.c.h.b16 %v51
  %v177 = vpack.c.b16 %v115, %v113
  %v178 = vpack.c.b16 %v116, %v114
  %v179 = vpack.c.b16 %v119, %v117
  %v180 = vpack.c.b16 %v120, %v118
  %v181 = vpack.c.b16 %v123, %v121
  %v182 = vpack.c.b16 %v124, %v122
  %v183 = vpack.c.b16 %v127, %v125
  %v184 = vpack.c.b16 %v128, %v126
  %v185 = vpack.c.b16 %v131, %v129
  %v186 = vpack.c.b16 %v132, %v130
  %v187 = vpack.c.b16 %v135, %v133
  %v188 = vpack.c.b16 %v136, %v134
  %v189 = vpack.c.b16 %v139, %v137
  %v190 = vpack.c.b16 %v140, %v138
  %v191 = vpack.c.b16 %v143, %v141
  %v192 = vpack.c.b16 %v144, %v142
  %v193 = vpack.c.b16 %v147, %v145
  %v194 = vpack.c.b16 %v148, %v146
  %v195 = vpack.c.b16 %v151, %v149
  %v196 = vpack.c.b16 %v152, %v150
  %v197 = vpack.c.b16 %v155, %v153
  %v198 = vpack.c.b16 %v156, %v154
  %v199 = vpack.c.b16 %v159, %v157
  %v200 = vpack.c.b16 %v160, %v158
  %v201 = vpack.c.b16 %v163, %v161
  %v202 = vpack.c.b16 %v164, %v162
  %v203 = vpack.c.b16 %v167, %v165
  %v204 = vpack.c.b16 %v168, %v166
  %v205 = vpack.c.b16 %v171, %v169
  %v206 = vpack.c.b16 %v172, %v170
  %v207 = vpack.c.b16 %v175, %v173
  %v208 = vpack.c.b16 %v176, %v174
  %241 = vmatprep.subr.bf16.mxu0 %v192
  %242 = vmatpush1.bf16.msra.mxu0 %v191
  %243 = vmatprep.subr.bf16.mxu0 %v190
  %244 = vmatpush1.bf16.msra.mxu0 %v189
  %245 = vmatprep.subr.bf16.mxu0 %v188
  %246 = vmatpush1.bf16.msra.mxu0 %v187
  %247 = vmatprep.subr.bf16.mxu0 %v186
  %248 = vmatpush1.bf16.msra.mxu0 %v185
  %249 = vmatprep.subr.bf16.mxu0 %v184
  %250 = vmatpush1.bf16.msra.mxu0 %v183
  %251 = vmatprep.subr.bf16.mxu0 %v182
  %252 = vmatpush1.bf16.msra.mxu0 %v181
  %253 = vmatprep.subr.bf16.mxu0 %v180
  %254 = vmatpush1.bf16.msra.mxu0 %v179
  %255 = vmatprep.subr.bf16.mxu0 %v178
  %256 = vmatpush1.bf16.msra.mxu0 %v177
  %257 = vmatprep.subr.bf16.mxu0 %v208
  %258 = vmatpush2.bf16.msra.mxu0 %v207
  %259 = vmatprep.subr.bf16.mxu0 %v206
  %260 = vmatpush2.bf16.msra.mxu0 %v205
  %261 = vmatprep.subr.bf16.mxu0 %v204
  %262 = vmatpush2.bf16.msra.mxu0 %v203
  %263 = vmatprep.subr.bf16.mxu0 %v202
  %264 = vmatpush2.bf16.msra.mxu0 %v201
  %265 = vmatprep.subr.bf16.mxu0 %v200
  %266 = vmatpush2.bf16.msra.mxu0 %v199
  %267 = vmatprep.subr.bf16.mxu0 %v198
  %268 = vmatpush2.bf16.msra.mxu0 %v197
  %269 = vmatprep.subr.bf16.mxu0 %v196
  %270 = vmatpush2.bf16.msra.mxu0 %v195
  %271 = vmatprep.subr.bf16.mxu0 %v194
  %272 = vmatpush2.bf16.msra.mxu0 %v193
  %273 = vmatprep.mubr.bf16.mxu0 %v74
  %274 = vmatmul.mubr.bf16.gmra.mxu0 %v73
  %v275 = vpop.f32.mrf.mxu0
  %v276 = vadd.f32 %v57, %v275
  %v277 = vpop.f32.mrf.mxu0
  %v278 = vadd.f32 %v61, %v277
  %v279 = vpop.f32.mrf.mxu0
  %v280 = vadd.f32 %v57, %v279
  %v281 = vpop.f32.mrf.mxu0
  %v282 = vadd.f32 %v61, %v281
  %283 = vmatprep.mubr.bf16.mxu0 %v76
  %284 = vmatmul.mubr.bf16.gmra.mxu0 %v75
  %v285 = vpop.f32.mrf.mxu0
  %v286 = vadd.f32 %v57, %v285
  %v287 = vpop.f32.mrf.mxu0
  %v288 = vadd.f32 %v61, %v287
  %v289 = vpop.f32.mrf.mxu0
  %v290 = vpop.f32.mrf.mxu0
  %291 = vdwg.mxu0
  %v292 = vld [vmem:[%s3] sm:$0xff]
  %v293 = vld [vmem:[%s3 + $0x8] sm:$0xff]
  %v294 = vld [vmem:[%s3 + $0x10] sm:$0xff]
  %v295 = vld [vmem:[%s3 + $0x18] sm:$0xff]
  %v296 = vld [vmem:[%s3 + $0x20] sm:$0x3]
  %v297 = vld [vmem:[%s3 + $0x28] sm:$0x3]
  %v298 = vadd.f32 %v276, %v292
  %v299 = vadd.f32 %v278, %v293
  %v300 = vadd.f32 %v280, %v294
  %v301 = vadd.f32 %v282, %v295
  %v302 = vadd.f32 %v286, %v296
  %v303 = vadd.f32 %v288, %v297
  %304 = vst [vmem:[%s4] sm:$0xff] %v298
  %305 = vst [vmem:[%s4 + $0x8] sm:$0xff] %v299
  %306 = vst [vmem:[%s4 + $0x10] sm:$0xff] %v300
  %307 = vst [vmem:[%s4 + $0x18] sm:$0xff] %v301
  %308 = vst [vmem:[%s4 + $0x20] sm:$0x3] %v302
  %309 = vst [vmem:[%s4 + $0x28] sm:$0x3] %v303
  // Predicated region
  $region18: #{eeg_transformer_forward.8} parent=0 // pred_check
    _
  $region19: #{eeg_transformer_forward.8} parent=0 // pred_check_branch
    %311 = sbr.rel (0) target = $region21
  $region20: #{eeg_transformer_forward.8} parent=0 // pred_region
    _
  $region21: #{eeg_transformer_forward.8} parent=0 // pred_fallthru
    _
  // Predicated region
  $region22: #{eeg_transformer_forward.8} parent=0 // pred_check
    _
  $region23: #{eeg_transformer_forward.8} parent=0 // pred_check_branch
    %313 = sbr.rel (0) target = $region25
  $region24: #{eeg_transformer_forward.8} parent=0 // pred_region
    _
  $region25: #{eeg_transformer_forward.8} parent=0 // pred_fallthru
    _

// kernel: eeg_transformer_forward.6
$region0: #{eeg_transformer_forward.6}
  #allocation0 [shape = 'u32[]', space=smem, size = 0x4, offset = 0x4, fixed_abs, tag = 'smem constant byte address 0x4 - core index']
  #allocation1 [shape = 'u32[144,128]{1,0:T(1,128)}', space=vmem, size = 0x12000, scoped, tag = 'internal scratch']
  #allocation2 [shape = 'bf16[18,256]{1,0:T(8,128)(2,1)}', space=vmem, size = 0x3000, scoped, tag = 'scratch operand']
  %s0 = inlined_call_operand.vmem [shape: f32[18,256], index: 0, kind: input, shape index: {}]
  %s1 = inlined_call_operand.hbm [shape: f32[1,256], index: 1, kind: input, shape index: {}]
  %s2 = inlined_call_operand.hbm [shape: f32[1,256], index: 2, kind: input, shape index: {}]
  %s3 = inlined_call_operand.hbm [shape: bf16[256,768], index: 3, kind: input, shape index: {}]
  %s4 = inlined_call_operand.vmem [shape: bf16[18,768], index: 4, kind: output, shape index: {}]
  %s5 = sld [smem:[#allocation0]]
  $region99: #{eeg_transformer_forward.6} parent=0
    _
  %s7 = ssub.s32 1, %s5
  %s8 = scalar_select 0, %s7, %s5
  $region1: #{eeg_transformer_forward.6} parent=0
    #allocation3 [shape = 'u8[1024]{0}', space=vmem, size = 0x400, scoped, tag = 'input window, operand 1, single buffered']
    #allocation4 [shape = 's32[2]{0}', space=sflag, size = 0x8, scoped, tag = 'scoped memory for eeg_transformer_forward.6']
    #allocation5 [shape = 'u8[1024]{0}', space=vmem, size = 0x400, scoped, tag = 'input window, operand 2, single buffered']
    #allocation6 [shape = 's32[1]{0}', space=sflag, size = 0x4, scoped, tag = 'scoped memory for eeg_transformer_forward.6']
    #allocation7 [shape = 'u8[262144]{0}', space=vmem, size = 0x40000, scoped, tag = 'input window, operand 3']
    #allocation8 [shape = 'u8[24576]{0}', space=vmem, size = 0x6000, scoped, tag = 'output window, operand 0']
    %9 = vsyncpa [#allocation4], 0
    %10 = vsyncpa [#allocation6], 0
    loop: start=0, step=1, limit=5
    $region2: #{eeg_transformer_forward.6} parent=1 // loop_pre_header
      _
    $region3: #{eeg_transformer_forward.6} parent=1 // loop_header
      %s12 = sphi 0, %s16
      %p13 = scmp.ge.s32.totalorder %s12, 5
      %s19 = sphi 0, %s31
      %s20 = sphi 0, %s27
      %s21 = sphi 0, %s19
      %s22 = sphi 0, %s20
      %s23 = sphi 0, %s21
      %s24 = sphi 0, %s22
      %s34 = sphi 0, %s36
      %s37 = sphi 0, %s34
      %s38 = sphi 0, %s37
      %s54 = sphi 0, %s38
      %s58 = sphi 0, %s58
      %s60 = sphi 0, %s58
      %s61 = sphi 0, %s60
      %s75 = sphi 0, %s61
      %s79 = sphi 0, %s79
      %s81 = sphi 0, %s79
      %s82 = sphi 0, %s81
      %s96 = sphi 0, %s82
      %s102 = sphi 0, %s104
      %s105 = sphi 0, %s102
      %s106 = sphi 0, %s105
      %s122 = sphi 0, %s106
      %s130 = sphi 0, %s132
      %s133 = sphi 0, %s130
      %s134 = sphi 0, %s133
      %s150 = sphi 0, %s134
    $region4: #{eeg_transformer_forward.6} parent=1 // loop_header_branch
      %15 = sbr.rel (%p13) target = $region8
    $region5: #{eeg_transformer_forward.6} parent=1 // loop_body
      %s17 = ssub.s32 %s12, 1
      %s18 = ssub.s32 %s12, 2
      %s25 = sadd.s32 1, %s20
      %p26 = scmp.ge.s32.totalorder %s25, 3
      %s27 = scalar_select %p26, 0, %s25
      %s28 = sadd.s32 1, %s19
      %s29 = scalar_select %p26, %s28, %s19
      %p30 = scmp.ge.s32.totalorder %s29, 1
      %s31 = scalar_select %p30, 0, %s29
      %s32 = ssub.s32 %s19, %s31
      %p33 = scmp.eq.s32.totalorder %s32, 0
      %s35 = sadd.s32 %s34, 1
      %s36 = scalar_select %p33, %s34, %s35
      %p39 = pneg %p33
      %p40 = scmp.eq.s32.totalorder %s12, 2
      %p41 = por %p39, %p40
      %p42 = scmp.ne.s32.totalorder %s34, %s37
      %p43 = scmp.eq.s32.totalorder %s12, 0
      %p44 = por %p42, %p43
      %p45 = scmp.ne.s32.totalorder %s34, %s37
      %p46 = scmp.eq.s32.totalorder %s17, 2
      %p47 = por %p45, %p46
      %p48 = scmp.ne.s32.totalorder %s37, %s38
      %p49 = scmp.eq.s32.totalorder %s17, 0
      %p50 = por %p48, %p49
      %p51 = scmp.ne.s32.totalorder %s37, %s38
      %p52 = scmp.eq.s32.totalorder %s18, 2
      %p53 = por %p51, %p52
      %p55 = scmp.ne.s32.totalorder %s38, %s54
      %p56 = scmp.eq.s32.totalorder %s18, 0
      %p57 = por %p55, %p56
      %s59 = sadd.s32 %s58, 1
      %p62 = scmp.eq.s32.totalorder %s12, 2
      %p63 = scmp.ne.s32.totalorder %s58, %s60
      %p64 = scmp.eq.s32.totalorder %s12, 0
      %p65 = por %p63, %p64
      %p66 = scmp.ne.s32.totalorder %s58, %s60
      %p67 = scmp.eq.s32.totalorder %s17, 2
      %p68 = por %p66, %p67
      %p69 = scmp.ne.s32.totalorder %s60, %s61
      %p70 = scmp.eq.s32.totalorder %s17, 0
      %p71 = por %p69, %p70
      %p72 = scmp.ne.s32.totalorder %s60, %s61
      %p73 = scmp.eq.s32.totalorder %s18, 2
      %p74 = por %p72, %p73
      %p76 = scmp.ne.s32.totalorder %s61, %s75
      %p77 = scmp.eq.s32.totalorder %s18, 0
      %p78 = por %p76, %p77
      %s80 = sadd.s32 %s79, 1
      %p83 = scmp.eq.s32.totalorder %s12, 2
      %p84 = scmp.ne.s32.totalorder %s79, %s81
      %p85 = scmp.eq.s32.totalorder %s12, 0
      %p86 = por %p84, %p85
      %p87 = scmp.ne.s32.totalorder %s79, %s81
      %p88 = scmp.eq.s32.totalorder %s17, 2
      %p89 = por %p87, %p88
      %p90 = scmp.ne.s32.totalorder %s81, %s82
      %p91 = scmp.eq.s32.totalorder %s17, 0
      %p92 = por %p90, %p91
      %p93 = scmp.ne.s32.totalorder %s81, %s82
      %p94 = scmp.eq.s32.totalorder %s18, 2
      %p95 = por %p93, %p94
      %p97 = scmp.ne.s32.totalorder %s82, %s96
      %p98 = scmp.eq.s32.totalorder %s18, 0
      %p99 = por %p97, %p98
      %s100 = ssub.s32 %s20, %s27
      %p101 = scmp.eq.s32.totalorder %s100, 0
      %s103 = sadd.s32 %s102, 1
      %s104 = scalar_select %p101, %s102, %s103
      %p107 = pneg %p101
      %p108 = scmp.eq.s32.totalorder %s12, 2
      %p109 = por %p107, %p108
      %p110 = scmp.ne.s32.totalorder %s102, %s105
      %p111 = scmp.eq.s32.totalorder %s12, 0
      %p112 = por %p110, %p111
      %p113 = scmp.ne.s32.totalorder %s102, %s105
      %p114 = scmp.eq.s32.totalorder %s17, 2
      %p115 = por %p113, %p114
      %p116 = scmp.ne.s32.totalorder %s105, %s106
      %p117 = scmp.eq.s32.totalorder %s17, 0
      %p118 = por %p116, %p117
      %p119 = scmp.ne.s32.totalorder %s105, %s106
      %p120 = scmp.eq.s32.totalorder %s18, 2
      %p121 = por %p119, %p120
      %p123 = scmp.ne.s32.totalorder %s106, %s122
      %p124 = scmp.eq.s32.totalorder %s18, 0
      %p125 = por %p123, %p124
      %s126 = ssub.s32 %s19, %s31
      %s127 = ssub.s32 %s20, %s27
      %s128 = sor.u32 %s126, %s127
      %p129 = scmp.eq.s32.totalorder %s128, 0
      %s131 = sadd.s32 %s130, 1
      %s132 = scalar_select %p129, %s130, %s131
      %p135 = pneg %p129
      %p136 = scmp.eq.s32.totalorder %s12, 2
      %p137 = por %p135, %p136
      %p138 = scmp.ne.s32.totalorder %s130, %s133
      %p139 = scmp.eq.s32.totalorder %s12, 0
      %p140 = por %p138, %p139
      %p141 = scmp.ne.s32.totalorder %s130, %s133
      %p142 = scmp.eq.s32.totalorder %s17, 2
      %p143 = por %p141, %p142
      %p144 = scmp.ne.s32.totalorder %s133, %s134
      %p145 = scmp.eq.s32.totalorder %s17, 0
      %p146 = por %p144, %p145
      %p147 = scmp.ne.s32.totalorder %s133, %s134
      %p148 = scmp.eq.s32.totalorder %s18, 2
      %p149 = por %p147, %p148
      %p151 = scmp.ne.s32.totalorder %s134, %s150
      %p152 = scmp.eq.s32.totalorder %s18, 0
      %p153 = por %p151, %p152
      %p154 = scmp.le.s32.totalorder 1, %s12
      %p155 = scmp.lt.s32.totalorder %s12, 4
      %p156 = pnand %p154, %p155
      %p157 = pneg %p156
      // Predicated region
      $region9: #{eeg_transformer_forward.6} parent=5 // pred_check
        _
      $region10: #{eeg_transformer_forward.6} parent=5 // pred_check_branch
        %159 = sbr.rel (%p156) target = $region12
      $region11: #{eeg_transformer_forward.6} parent=5 // pred_region
        %s160 = ssub.s32 %s12, 1
        // Predicated region
        $region13: #{eeg_transformer_forward.6} parent=11 // pred_check
          %p161 = pneg %p50
        $region14: #{eeg_transformer_forward.6} parent=11 // pred_check_branch
          %163 = sbr.rel (%p161) target = $region16
        $region15: #{eeg_transformer_forward.6} parent=11 // pred_region
          %s164 = smul.u32 3, %s21
          %p165 = scmp.lt.s32.totalorder %s164, 2
          %s166 = scalar_select %p165, %s164, 2
          %s167 = smul.addr %s166, 2
          %s168 = smul.addr %s167, 8
          %s169 = scalar_lea.vmem %s0, %s168
          %s170 = smul.u32 3, %s21
        $region16: #{eeg_transformer_forward.6} parent=11 // pred_fallthru
          _
        // Predicated region
        $region17: #{eeg_transformer_forward.6} parent=11 // pred_check
          %p171 = pneg %p71
        $region18: #{eeg_transformer_forward.6} parent=11 // pred_check_branch
          %173 = sbr.rel (%p171) target = $region20
        $region19: #{eeg_transformer_forward.6} parent=11 // pred_region
          %s175 = ssub.s32 32, 32
          %176 = vsyncadd [#allocation4], %s175
          %s178 = sshll.u32 [#allocation3], 4
          %s179 = int_to_ptr.vmem [resolvable:$true] %s178
          %181 = dma.hbm_to_vmem [thread:$0]  %s1, 32, %s179, [#allocation4]
        $region20: #{eeg_transformer_forward.6} parent=11 // pred_fallthru
          _
        // Predicated region
        $region21: #{eeg_transformer_forward.6} parent=11 // pred_check
          %p182 = pneg %p92
        $region22: #{eeg_transformer_forward.6} parent=11 // pred_check_branch
          %184 = sbr.rel (%p182) target = $region24
        $region23: #{eeg_transformer_forward.6} parent=11 // pred_region
          %s186 = ssub.s32 32, 32
          %187 = vsyncadd [#allocation6], %s186
          %s189 = sshll.u32 [#allocation5], 4
          %s190 = int_to_ptr.vmem [resolvable:$true] %s189
          %192 = dma.hbm_to_vmem [thread:$0]  %s2, 32, %s190, [#allocation6]
        $region24: #{eeg_transformer_forward.6} parent=11 // pred_fallthru
          _
      $region12: #{eeg_transformer_forward.6} parent=5 // pred_fallthru
        _
      %p193 = scmp.lt.s32.totalorder %s12, 3
      // Predicated region
      $region25: #{eeg_transformer_forward.6} parent=5 // pred_check
        %p194 = pneg %p193
      $region26: #{eeg_transformer_forward.6} parent=5 // pred_check_branch
        %196 = sbr.rel (%p194) target = $region28
      $region27: #{eeg_transformer_forward.6} parent=5 // pred_region
        // Predicated region
        $region29: #{eeg_transformer_forward.6} parent=27 // pred_check
          %p197 = pneg %p112
        $region30: #{eeg_transformer_forward.6} parent=27 // pred_check_branch
          %199 = sbr.rel (%p197) target = $region32
        $region31: #{eeg_transformer_forward.6} parent=27 // pred_region
          %s200 = sand.u32 %s12, 1
          %s201 = scalar_lea.sflag [#allocation4], %s200
          %s202 = sand.u32 %s102, 1
          %s203 = smul.addr %s202, 256
          %s204 = scalar_lea.vmem [#allocation7], %s203
          %s205 = smul.u32 2, %s20
          %s207 = ssub.s32 4096, 4096
          %208 = vsyncadd %s201, %s207
          %s209 = smul.addr %s205, 64
          %s210 = scalar_lea.hbm %s3, %s209
          %s211 = sshll.u32 %s204, 4
          %s212 = int_to_ptr.vmem [resolvable:$true] %s211
          %217 = dma.hbm_to_vmem [thread:$0]  %s210, 4096, %s212, %s201, 384, 128, 8
        $region32: #{eeg_transformer_forward.6} parent=27 // pred_fallthru
          _
      $region28: #{eeg_transformer_forward.6} parent=5 // pred_fallthru
        _
      %p218 = scmp.le.s32.totalorder 1, %s12
      %p219 = scmp.lt.s32.totalorder %s12, 4
      %p220 = pnand %p218, %p219
      %p221 = pneg %p220
      // Predicated region
      $region33: #{eeg_transformer_forward.6} parent=5 // pred_check
        _
      $region34: #{eeg_transformer_forward.6} parent=5 // pred_check_branch
        %223 = sbr.rel (%p220) target = $region36
      $region35: #{eeg_transformer_forward.6} parent=5 // pred_region
        %s224 = ssub.s32 %s12, 1
        // Predicated region
        $region37: #{eeg_transformer_forward.6} parent=35 // pred_check
          %p225 = pneg %p71
        $region38: #{eeg_transformer_forward.6} parent=35 // pred_check_branch
          %227 = sbr.rel (%p225) target = $region40
        $region39: #{eeg_transformer_forward.6} parent=35 // pred_region
          %228 = dma.done [#allocation4], 32
        $region40: #{eeg_transformer_forward.6} parent=35 // pred_fallthru
          _
        // Predicated region
        $region41: #{eeg_transformer_forward.6} parent=35 // pred_check
          %p229 = pneg %p92
        $region42: #{eeg_transformer_forward.6} parent=35 // pred_check_branch
          %231 = sbr.rel (%p229) target = $region44
        $region43: #{eeg_transformer_forward.6} parent=35 // pred_region
          %232 = dma.done [#allocation6], 32
        $region44: #{eeg_transformer_forward.6} parent=35 // pred_fallthru
          _
        %s233 = sand.u32 %s17, 1
        %s234 = scalar_lea.sflag [#allocation4], %s233
        %s235 = sand.u32 %s105, 1
        %s236 = smul.addr %s235, 256
        %s237 = scalar_lea.vmem [#allocation7], %s236
        // Predicated region
        $region45: #{eeg_transformer_forward.6} parent=35 // pred_check
          %p238 = pneg %p118
        $region46: #{eeg_transformer_forward.6} parent=35 // pred_check_branch
          %240 = sbr.rel (%p238) target = $region48
        $region47: #{eeg_transformer_forward.6} parent=35 // pred_region
          %241 = dma.done %s234, 4096
        $region48: #{eeg_transformer_forward.6} parent=35 // pred_fallthru
          _
        %s242 = smul.u32 3, %s21
        %p243 = scmp.lt.s32.totalorder %s242, 2
        %s244 = scalar_select %p243, %s242, 2
        %s245 = smul.addr %s244, 2
        %s246 = smul.addr %s245, 8
        %s247 = scalar_lea.vmem %s0, %s246
        %p248 = pneg %p50
        %p249 = pneg %p47
        %p250 = pneg %p71
        %p251 = pneg %p68
        %p252 = pneg %p92
        %p253 = pneg %p89
        %s254 = sand.u32 %s17, 1
        %s255 = scalar_lea.sflag [#allocation4], %s254
        %s256 = sand.u32 %s105, 1
        %s257 = smul.addr %s256, 256
        %s258 = scalar_lea.vmem [#allocation7], %s257
        %p259 = pneg %p118
        %p260 = pneg %p115
        %p261 = pneg %p146
        %p262 = pneg %p143
        %s263 = sand.u32 %s133, 1
        %s264 = sand.u32 %s133, 1
        %s265 = smul.addr %s264, 24
        %s266 = scalar_lea.vmem [#allocation8], %s265
        %s267 = smul.u32 3, %s21
        %p268 = scmp.lt.s32.totalorder %s267, 2
        %s269 = scalar_select %p268, %s267, 2
        %s270 = smul.addr %s269, 2
        %s271 = smul.addr %s270, 8
        %s272 = scalar_lea.vmem %s0, %s271
        %s273 = smul.u32 3, %s21
        %s274 = smul.u32 2, %s22
        %s275 = smul.u32 3, %s21
        %s276 = smul.u32 2, %s22
        %p277 = scmp.eq.s32.totalorder %s22, 0
        // Predicated region
        $region49: #{eeg_transformer_forward.6} parent=35 // pred_check
          %p278 = pneg %p277
        $region50: #{eeg_transformer_forward.6} parent=35 // pred_check_branch
          %280 = sbr.rel (%p278) target = $region52
        $region51: #{eeg_transformer_forward.6} parent=35 // pred_region
          %v281 = vld [vmem:[%s272] sm:$0xff]
          %v282 = vld [vmem:[%s272 + $0x8] sm:$0xff]
          %v283 = vld [vmem:[%s272 + $0x10] sm:$0xff]
          %v284 = vld [vmem:[%s272 + $0x18] sm:$0xff]
          %v285 = vld [vmem:[%s272 + $0x20] sm:$0x3]
          %v286 = vld [vmem:[%s272 + $0x28] sm:$0x3]
          %v287 = vadd.f32 %v281, %v282
          %288 = vadd.xlane.f32.xlu0 %v287
          %v289 = vpop.xlane.xlu0 %288
          %v290 = vadd.f32 %v283, %v284
          %291 = vadd.xlane.f32.xlu0 %v290
          %v292 = vpop.xlane.xlu0 %291
          %vm293 = vcmask 1041408
          %v294 = vsel %vm293, %v285, 0.0
          %v295 = vsel %vm293, %v286, 0.0
          %v296 = vadd.f32 %v294, %v295
          %297 = vadd.xlane.f32.xlu0 %v296
          %v298 = vpop.xlane.xlu0 %297
          %v299 = vrcp.pop 256.0
          %v300 = vmul.f32 %v289, %v299
          %v301 = vmul.f32 %v292, %v299
          %v302 = vmul.f32 %v298, %v299
          %v303 = vsub.f32 %v281, %v300
          %v304 = vsub.f32 %v282, %v300
          %v305 = vsub.f32 %v283, %v301
          %v306 = vsub.f32 %v284, %v301
          %v307 = vsub.f32 %v285, %v302
          %v308 = vsub.f32 %v286, %v302
          %v309 = vmul.f32 %v303, %v303
          %v310 = vmul.f32 %v304, %v304
          %v311 = vmul.f32 %v305, %v305
          %v312 = vmul.f32 %v306, %v306
          %v313 = vmul.f32 %v307, %v307
          %v314 = vmul.f32 %v308, %v308
          %v315 = vadd.f32 %v309, %v310
          %316 = vadd.xlane.f32.xlu0 %v315
          %v317 = vpop.xlane.xlu0 %316
          %v318 = vadd.f32 %v311, %v312
          %319 = vadd.xlane.f32.xlu0 %v318
          %v320 = vpop.xlane.xlu0 %319
          %v321 = vsel %vm293, %v313, 0.0
          %v322 = vsel %vm293, %v314, 0.0
          %v323 = vadd.f32 %v321, %v322
          %324 = vadd.xlane.f32.xlu0 %v323
          %v325 = vpop.xlane.xlu0 %324
          %v326 = vmul.f32 %v317, %v299
          %v327 = vmul.f32 %v320, %v299
          %v328 = vmul.f32 %v325, %v299
          %v329 = vadd.f32 %v326, 1e-05
          %v330 = vadd.f32 %v327, 1e-05
          %v331 = vadd.f32 %v328, 1e-05
          %v332 = vrsqrt.pop %v329
          %v333 = vrsqrt.pop %v330
          %v334 = vrsqrt.pop %v331
          %v335 = vmul.f32 %v303, %v332
          %v336 = vmul.f32 %v304, %v332
          %v337 = vmul.f32 %v305, %v333
          %v338 = vmul.f32 %v306, %v333
          %v339 = vmul.f32 %v307, %v334
          %v340 = vmul.f32 %v308, %v334
          %v341 = vld [vmem:[#allocation3] sm:$0x3]
          %v343 = vlaneseq
          %v344 = vshrl.u32 %v343, 7
          %v345 = vsub.s32 0, %v344
          %v346 = vrot.slane %v341, %v345
          %v347 = vlaneseq
          %v348 = vshrl.u32 %v347, 7
          %v349 = vsub.s32 1, %v348
          %v350 = vrot.slane %v341, %v349
          %v353 = vmul.f32 %v335, %v346
          %v354 = vmul.f32 %v336, %v350
          %v355 = vmul.f32 %v337, %v346
          %v356 = vmul.f32 %v338, %v350
          %v357 = vmul.f32 %v339, %v346
          %v358 = vmul.f32 %v340, %v350
          %v359 = vld [vmem:[#allocation5] sm:$0x3]
          %v361 = vlaneseq
          %v362 = vshrl.u32 %v361, 7
          %v363 = vsub.s32 0, %v362
          %v364 = vrot.slane %v359, %v363
          %v365 = vlaneseq
          %v366 = vshrl.u32 %v365, 7
          %v367 = vsub.s32 1, %v366
          %v368 = vrot.slane %v359, %v367
          %v371 = vadd.f32 %v353, %v364
          %v372 = vadd.f32 %v354, %v368
          %v373 = vadd.f32 %v355, %v364
          %v374 = vadd.f32 %v356, %v368
          %v375 = vadd.f32 %v357, %v364
          %v376 = vadd.f32 %v358, %v368
          %v377 = vpack.c.bf16 %v373, %v371
          %v378 = vpack.c.bf16 %v374, %v372
          %v379 = vpack.c.bf16 %v375, %v375
          %v380 = vpack.c.bf16 %v376, %v376
          %v385 = vunpack.c.l.b16 %v377
          %v386 = vunpack.c.l.b16 %v378
          %v387 = vunpack.c.h.b16 %v377
          %v388 = vunpack.c.h.b16 %v378
          %v389 = vunpack.c.l.b16 %v379
          %v390 = vunpack.c.l.b16 %v380
          %v391 = vpack.c.b16 %v386, %v385
          %v392 = vpack.c.b16 %v388, %v387
          %v393 = vpack.c.b16 %v390, %v389
          %397 = vst [vmem:[#allocation2] sm:$0xff] %v391
          %398 = vst [vmem:[#allocation2 + $0x8] sm:$0xff] %v392
          %399 = vst [vmem:[#allocation2 + $0x10] sm:$0x11] %v393
        $region52: #{eeg_transformer_forward.6} parent=35 // pred_fallthru
          _
        %v400 = vld [vmem:[#allocation2] sm:$0xff]
        %v401 = vld [vmem:[#allocation2 + $0x8] sm:$0xff]
        %v402 = vld [vmem:[#allocation2 + $0x10] sm:$0x11]
        %v403 = vld [vmem:[%s237] sm:$0xff]
        %v404 = vld [vmem:[%s237 + $0x8] sm:$0xff]
        %v405 = vld [vmem:[%s237 + $0x10] sm:$0xff]
        %v406 = vld [vmem:[%s237 + $0x18] sm:$0xff]
        %v407 = vld [vmem:[%s237 + $0x20] sm:$0xff]
        %v408 = vld [vmem:[%s237 + $0x28] sm:$0xff]
        %v409 = vld [vmem:[%s237 + $0x30] sm:$0xff]
        %v410 = vld [vmem:[%s237 + $0x38] sm:$0xff]
        %v411 = vld [vmem:[%s237 + $0x40] sm:$0xff]
        %v412 = vld [vmem:[%s237 + $0x48] sm:$0xff]
        %v413 = vld [vmem:[%s237 + $0x50] sm:$0xff]
        %v414 = vld [vmem:[%s237 + $0x58] sm:$0xff]
        %v415 = vld [vmem:[%s237 + $0x60] sm:$0xff]
        %v416 = vld [vmem:[%s237 + $0x68] sm:$0xff]
        %v417 = vld [vmem:[%s237 + $0x70] sm:$0xff]
        %v418 = vld [vmem:[%s237 + $0x78] sm:$0xff]
        %v419 = vld [vmem:[%s237 + $0x80] sm:$0xff]
        %v420 = vld [vmem:[%s237 + $0x88] sm:$0xff]
        %v421 = vld [vmem:[%s237 + $0x90] sm:$0xff]
        %v422 = vld [vmem:[%s237 + $0x98] sm:$0xff]
        %v423 = vld [vmem:[%s237 + $0xa0] sm:$0xff]
        %v424 = vld [vmem:[%s237 + $0xa8] sm:$0xff]
        %v425 = vld [vmem:[%s237 + $0xb0] sm:$0xff]
        %v426 = vld [vmem:[%s237 + $0xb8] sm:$0xff]
        %v427 = vld [vmem:[%s237 + $0xc0] sm:$0xff]
        %v428 = vld [vmem:[%s237 + $0xc8] sm:$0xff]
        %v429 = vld [vmem:[%s237 + $0xd0] sm:$0xff]
        %v430 = vld [vmem:[%s237 + $0xd8] sm:$0xff]
        %v431 = vld [vmem:[%s237 + $0xe0] sm:$0xff]
        %v432 = vld [vmem:[%s237 + $0xe8] sm:$0xff]
        %v433 = vld [vmem:[%s237 + $0xf0] sm:$0xff]
        %v434 = vld [vmem:[%s237 + $0xf8] sm:$0xff]
        %v438 = vunpack.c.l.b16 %v400
        %v439 = vunpack.c.h.b16 %v400
        %v440 = vunpack.c.l.b16 %v401
        %v441 = vunpack.c.h.b16 %v401
        %v442 = vunpack.c.l.b16 %v402
        %v443 = vunpack.c.h.b16 %v402
        %v444 = vpack.c.b16 %v440, %v438
        %v445 = vpack.c.b16 %v441, %v439
        %v446 = vpack.c.b16 %v442, %v442
        %v447 = vpack.c.b16 %v443, %v443
        %v484 = vunpack.c.l.b16 %v403
        %v485 = vunpack.c.h.b16 %v403
        %v486 = vunpack.c.l.b16 %v404
        %v487 = vunpack.c.h.b16 %v404
        %v488 = vunpack.c.l.b16 %v405
        %v489 = vunpack.c.h.b16 %v405
        %v490 = vunpack.c.l.b16 %v406
        %v491 = vunpack.c.h.b16 %v406
        %v492 = vunpack.c.l.b16 %v407
        %v493 = vunpack.c.h.b16 %v407
        %v494 = vunpack.c.l.b16 %v408
        %v495 = vunpack.c.h.b16 %v408
        %v496 = vunpack.c.l.b16 %v409
        %v497 = vunpack.c.h.b16 %v409
        %v498 = vunpack.c.l.b16 %v410
        %v499 = vunpack.c.h.b16 %v410
        %v500 = vunpack.c.l.b16 %v411
        %v501 = vunpack.c.h.b16 %v411
        %v502 = vunpack.c.l.b16 %v412
        %v503 = vunpack.c.h.b16 %v412
        %v504 = vunpack.c.l.b16 %v413
        %v505 = vunpack.c.h.b16 %v413
        %v506 = vunpack.c.l.b16 %v414
        %v507 = vunpack.c.h.b16 %v414
        %v508 = vunpack.c.l.b16 %v415
        %v509 = vunpack.c.h.b16 %v415
        %v510 = vunpack.c.l.b16 %v416
        %v511 = vunpack.c.h.b16 %v416
        %v512 = vunpack.c.l.b16 %v417
        %v513 = vunpack.c.h.b16 %v417
        %v514 = vunpack.c.l.b16 %v418
        %v515 = vunpack.c.h.b16 %v418
        %v516 = vunpack.c.l.b16 %v419
        %v517 = vunpack.c.h.b16 %v419
        %v518 = vunpack.c.l.b16 %v420
        %v519 = vunpack.c.h.b16 %v420
        %v520 = vunpack.c.l.b16 %v421
        %v521 = vunpack.c.h.b16 %v421
        %v522 = vunpack.c.l.b16 %v422
        %v523 = vunpack.c.h.b16 %v422
        %v524 = vunpack.c.l.b16 %v423
        %v525 = vunpack.c.h.b16 %v423
        %v526 = vunpack.c.l.b16 %v424
        %v527 = vunpack.c.h.b16 %v424
        %v528 = vunpack.c.l.b16 %v425
        %v529 = vunpack.c.h.b16 %v425
        %v530 = vunpack.c.l.b16 %v426
        %v531 = vunpack.c.h.b16 %v426
        %v532 = vunpack.c.l.b16 %v427
        %v533 = vunpack.c.h.b16 %v427
        %v534 = vunpack.c.l.b16 %v428
        %v535 = vunpack.c.h.b16 %v428
        %v536 = vunpack.c.l.b16 %v429
        %v537 = vunpack.c.h.b16 %v429
        %v538 = vunpack.c.l.b16 %v430
        %v539 = vunpack.c.h.b16 %v430
        %v540 = vunpack.c.l.b16 %v431
        %v541 = vunpack.c.h.b16 %v431
        %v542 = vunpack.c.l.b16 %v432
        %v543 = vunpack.c.h.b16 %v432
        %v544 = vunpack.c.l.b16 %v433
        %v545 = vunpack.c.h.b16 %v433
        %v546 = vunpack.c.l.b16 %v434
        %v547 = vunpack.c.h.b16 %v434
        %v548 = vpack.c.b16 %v486, %v484
        %v549 = vpack.c.b16 %v487, %v485
        %v550 = vpack.c.b16 %v490, %v488
        %v551 = vpack.c.b16 %v491, %v489
        %v552 = vpack.c.b16 %v494, %v492
        %v553 = vpack.c.b16 %v495, %v493
        %v554 = vpack.c.b16 %v498, %v496
        %v555 = vpack.c.b16 %v499, %v497
        %v556 = vpack.c.b16 %v502, %v500
        %v557 = vpack.c.b16 %v503, %v501
        %v558 = vpack.c.b16 %v506, %v504
        %v559 = vpack.c.b16 %v507, %v505
        %v560 = vpack.c.b16 %v510, %v508
        %v561 = vpack.c.b16 %v511, %v509
        %v562 = vpack.c.b16 %v514, %v512
        %v563 = vpack.c.b16 %v515, %v513
        %v564 = vpack.c.b16 %v518, %v516
        %v565 = vpack.c.b16 %v519, %v517
        %v566 = vpack.c.b16 %v522, %v520
        %v567 = vpack.c.b16 %v523, %v521
        %v568 = vpack.c.b16 %v526, %v524
        %v569 = vpack.c.b16 %v527, %v525
        %v570 = vpack.c.b16 %v530, %v528
        %v571 = vpack.c.b16 %v531, %v529
        %v572 = vpack.c.b16 %v534, %v532
        %v573 = vpack.c.b16 %v535, %v533
        %v574 = vpack.c.b16 %v538, %v536
        %v575 = vpack.c.b16 %v539, %v537
        %v576 = vpack.c.b16 %v542, %v540
        %v577 = vpack.c.b16 %v543, %v541
        %v578 = vpack.c.b16 %v546, %v544
        %v579 = vpack.c.b16 %v547, %v545
        %612 = vmatprep.subr.bf16.mxu0 %v563
        %613 = vmatpush1.bf16.msra.mxu0 %v562
        %614 = vmatprep.subr.bf16.mxu0 %v561
        %615 = vmatpush1.bf16.msra.mxu0 %v560
        %616 = vmatprep.subr.bf16.mxu0 %v559
        %617 = vmatpush1.bf16.msra.mxu0 %v558
        %618 = vmatprep.subr.bf16.mxu0 %v557
        %619 = vmatpush1.bf16.msra.mxu0 %v556
        %620 = vmatprep.subr.bf16.mxu0 %v555
        %621 = vmatpush1.bf16.msra.mxu0 %v554
        %622 = vmatprep.subr.bf16.mxu0 %v553
        %623 = vmatpush1.bf16.msra.mxu0 %v552
        %624 = vmatprep.subr.bf16.mxu0 %v551
        %625 = vmatpush1.bf16.msra.mxu0 %v550
        %626 = vmatprep.subr.bf16.mxu0 %v549
        %627 = vmatpush1.bf16.msra.mxu0 %v548
        %628 = vmatprep.subr.bf16.mxu0 %v579
        %629 = vmatpush2.bf16.msra.mxu0 %v578
        %630 = vmatprep.subr.bf16.mxu0 %v577
        %631 = vmatpush2.bf16.msra.mxu0 %v576
        %632 = vmatprep.subr.bf16.mxu0 %v575
        %633 = vmatpush2.bf16.msra.mxu0 %v574
        %634 = vmatprep.subr.bf16.mxu0 %v573
        %635 = vmatpush2.bf16.msra.mxu0 %v572
        %636 = vmatprep.subr.bf16.mxu0 %v571
        %637 = vmatpush2.bf16.msra.mxu0 %v570
        %638 = vmatprep.subr.bf16.mxu0 %v569
        %639 = vmatpush2.bf16.msra.mxu0 %v568
        %640 = vmatprep.subr.bf16.mxu0 %v567
        %641 = vmatpush2.bf16.msra.mxu0 %v566
        %642 = vmatprep.subr.bf16.mxu0 %v565
        %643 = vmatpush2.bf16.msra.mxu0 %v564
        %644 = vmatprep.mubr.bf16.mxu0 %v445
        %645 = vmatmul.mubr.bf16.gmra.mxu0 %v444
        %v646 = vpop.f32.mrf.mxu0
        %v647 = vadd.f32 0.0, %v646
        %v648 = vpop.f32.mrf.mxu0
        %v649 = vadd.f32 0.0, %v648
        %v650 = vpop.f32.mrf.mxu0
        %v651 = vadd.f32 0.0, %v650
        %v652 = vpop.f32.mrf.mxu0
        %v653 = vadd.f32 0.0, %v652
        %654 = vmatprep.mubr.bf16.mxu0 %v447
        %655 = vmatmul.mubr.bf16.gmra.mxu0 %v446
        %v656 = vpop.f32.mrf.mxu0
        %v657 = vadd.f32 0.0, %v656
        %v658 = vpop.f32.mrf.mxu0
        %v659 = vadd.f32 0.0, %v658
        %v660 = vpop.f32.mrf.mxu0
        %v661 = vpop.f32.mrf.mxu0
        %662 = vdwg.mxu0
        %v663 = vpack.c.bf16 %v651, %v647
        %v664 = vpack.c.bf16 %v653, %v649
        %v665 = vpack.c.bf16 %v657, %v657
        %v666 = vpack.c.bf16 %v659, %v659
        %v671 = vunpack.c.l.b16 %v663
        %v672 = vunpack.c.l.b16 %v664
        %v673 = vunpack.c.h.b16 %v663
        %v674 = vunpack.c.h.b16 %v664
        %v675 = vunpack.c.l.b16 %v665
        %v676 = vunpack.c.l.b16 %v666
        %v677 = vpack.c.b16 %v672, %v671
        %v678 = vpack.c.b16 %v674, %v673
        %v679 = vpack.c.b16 %v676, %v675
        %683 = vst [vmem:[%s266] sm:$0xff] %v677
        %684 = vst [vmem:[%s266 + $0x8] sm:$0xff] %v678
        %685 = vst [vmem:[%s266 + $0x10] sm:$0x11] %v679
        %s686 = sand.u32 %s133, 1
        %s687 = sand.u32 %s133, 1
        %s688 = smul.addr %s687, 24
        %s689 = scalar_lea.vmem [#allocation8], %s688
        // Predicated region
        $region53: #{eeg_transformer_forward.6} parent=35 // pred_check
          %p690 = pneg %p143
        $region54: #{eeg_transformer_forward.6} parent=35 // pred_check_branch
          %692 = sbr.rel (%p690) target = $region56
        $region55: #{eeg_transformer_forward.6} parent=35 // pred_region
          %s693 = smul.u32 3, %s21
          %s694 = smul.u32 2, %s22
          %s695 = smul.addr %s693, 6
          %s696 = sadd.s32 %s694, %s695
          %s697 = smul.addr %s696, 4
          %s698 = scalar_lea.vmem %s4, %s697
          // Predicated region
          $region57: #{eeg_transformer_forward.6} parent=55 // pred_check
            _
          $region58: #{eeg_transformer_forward.6} parent=55 // pred_check_branch
            %700 = sbr.rel (0) target = $region60
          $region59: #{eeg_transformer_forward.6} parent=55 // pred_region
            // Predicated region
            $region61: #{eeg_transformer_forward.6} parent=59 // pred_check
              _
            $region62: #{eeg_transformer_forward.6} parent=59 // pred_check_branch
              %702 = sbr.rel (0) target = $region64
            $region63: #{eeg_transformer_forward.6} parent=59 // pred_region
              // Predicated region
              $region76: #{eeg_transformer_forward.6} parent=63 // pred_check
                _
              $region77: #{eeg_transformer_forward.6} parent=63 // pred_check_branch
                %722 = sbr.rel (0) target = $region79
              $region78: #{eeg_transformer_forward.6} parent=63 // pred_region
                loop: start=0, step=1, limit=1
                $region80: #{eeg_transformer_forward.6} parent=78 // loop_pre_header
                  _
                $region81: #{eeg_transformer_forward.6} parent=78 // loop_header
                  %s724 = sphi 0, %s728
                  %p725 = scmp.ge.s32.totalorder %s724, 1
                  %s729 = sphi %s689, %s689
                  %s730 = sphi %s698, %s698
                $region82: #{eeg_transformer_forward.6} parent=78 // loop_header_branch
                  %727 = sbr.rel (%p725) target = $region86
                $region83: #{eeg_transformer_forward.6} parent=78 // loop_body
                  %v731 = vld [vmem:[%s729] sm:$0xff]
                  %732 = vst [vmem:[%s730] sm:$0xff] %v731
                  %v733 = vld [vmem:[%s729 + $0x8] sm:$0xff]
                  %734 = vst [vmem:[%s730 + $0x18] sm:$0xff] %v733
                  %v735 = vld [vmem:[%s729 + $0x10] sm:$0xff]
                  %736 = vst [vmem:[%s730 + $0x30] sm:$0xff] %v735
                $region84: #{eeg_transformer_forward.6} parent=78 // loop_footer
                  %s728 = sadd.s32 1, %s724
                $region85: #{eeg_transformer_forward.6} parent=78 // loop_footer_branch
                  %723 = sbr.rel target = $region81
                $region86: #{eeg_transformer_forward.6} parent=78 // loop_exit
                  _
              $region79: #{eeg_transformer_forward.6} parent=63 // pred_fallthru
                _
              // Predicated region
              $region87: #{eeg_transformer_forward.6} parent=63 // pred_check
                _
              $region88: #{eeg_transformer_forward.6} parent=63 // pred_check_branch
                %738 = sbr.rel target = $region90
              $region89: #{eeg_transformer_forward.6} parent=63 // pred_region
                _
              $region90: #{eeg_transformer_forward.6} parent=63 // pred_fallthru
                _
            $region64: #{eeg_transformer_forward.6} parent=59 // pred_fallthru
              _
            // Predicated region
            $region65: #{eeg_transformer_forward.6} parent=59 // pred_check
              _
            $region66: #{eeg_transformer_forward.6} parent=59 // pred_check_branch
              %704 = sbr.rel target = $region68
            $region67: #{eeg_transformer_forward.6} parent=59 // pred_region
              %s706 = ssub.s32 256, 1
              loop: start=0, step=1, limit=1
              $region69: #{eeg_transformer_forward.6} parent=67 // loop_pre_header
                _
              $region70: #{eeg_transformer_forward.6} parent=67 // loop_header
                %s708 = sphi 0, %s712
                %p709 = scmp.ge.s32.totalorder %s708, 1
                %s713 = sphi %s689, %s689
                %s714 = sphi %s698, %s698
              $region71: #{eeg_transformer_forward.6} parent=67 // loop_header_branch
                %711 = sbr.rel (%p709) target = $region75
              $region72: #{eeg_transformer_forward.6} parent=67 // loop_body
                %v715 = vld [vmem:[%s713] sm:%s706]
                %716 = vst [vmem:[%s714] sm:%s706] %v715
                %v717 = vld [vmem:[%s713 + $0x8] sm:%s706]
                %718 = vst [vmem:[%s714 + $0x18] sm:%s706] %v717
                %v719 = vld [vmem:[%s713 + $0x10] sm:%s706]
                %720 = vst [vmem:[%s714 + $0x30] sm:%s706] %v719
              $region73: #{eeg_transformer_forward.6} parent=67 // loop_footer
                %s712 = sadd.s32 1, %s708
              $region74: #{eeg_transformer_forward.6} parent=67 // loop_footer_branch
                %707 = sbr.rel target = $region70
              $region75: #{eeg_transformer_forward.6} parent=67 // loop_exit
                _
            $region68: #{eeg_transformer_forward.6} parent=59 // pred_fallthru
              _
          $region60: #{eeg_transformer_forward.6} parent=55 // pred_fallthru
            _
          %739 = vnop
        $region56: #{eeg_transformer_forward.6} parent=35 // pred_fallthru
          _
      $region36: #{eeg_transformer_forward.6} parent=5 // pred_fallthru
        _
      %p740 = scmp.le.s32.totalorder 2, %s12
      // Predicated region
      $region91: #{eeg_transformer_forward.6} parent=5 // pred_check
        %p741 = pneg %p740
      $region92: #{eeg_transformer_forward.6} parent=5 // pred_check_branch
        %743 = sbr.rel (%p741) target = $region94
      $region93: #{eeg_transformer_forward.6} parent=5 // pred_region
        %s744 = ssub.s32 %s12, 2
        // Predicated region
        $region95: #{eeg_transformer_forward.6} parent=93 // pred_check
          %p745 = pneg %p149
        $region96: #{eeg_transformer_forward.6} parent=93 // pred_check_branch
          %747 = sbr.rel (%p745) target = $region98
        $region97: #{eeg_transformer_forward.6} parent=93 // pred_region
          %s748 = sand.u32 %s134, 1
          %s749 = sand.u32 %s134, 1
          %s750 = smul.addr %s749, 24
          %s751 = scalar_lea.vmem [#allocation8], %s750
        $region98: #{eeg_transformer_forward.6} parent=93 // pred_fallthru
          _
      $region94: #{eeg_transformer_forward.6} parent=5 // pred_fallthru
        _
    $region6: #{eeg_transformer_forward.6} parent=1 // loop_footer
      %s16 = sadd.s32 1, %s12
    $region7: #{eeg_transformer_forward.6} parent=1 // loop_footer_branch
      %11 = sbr.rel target = $region3
    $region8: #{eeg_transformer_forward.6} parent=1 // loop_exit
      _
    %752 = vsyncpa [#allocation4], 1
    %s753 = scalar_lea.sflag [#allocation4], 1
    %754 = vsyncpa %s753, 1
    %755 = vsyncpa [#allocation6], 1

// kernel: eeg_transformer_forward.7
$region0: #{eeg_transformer_forward.7}
  #allocation0 [shape = 'u32[]', space=smem, size = 0x4, offset = 0x4, fixed_abs, tag = 'smem constant byte address 0x4 - core index']
  #allocation1 [shape = 'u32[144,128]{1,0:T(1,128)}', space=vmem, size = 0x12000, scoped, tag = 'internal scratch']
  %s0 = inlined_call_operand.vmem [shape: bf16[2,9,768], index: 0, kind: input, shape index: {}]
  %s1 = inlined_call_operand.vmem [shape: bf16[2,9,256], index: 1, kind: output, shape index: {}]
  %s2 = sld [smem:[#allocation0]]
  $region37: #{eeg_transformer_forward.7} parent=0
    _
  %s4 = ssub.s32 1, %s2
  %s5 = scalar_select 0, %s4, %s2
  loop: start=0, step=1, limit=4
  $region2: #{eeg_transformer_forward.7} parent=0 // loop_pre_header
    _
  $region3: #{eeg_transformer_forward.7} parent=0 // loop_header
    %s7 = sphi 0, %s11
    %p8 = scmp.ge.s32.totalorder %s7, 4
    %s17 = sphi 0, %s19
    %s20 = sphi 0, %s17
    %s21 = sphi 0, %s20
    %s37 = sphi 0, %s21
    %s43 = sphi 0, %s45
    %s46 = sphi 0, %s43
    %s47 = sphi 0, %s46
    %s63 = sphi 0, %s47
  $region4: #{eeg_transformer_forward.7} parent=0 // loop_header_branch
    %10 = sbr.rel (%p8) target = $region8
  $region5: #{eeg_transformer_forward.7} parent=0 // loop_body
    %s12 = ssub.s32 %s7, 1
    %s13 = ssub.s32 %s7, 2
    %s14 = sadd.s32 %s7, 1
    %s15 = ssub.s32 %s7, %s14
    %p16 = scmp.eq.s32.totalorder %s15, 0
    %s18 = sadd.s32 %s17, 1
    %s19 = scalar_select %p16, %s17, %s18
    %p22 = pneg %p16
    %p23 = scmp.eq.s32.totalorder %s7, 1
    %p24 = por %p22, %p23
    %p25 = scmp.ne.s32.totalorder %s17, %s20
    %p26 = scmp.eq.s32.totalorder %s7, 0
    %p27 = por %p25, %p26
    %p28 = scmp.ne.s32.totalorder %s17, %s20
    %p29 = scmp.eq.s32.totalorder %s12, 1
    %p30 = por %p28, %p29
    %p31 = scmp.ne.s32.totalorder %s20, %s21
    %p32 = scmp.eq.s32.totalorder %s12, 0
    %p33 = por %p31, %p32
    %p34 = scmp.ne.s32.totalorder %s20, %s21
    %p35 = scmp.eq.s32.totalorder %s13, 1
    %p36 = por %p34, %p35
    %p38 = scmp.ne.s32.totalorder %s21, %s37
    %p39 = scmp.eq.s32.totalorder %s13, 0
    %p40 = por %p38, %p39
    %s41 = ssub.s32 %s7, %s14
    %p42 = scmp.eq.s32.totalorder %s41, 0
    %s44 = sadd.s32 %s43, 1
    %s45 = scalar_select %p42, %s43, %s44
    %p48 = pneg %p42
    %p49 = scmp.eq.s32.totalorder %s7, 1
    %p50 = por %p48, %p49
    %p51 = scmp.ne.s32.totalorder %s43, %s46
    %p52 = scmp.eq.s32.totalorder %s7, 0
    %p53 = por %p51, %p52
    %p54 = scmp.ne.s32.totalorder %s43, %s46
    %p55 = scmp.eq.s32.totalorder %s12, 1
    %p56 = por %p54, %p55
    %p57 = scmp.ne.s32.totalorder %s46, %s47
    %p58 = scmp.eq.s32.totalorder %s12, 0
    %p59 = por %p57, %p58
    %p60 = scmp.ne.s32.totalorder %s46, %s47
    %p61 = scmp.eq.s32.totalorder %s13, 1
    %p62 = por %p60, %p61
    %p64 = scmp.ne.s32.totalorder %s47, %s63
    %p65 = scmp.eq.s32.totalorder %s13, 0
    %p66 = por %p64, %p65
    %p67 = scmp.le.s32.totalorder 1, %s7
    %p68 = scmp.lt.s32.totalorder %s7, 3
    %p69 = pnand %p67, %p68
    %p70 = pneg %p69
    // Predicated region
    $region9: #{eeg_transformer_forward.7} parent=5 // pred_check
      _
    $region10: #{eeg_transformer_forward.7} parent=5 // pred_check_branch
      %72 = sbr.rel (%p69) target = $region12
    $region11: #{eeg_transformer_forward.7} parent=5 // pred_region
      %s73 = ssub.s32 %s7, 1
    $region12: #{eeg_transformer_forward.7} parent=5 // pred_fallthru
      _
    %p74 = scmp.lt.s32.totalorder %s7, 2
    // Predicated region
    $region13: #{eeg_transformer_forward.7} parent=5 // pred_check
      %p75 = pneg %p74
    $region14: #{eeg_transformer_forward.7} parent=5 // pred_check_branch
      %77 = sbr.rel (%p75) target = $region16
    $region15: #{eeg_transformer_forward.7} parent=5 // pred_region
      // Predicated region
      $region17: #{eeg_transformer_forward.7} parent=15 // pred_check
        %p78 = pneg %p27
      $region18: #{eeg_transformer_forward.7} parent=15 // pred_check_branch
        %80 = sbr.rel (%p78) target = $region20
      $region19: #{eeg_transformer_forward.7} parent=15 // pred_region
        %p81 = scmp.lt.s32.totalorder %s7, 1
        %s82 = scalar_select %p81, %s7, 1
        %s83 = smul.addr %s82, 12
        %s84 = smul.addr %s83, 4
        %s85 = scalar_lea.vmem %s0, %s84
      $region20: #{eeg_transformer_forward.7} parent=15 // pred_fallthru
        _
    $region16: #{eeg_transformer_forward.7} parent=5 // pred_fallthru
      _
    %p86 = scmp.le.s32.totalorder 1, %s7
    %p87 = scmp.lt.s32.totalorder %s7, 3
    %p88 = pnand %p86, %p87
    %p89 = pneg %p88
    // Predicated region
    $region21: #{eeg_transformer_forward.7} parent=5 // pred_check
      _
    $region22: #{eeg_transformer_forward.7} parent=5 // pred_check_branch
      %91 = sbr.rel (%p88) target = $region24
    $region23: #{eeg_transformer_forward.7} parent=5 // pred_region
      %s92 = ssub.s32 %s7, 1
      %p93 = scmp.lt.s32.totalorder %s12, 1
      %s94 = scalar_select %p93, %s12, 1
      %s95 = smul.addr %s94, 12
      %s96 = smul.addr %s95, 4
      %s97 = scalar_lea.vmem %s0, %s96
      %p98 = pneg %p33
      %p99 = pneg %p30
      %p100 = pneg %p59
      %p101 = pneg %p56
      %p102 = scmp.lt.s32.totalorder %s12, 1
      %s103 = scalar_select %p102, %s12, 1
      %s104 = smul.addr %s103, 4
      %s105 = smul.addr %s104, 4
      %s106 = scalar_lea.vmem %s1, %s105
      %p107 = scmp.lt.s32.totalorder %s12, 1
      %s108 = scalar_select %p107, %s12, 1
      %s109 = smul.addr %s108, 12
      %s110 = smul.addr %s109, 4
      %s111 = scalar_lea.vmem %s0, %s110
      %p112 = scmp.lt.s32.totalorder %s12, 1
      %s113 = scalar_select %p112, %s12, 1
      %s114 = smul.addr %s113, 4
      %s115 = smul.addr %s114, 4
      %s116 = scalar_lea.vmem %s1, %s115
      %v118 = vld [vmem:[%s111] sm:$0xff]
      %v119 = vld [vmem:[%s111 + $0x8] sm:$0xff]
      %v120 = vld [vmem:[%s111 + $0x10] sm:$0xff]
      %v121 = vld [vmem:[%s111 + $0x18] sm:$0x11]
      %v122 = vld [vmem:[%s111 + $0x20] sm:$0x11]
      %v123 = vld [vmem:[%s111 + $0x28] sm:$0x11]
      %v124 = vunpack.c.l.bf16 %v118
      %v125 = vunpack.c.l.bf16 %v121
      %v126 = vmul.f32 %v124, 0.17677669
      %v127 = vmul.f32 %v125, 0.17677669
      %v128 = vpack.c.bf16 %v127, %v126
      %v131 = vunpack.c.l.b16 %v119
      %v132 = vunpack.c.l.b16 %v122
      %v133 = vpack.c.b16 %v132, %v131
      %vm134 = vcmask 261120
      %v136 = vsel %vm134, %v128, 0
      %v139 = vsel %vm134, %v133, 0
      %141 = vmatprep.subr.bf16.mxu0 0
      %142 = vmatpush1.bf16.xpose.msra.mxu0 0
      %143 = vmatprep.subr.bf16.mxu0 0
      %144 = vmatpush1.bf16.xpose.msra.mxu0 0
      %145 = vmatprep.subr.bf16.mxu0 0
      %146 = vmatpush1.bf16.xpose.msra.mxu0 0
      %147 = vmatprep.subr.bf16.mxu0 0
      %148 = vmatpush1.bf16.xpose.msra.mxu0 0
      %149 = vmatprep.subr.bf16.mxu0 0
      %150 = vmatpush1.bf16.xpose.msra.mxu0 0
      %151 = vmatprep.subr.bf16.mxu0 0
      %152 = vmatpush1.bf16.xpose.msra.mxu0 0
      %153 = vmatprep.subr.bf16.mxu0 0
      %154 = vmatpush1.bf16.xpose.msra.mxu0 0
      %155 = vmatprep.subr.bf16.mxu0 0
      %156 = vmatpush1.bf16.xpose.msra.mxu0 %v139
      %157 = vmatprep.subr.bf16.mxu0 0
      %158 = vmatpush2.bf16.xpose.msra.mxu0 0
      %159 = vmatprep.subr.bf16.mxu0 0
      %160 = vmatpush2.bf16.xpose.msra.mxu0 0
      %161 = vmatprep.subr.bf16.mxu0 0
      %162 = vmatpush2.bf16.xpose.msra.mxu0 0
      %163 = vmatprep.subr.bf16.mxu0 0
      %164 = vmatpush2.bf16.xpose.msra.mxu0 0
      %165 = vmatprep.subr.bf16.mxu0 0
      %166 = vmatpush2.bf16.xpose.msra.mxu0 0
      %167 = vmatprep.subr.bf16.mxu0 0
      %168 = vmatpush2.bf16.xpose.msra.mxu0 0
      %169 = vmatprep.subr.bf16.mxu0 0
      %170 = vmatpush2.bf16.xpose.msra.mxu0 0
      %171 = vmatprep.subr.bf16.mxu0 0
      %172 = vmatpush2.bf16.xpose.msra.mxu0 0
      %173 = vmatprep.mubr.bf16.mxu0 0
      %174 = vmatmul.mubr.bf16.gmra.mxu0 %v136
      %v175 = vpop.f32.mrf.mxu0
      %v176 = vadd.f32 0.0, %v175
      %v177 = vpop.f32.mrf.mxu0
      %v178 = vpop.f32.mrf.mxu0
      %v179 = vadd.f32 0.0, %v178
      %v180 = vpop.f32.mrf.mxu0
      %181 = vdwg.mxu0
      %vm182 = vcmask 72704
      %v183 = vsel %vm182, %v176, -inf
      %184 = vmax.xlane.f32.xlu0 %v183
      %v185 = vpop.xlane.xlu0 %184
      %vm186 = vcmask 65536
      %v187 = vsel %vm186, %v179, -inf
      %188 = vmax.xlane.f32.xlu0 %v187
      %v189 = vpop.xlane.xlu0 %188
      %v190 = vsub.f32 %v176, %v185
      %v191 = vsub.f32 %v179, %v189
      %v192 = vmul.f32 %v190, 1.442695
      %v193 = vpow.pop %v192
      %v194 = vmul.f32 %v191, 1.442695
      %v195 = vpow.pop %v194
      %v196 = vsel %vm182, %v193, 0.0
      %197 = vadd.xlane.f32.xlu0 %v196
      %v198 = vpop.xlane.xlu0 %197
      %v199 = vsel %vm186, %v195, 0.0
      %200 = vadd.xlane.f32.xlu0 %v199
      %v201 = vpop.xlane.xlu0 %200
      %v202 = vrcp.pop %v198
      %v203 = vrcp.pop %v201
      %v204 = vmul.f32 %v193, %v202
      %v205 = vmul.f32 %v195, %v203
      %v206 = vpack.c.bf16 %v205, %v204
      %v209 = vunpack.c.l.b16 %v120
      %v210 = vunpack.c.l.b16 %v123
      %v211 = vpack.c.b16 %v210, %v209
      %v213 = vsel %vm182, %v206, 0
      %vm215 = vcmask 1043456
      %vm216 = vcmask 1044480
      %v217 = vsel %vm215, 4294967295, 65535
      %v218 = vsel %vm216, %v217, 0
      %v220 = vand.u32 %v211, %v218
      %222 = vmatprep.subr.bf16.mxu0 0
      %223 = vmatpush1.bf16.msra.mxu0 0
      %224 = vmatprep.subr.bf16.mxu0 0
      %225 = vmatpush1.bf16.msra.mxu0 0
      %226 = vmatprep.subr.bf16.mxu0 0
      %227 = vmatpush1.bf16.msra.mxu0 0
      %228 = vmatprep.subr.bf16.mxu0 0
      %229 = vmatpush1.bf16.msra.mxu0 0
      %230 = vmatprep.subr.bf16.mxu0 0
      %231 = vmatpush1.bf16.msra.mxu0 0
      %232 = vmatprep.subr.bf16.mxu0 0
      %233 = vmatpush1.bf16.msra.mxu0 0
      %234 = vmatprep.subr.bf16.mxu0 0
      %235 = vmatpush1.bf16.msra.mxu0 0
      %236 = vmatprep.subr.bf16.mxu0 0
      %237 = vmatpush1.bf16.msra.mxu0 %v220
      %238 = vmatprep.subr.bf16.mxu0 0
      %239 = vmatpush2.bf16.msra.mxu0 0
      %240 = vmatprep.subr.bf16.mxu0 0
      %241 = vmatpush2.bf16.msra.mxu0 0
      %242 = vmatprep.subr.bf16.mxu0 0
      %243 = vmatpush2.bf16.msra.mxu0 0
      %244 = vmatprep.subr.bf16.mxu0 0
      %245 = vmatpush2.bf16.msra.mxu0 0
      %246 = vmatprep.subr.bf16.mxu0 0
      %247 = vmatpush2.bf16.msra.mxu0 0
      %248 = vmatprep.subr.bf16.mxu0 0
      %249 = vmatpush2.bf16.msra.mxu0 0
      %250 = vmatprep.subr.bf16.mxu0 0
      %251 = vmatpush2.bf16.msra.mxu0 0
      %252 = vmatprep.subr.bf16.mxu0 0
      %253 = vmatpush2.bf16.msra.mxu0 0
      %254 = vmatprep.mubr.bf16.mxu0 0
      %255 = vmatmul.mubr.bf16.gmra.mxu0 %v213
      %v256 = vpop.f32.mrf.mxu0
      %v257 = vadd.f32 0.0, %v256
      %v258 = vpop.f32.mrf.mxu0
      %v259 = vpop.f32.mrf.mxu0
      %v260 = vadd.f32 0.0, %v259
      %v261 = vpop.f32.mrf.mxu0
      %262 = vdwg.mxu0
      %264 = vrot.lane.b32.xlu0 %v128, 96
      %v265 = vpop.permute.xlu0 %264
      %266 = vrot.lane.b32.xlu0 %v133, 96
      %v267 = vpop.permute.xlu0 %266
      %v269 = vsel %vm134, %v265, 0
      %v272 = vsel %vm134, %v267, 0
      %274 = vmatprep.subr.bf16.mxu0 0
      %275 = vmatpush1.bf16.xpose.msra.mxu0 0
      %276 = vmatprep.subr.bf16.mxu0 0
      %277 = vmatpush1.bf16.xpose.msra.mxu0 0
      %278 = vmatprep.subr.bf16.mxu0 0
      %279 = vmatpush1.bf16.xpose.msra.mxu0 0
      %280 = vmatprep.subr.bf16.mxu0 0
      %281 = vmatpush1.bf16.xpose.msra.mxu0 0
      %282 = vmatprep.subr.bf16.mxu0 0
      %283 = vmatpush1.bf16.xpose.msra.mxu0 0
      %284 = vmatprep.subr.bf16.mxu0 0
      %285 = vmatpush1.bf16.xpose.msra.mxu0 0
      %286 = vmatprep.subr.bf16.mxu0 0
      %287 = vmatpush1.bf16.xpose.msra.mxu0 0
      %288 = vmatprep.subr.bf16.mxu0 0
      %289 = vmatpush1.bf16.xpose.msra.mxu0 %v272
      %290 = vmatprep.subr.bf16.mxu0 0
      %291 = vmatpush2.bf16.xpose.msra.mxu0 0
      %292 = vmatprep.subr.bf16.mxu0 0
      %293 = vmatpush2.bf16.xpose.msra.mxu0 0
      %294 = vmatprep.subr.bf16.mxu0 0
      %295 = vmatpush2.bf16.xpose.msra.mxu0 0
      %296 = vmatprep.subr.bf16.mxu0 0
      %297 = vmatpush2.bf16.xpose.msra.mxu0 0
      %298 = vmatprep.subr.bf16.mxu0 0
      %299 = vmatpush2.bf16.xpose.msra.mxu0 0
      %300 = vmatprep.subr.bf16.mxu0 0
      %301 = vmatpush2.bf16.xpose.msra.mxu0 0
      %302 = vmatprep.subr.bf16.mxu0 0
      %303 = vmatpush2.bf16.xpose.msra.mxu0 0
      %304 = vmatprep.subr.bf16.mxu0 0
      %305 = vmatpush2.bf16.xpose.msra.mxu0 0
      %306 = vmatprep.mubr.bf16.mxu0 0
      %307 = vmatmul.mubr.bf16.gmra.mxu0 %v269
      %v308 = vpop.f32.mrf.mxu0
      %v309 = vadd.f32 0.0, %v308
      %v310 = vpop.f32.mrf.mxu0
      %v311 = vpop.f32.mrf.mxu0
      %v312 = vadd.f32 0.0, %v311
      %v313 = vpop.f32.mrf.mxu0
      %314 = vdwg.mxu0
      %v315 = vsel %vm182, %v309, -inf
      %316 = vmax.xlane.f32.xlu0 %v315
      %v317 = vpop.xlane.xlu0 %316
      %v318 = vsel %vm186, %v312, -inf
      %319 = vmax.xlane.f32.xlu0 %v318
      %v320 = vpop.xlane.xlu0 %319
      %v321 = vsub.f32 %v309, %v317
      %v322 = vsub.f32 %v312, %v320
      %v323 = vmul.f32 %v321, 1.442695
      %v324 = vpow.pop %v323
      %v325 = vmul.f32 %v322, 1.442695
      %v326 = vpow.pop %v325
      %v327 = vsel %vm182, %v324, 0.0
      %328 = vadd.xlane.f32.xlu0 %v327
      %v329 = vpop.xlane.xlu0 %328
      %v330 = vsel %vm186, %v326, 0.0
      %331 = vadd.xlane.f32.xlu0 %v330
      %v332 = vpop.xlane.xlu0 %331
      %v333 = vrcp.pop %v329
      %v334 = vrcp.pop %v332
      %v335 = vmul.f32 %v324, %v333
      %v336 = vmul.f32 %v326, %v334
      %v337 = vpack.c.bf16 %v336, %v335
      %338 = vrot.lane.b32.xlu0 %v211, 96
      %v339 = vpop.permute.xlu0 %338
      %v341 = vsel %vm182, %v337, 0
      %v344 = vand.u32 %v339, %v218
      %346 = vmatprep.subr.bf16.mxu0 0
      %347 = vmatpush1.bf16.msra.mxu0 0
      %348 = vmatprep.subr.bf16.mxu0 0
      %349 = vmatpush1.bf16.msra.mxu0 0
      %350 = vmatprep.subr.bf16.mxu0 0
      %351 = vmatpush1.bf16.msra.mxu0 0
      %352 = vmatprep.subr.bf16.mxu0 0
      %353 = vmatpush1.bf16.msra.mxu0 0
      %354 = vmatprep.subr.bf16.mxu0 0
      %355 = vmatpush1.bf16.msra.mxu0 0
      %356 = vmatprep.subr.bf16.mxu0 0
      %357 = vmatpush1.bf16.msra.mxu0 0
      %358 = vmatprep.subr.bf16.mxu0 0
      %359 = vmatpush1.bf16.msra.mxu0 0
      %360 = vmatprep.subr.bf16.mxu0 0
      %361 = vmatpush1.bf16.msra.mxu0 %v344
      %362 = vmatprep.subr.bf16.mxu0 0
      %363 = vmatpush2.bf16.msra.mxu0 0
      %364 = vmatprep.subr.bf16.mxu0 0
      %365 = vmatpush2.bf16.msra.mxu0 0
      %366 = vmatprep.subr.bf16.mxu0 0
      %367 = vmatpush2.bf16.msra.mxu0 0
      %368 = vmatprep.subr.bf16.mxu0 0
      %369 = vmatpush2.bf16.msra.mxu0 0
      %370 = vmatprep.subr.bf16.mxu0 0
      %371 = vmatpush2.bf16.msra.mxu0 0
      %372 = vmatprep.subr.bf16.mxu0 0
      %373 = vmatpush2.bf16.msra.mxu0 0
      %374 = vmatprep.subr.bf16.mxu0 0
      %375 = vmatpush2.bf16.msra.mxu0 0
      %376 = vmatprep.subr.bf16.mxu0 0
      %377 = vmatpush2.bf16.msra.mxu0 0
      %378 = vmatprep.mubr.bf16.mxu0 0
      %379 = vmatmul.mubr.bf16.gmra.mxu0 %v341
      %v380 = vpop.f32.mrf.mxu0
      %v381 = vadd.f32 0.0, %v380
      %v382 = vpop.f32.mrf.mxu0
      %v383 = vpop.f32.mrf.mxu0
      %v384 = vadd.f32 0.0, %v383
      %v385 = vpop.f32.mrf.mxu0
      %386 = vdwg.mxu0
      %387 = vrot.lane.b32.xlu0 %v128, 64
      %v388 = vpop.permute.xlu0 %387
      %389 = vrot.lane.b32.xlu0 %v133, 64
      %v390 = vpop.permute.xlu0 %389
      %v392 = vsel %vm134, %v388, 0
      %v395 = vsel %vm134, %v390, 0
      %397 = vmatprep.subr.bf16.mxu0 0
      %398 = vmatpush1.bf16.xpose.msra.mxu0 0
      %399 = vmatprep.subr.bf16.mxu0 0
      %400 = vmatpush1.bf16.xpose.msra.mxu0 0
      %401 = vmatprep.subr.bf16.mxu0 0
      %402 = vmatpush1.bf16.xpose.msra.mxu0 0
      %403 = vmatprep.subr.bf16.mxu0 0
      %404 = vmatpush1.bf16.xpose.msra.mxu0 0
      %405 = vmatprep.subr.bf16.mxu0 0
      %406 = vmatpush1.bf16.xpose.msra.mxu0 0
      %407 = vmatprep.subr.bf16.mxu0 0
      %408 = vmatpush1.bf16.xpose.msra.mxu0 0
      %409 = vmatprep.subr.bf16.mxu0 0
      %410 = vmatpush1.bf16.xpose.msra.mxu0 0
      %411 = vmatprep.subr.bf16.mxu0 0
      %412 = vmatpush1.bf16.xpose.msra.mxu0 %v395
      %413 = vmatprep.subr.bf16.mxu0 0
      %414 = vmatpush2.bf16.xpose.msra.mxu0 0
      %415 = vmatprep.subr.bf16.mxu0 0
      %416 = vmatpush2.bf16.xpose.msra.mxu0 0
      %417 = vmatprep.subr.bf16.mxu0 0
      %418 = vmatpush2.bf16.xpose.msra.mxu0 0
      %419 = vmatprep.subr.bf16.mxu0 0
      %420 = vmatpush2.bf16.xpose.msra.mxu0 0
      %421 = vmatprep.subr.bf16.mxu0 0
      %422 = vmatpush2.bf16.xpose.msra.mxu0 0
      %423 = vmatprep.subr.bf16.mxu0 0
      %424 = vmatpush2.bf16.xpose.msra.mxu0 0
      %425 = vmatprep.subr.bf16.mxu0 0
      %426 = vmatpush2.bf16.xpose.msra.mxu0 0
      %427 = vmatprep.subr.bf16.mxu0 0
      %428 = vmatpush2.bf16.xpose.msra.mxu0 0
      %429 = vmatprep.mubr.bf16.mxu0 0
      %430 = vmatmul.mubr.bf16.gmra.mxu0 %v392
      %v431 = vpop.f32.mrf.mxu0
      %v432 = vadd.f32 0.0, %v431
      %v433 = vpop.f32.mrf.mxu0
      %v434 = vpop.f32.mrf.mxu0
      %v435 = vadd.f32 0.0, %v434
      %v436 = vpop.f32.mrf.mxu0
      %437 = vdwg.mxu0
      %v438 = vsel %vm182, %v432, -inf
      %439 = vmax.xlane.f32.xlu0 %v438
      %v440 = vpop.xlane.xlu0 %439
      %v441 = vsel %vm186, %v435, -inf
      %442 = vmax.xlane.f32.xlu0 %v441
      %v443 = vpop.xlane.xlu0 %442
      %v444 = vsub.f32 %v432, %v440
      %v445 = vsub.f32 %v435, %v443
      %v446 = vmul.f32 %v444, 1.442695
      %v447 = vpow.pop %v446
      %v448 = vmul.f32 %v445, 1.442695
      %v449 = vpow.pop %v448
      %v450 = vsel %vm182, %v447, 0.0
      %451 = vadd.xlane.f32.xlu0 %v450
      %v452 = vpop.xlane.xlu0 %451
      %v453 = vsel %vm186, %v449, 0.0
      %454 = vadd.xlane.f32.xlu0 %v453
      %v455 = vpop.xlane.xlu0 %454
      %v456 = vrcp.pop %v452
      %v457 = vrcp.pop %v455
      %v458 = vmul.f32 %v447, %v456
      %v459 = vmul.f32 %v449, %v457
      %v460 = vpack.c.bf16 %v459, %v458
      %461 = vrot.lane.b32.xlu0 %v211, 64
      %v462 = vpop.permute.xlu0 %461
      %v464 = vsel %vm182, %v460, 0
      %v467 = vand.u32 %v462, %v218
      %469 = vmatprep.subr.bf16.mxu0 0
      %470 = vmatpush1.bf16.msra.mxu0 0
      %471 = vmatprep.subr.bf16.mxu0 0
      %472 = vmatpush1.bf16.msra.mxu0 0
      %473 = vmatprep.subr.bf16.mxu0 0
      %474 = vmatpush1.bf16.msra.mxu0 0
      %475 = vmatprep.subr.bf16.mxu0 0
      %476 = vmatpush1.bf16.msra.mxu0 0
      %477 = vmatprep.subr.bf16.mxu0 0
      %478 = vmatpush1.bf16.msra.mxu0 0
      %479 = vmatprep.subr.bf16.mxu0 0
      %480 = vmatpush1.bf16.msra.mxu0 0
      %481 = vmatprep.subr.bf16.mxu0 0
      %482 = vmatpush1.bf16.msra.mxu0 0
      %483 = vmatprep.subr.bf16.mxu0 0
      %484 = vmatpush1.bf16.msra.mxu0 %v467
      %485 = vmatprep.subr.bf16.mxu0 0
      %486 = vmatpush2.bf16.msra.mxu0 0
      %487 = vmatprep.subr.bf16.mxu0 0
      %488 = vmatpush2.bf16.msra.mxu0 0
      %489 = vmatprep.subr.bf16.mxu0 0
      %490 = vmatpush2.bf16.msra.mxu0 0
      %491 = vmatprep.subr.bf16.mxu0 0
      %492 = vmatpush2.bf16.msra.mxu0 0
      %493 = vmatprep.subr.bf16.mxu0 0
      %494 = vmatpush2.bf16.msra.mxu0 0
      %495 = vmatprep.subr.bf16.mxu0 0
      %496 = vmatpush2.bf16.msra.mxu0 0
      %497 = vmatprep.subr.bf16.mxu0 0
      %498 = vmatpush2.bf16.msra.mxu0 0
      %499 = vmatprep.subr.bf16.mxu0 0
      %500 = vmatpush2.bf16.msra.mxu0 0
      %501 = vmatprep.mubr.bf16.mxu0 0
      %502 = vmatmul.mubr.bf16.gmra.mxu0 %v464
      %v503 = vpop.f32.mrf.mxu0
      %v504 = vadd.f32 0.0, %v503
      %v505 = vpop.f32.mrf.mxu0
      %v506 = vpop.f32.mrf.mxu0
      %v507 = vadd.f32 0.0, %v506
      %v508 = vpop.f32.mrf.mxu0
      %509 = vdwg.mxu0
      %510 = vrot.lane.b32.xlu0 %v128, 32
      %v511 = vpop.permute.xlu0 %510
      %512 = vrot.lane.b32.xlu0 %v133, 32
      %v513 = vpop.permute.xlu0 %512
      %v515 = vsel %vm134, %v511, 0
      %v518 = vsel %vm134, %v513, 0
      %520 = vmatprep.subr.bf16.mxu0 0
      %521 = vmatpush1.bf16.xpose.msra.mxu0 0
      %522 = vmatprep.subr.bf16.mxu0 0
      %523 = vmatpush1.bf16.xpose.msra.mxu0 0
      %524 = vmatprep.subr.bf16.mxu0 0
      %525 = vmatpush1.bf16.xpose.msra.mxu0 0
      %526 = vmatprep.subr.bf16.mxu0 0
      %527 = vmatpush1.bf16.xpose.msra.mxu0 0
      %528 = vmatprep.subr.bf16.mxu0 0
      %529 = vmatpush1.bf16.xpose.msra.mxu0 0
      %530 = vmatprep.subr.bf16.mxu0 0
      %531 = vmatpush1.bf16.xpose.msra.mxu0 0
      %532 = vmatprep.subr.bf16.mxu0 0
      %533 = vmatpush1.bf16.xpose.msra.mxu0 0
      %534 = vmatprep.subr.bf16.mxu0 0
      %535 = vmatpush1.bf16.xpose.msra.mxu0 %v518
      %536 = vmatprep.subr.bf16.mxu0 0
      %537 = vmatpush2.bf16.xpose.msra.mxu0 0
      %538 = vmatprep.subr.bf16.mxu0 0
      %539 = vmatpush2.bf16.xpose.msra.mxu0 0
      %540 = vmatprep.subr.bf16.mxu0 0
      %541 = vmatpush2.bf16.xpose.msra.mxu0 0
      %542 = vmatprep.subr.bf16.mxu0 0
      %543 = vmatpush2.bf16.xpose.msra.mxu0 0
      %544 = vmatprep.subr.bf16.mxu0 0
      %545 = vmatpush2.bf16.xpose.msra.mxu0 0
      %546 = vmatprep.subr.bf16.mxu0 0
      %547 = vmatpush2.bf16.xpose.msra.mxu0 0
      %548 = vmatprep.subr.bf16.mxu0 0
      %549 = vmatpush2.bf16.xpose.msra.mxu0 0
      %550 = vmatprep.subr.bf16.mxu0 0
      %551 = vmatpush2.bf16.xpose.msra.mxu0 0
      %552 = vmatprep.mubr.bf16.mxu0 0
      %553 = vmatmul.mubr.bf16.gmra.mxu0 %v515
      %v554 = vpop.f32.mrf.mxu0
      %v555 = vadd.f32 0.0, %v554
      %v556 = vpop.f32.mrf.mxu0
      %v557 = vpop.f32.mrf.mxu0
      %v558 = vadd.f32 0.0, %v557
      %v559 = vpop.f32.mrf.mxu0
      %560 = vdwg.mxu0
      %v561 = vsel %vm182, %v555, -inf
      %562 = vmax.xlane.f32.xlu0 %v561
      %v563 = vpop.xlane.xlu0 %562
      %v564 = vsel %vm186, %v558, -inf
      %565 = vmax.xlane.f32.xlu0 %v564
      %v566 = vpop.xlane.xlu0 %565
      %v567 = vsub.f32 %v555, %v563
      %v568 = vsub.f32 %v558, %v566
      %v569 = vmul.f32 %v567, 1.442695
      %v570 = vpow.pop %v569
      %v571 = vmul.f32 %v568, 1.442695
      %v572 = vpow.pop %v571
      %v573 = vsel %vm182, %v570, 0.0
      %574 = vadd.xlane.f32.xlu0 %v573
      %v575 = vpop.xlane.xlu0 %574
      %v576 = vsel %vm186, %v572, 0.0
      %577 = vadd.xlane.f32.xlu0 %v576
      %v578 = vpop.xlane.xlu0 %577
      %v579 = vrcp.pop %v575
      %v580 = vrcp.pop %v578
      %v581 = vmul.f32 %v570, %v579
      %v582 = vmul.f32 %v572, %v580
      %v583 = vpack.c.bf16 %v582, %v581
      %584 = vrot.lane.b32.xlu0 %v211, 32
      %v585 = vpop.permute.xlu0 %584
      %v587 = vsel %vm182, %v583, 0
      %v590 = vand.u32 %v585, %v218
      %592 = vmatprep.subr.bf16.mxu0 0
      %593 = vmatpush1.bf16.msra.mxu0 0
      %594 = vmatprep.subr.bf16.mxu0 0
      %595 = vmatpush1.bf16.msra.mxu0 0
      %596 = vmatprep.subr.bf16.mxu0 0
      %597 = vmatpush1.bf16.msra.mxu0 0
      %598 = vmatprep.subr.bf16.mxu0 0
      %599 = vmatpush1.bf16.msra.mxu0 0
      %600 = vmatprep.subr.bf16.mxu0 0
      %601 = vmatpush1.bf16.msra.mxu0 0
      %602 = vmatprep.subr.bf16.mxu0 0
      %603 = vmatpush1.bf16.msra.mxu0 0
      %604 = vmatprep.subr.bf16.mxu0 0
      %605 = vmatpush1.bf16.msra.mxu0 0
      %606 = vmatprep.subr.bf16.mxu0 0
      %607 = vmatpush1.bf16.msra.mxu0 %v590
      %608 = vmatprep.subr.bf16.mxu0 0
      %609 = vmatpush2.bf16.msra.mxu0 0
      %610 = vmatprep.subr.bf16.mxu0 0
      %611 = vmatpush2.bf16.msra.mxu0 0
      %612 = vmatprep.subr.bf16.mxu0 0
      %613 = vmatpush2.bf16.msra.mxu0 0
      %614 = vmatprep.subr.bf16.mxu0 0
      %615 = vmatpush2.bf16.msra.mxu0 0
      %616 = vmatprep.subr.bf16.mxu0 0
      %617 = vmatpush2.bf16.msra.mxu0 0
      %618 = vmatprep.subr.bf16.mxu0 0
      %619 = vmatpush2.bf16.msra.mxu0 0
      %620 = vmatprep.subr.bf16.mxu0 0
      %621 = vmatpush2.bf16.msra.mxu0 0
      %622 = vmatprep.subr.bf16.mxu0 0
      %623 = vmatpush2.bf16.msra.mxu0 0
      %624 = vmatprep.mubr.bf16.mxu0 0
      %625 = vmatmul.mubr.bf16.gmra.mxu0 %v587
      %v626 = vpop.f32.mrf.mxu0
      %v627 = vadd.f32 0.0, %v626
      %v628 = vpop.f32.mrf.mxu0
      %v629 = vpop.f32.mrf.mxu0
      %v630 = vadd.f32 0.0, %v629
      %v631 = vpop.f32.mrf.mxu0
      %632 = vdwg.mxu0
      %v635 = vrot.slane %v118, 4
      %v636 = vrot.slane %v121, 4
      %v639 = vunpack.c.l.bf16 %v635
      %v640 = vunpack.c.l.bf16 %v636
      %v641 = vmul.f32 %v639, 0.17677669
      %v642 = vmul.f32 %v640, 0.17677669
      %v643 = vpack.c.bf16 %v642, %v641
      %v644 = vunpack.c.h.b16 %v119
      %v645 = vunpack.c.h.b16 %v122
      %v646 = vpack.c.b16 %v645, %v644
      %v648 = vsel %vm134, %v643, 0
      %v651 = vsel %vm134, %v646, 0
      %653 = vmatprep.subr.bf16.mxu0 0
      %654 = vmatpush1.bf16.xpose.msra.mxu0 0
      %655 = vmatprep.subr.bf16.mxu0 0
      %656 = vmatpush1.bf16.xpose.msra.mxu0 0
      %657 = vmatprep.subr.bf16.mxu0 0
      %658 = vmatpush1.bf16.xpose.msra.mxu0 0
      %659 = vmatprep.subr.bf16.mxu0 0
      %660 = vmatpush1.bf16.xpose.msra.mxu0 0
      %661 = vmatprep.subr.bf16.mxu0 0
      %662 = vmatpush1.bf16.xpose.msra.mxu0 0
      %663 = vmatprep.subr.bf16.mxu0 0
      %664 = vmatpush1.bf16.xpose.msra.mxu0 0
      %665 = vmatprep.subr.bf16.mxu0 0
      %666 = vmatpush1.bf16.xpose.msra.mxu0 0
      %667 = vmatprep.subr.bf16.mxu0 0
      %668 = vmatpush1.bf16.xpose.msra.mxu0 %v651
      %669 = vmatprep.subr.bf16.mxu0 0
      %670 = vmatpush2.bf16.xpose.msra.mxu0 0
      %671 = vmatprep.subr.bf16.mxu0 0
      %672 = vmatpush2.bf16.xpose.msra.mxu0 0
      %673 = vmatprep.subr.bf16.mxu0 0
      %674 = vmatpush2.bf16.xpose.msra.mxu0 0
      %675 = vmatprep.subr.bf16.mxu0 0
      %676 = vmatpush2.bf16.xpose.msra.mxu0 0
      %677 = vmatprep.subr.bf16.mxu0 0
      %678 = vmatpush2.bf16.xpose.msra.mxu0 0
      %679 = vmatprep.subr.bf16.mxu0 0
      %680 = vmatpush2.bf16.xpose.msra.mxu0 0
      %681 = vmatprep.subr.bf16.mxu0 0
      %682 = vmatpush2.bf16.xpose.msra.mxu0 0
      %683 = vmatprep.subr.bf16.mxu0 0
      %684 = vmatpush2.bf16.xpose.msra.mxu0 0
      %685 = vmatprep.mubr.bf16.mxu0 0
      %686 = vmatmul.mubr.bf16.gmra.mxu0 %v648
      %v687 = vpop.f32.mrf.mxu0
      %v688 = vadd.f32 0.0, %v687
      %v689 = vpop.f32.mrf.mxu0
      %v690 = vpop.f32.mrf.mxu0
      %v691 = vadd.f32 0.0, %v690
      %v692 = vpop.f32.mrf.mxu0
      %693 = vdwg.mxu0
      %v694 = vsel %vm182, %v688, -inf
      %695 = vmax.xlane.f32.xlu0 %v694
      %v696 = vpop.xlane.xlu0 %695
      %v697 = vsel %vm186, %v691, -inf
      %698 = vmax.xlane.f32.xlu0 %v697
      %v699 = vpop.xlane.xlu0 %698
      %v700 = vsub.f32 %v688, %v696
      %v701 = vsub.f32 %v691, %v699
      %v702 = vmul.f32 %v700, 1.442695
      %v703 = vpow.pop %v702
      %v704 = vmul.f32 %v701, 1.442695
      %v705 = vpow.pop %v704
      %v706 = vsel %vm182, %v703, 0.0
      %707 = vadd.xlane.f32.xlu0 %v706
      %v708 = vpop.xlane.xlu0 %707
      %v709 = vsel %vm186, %v705, 0.0
      %710 = vadd.xlane.f32.xlu0 %v709
      %v711 = vpop.xlane.xlu0 %710
      %v712 = vrcp.pop %v708
      %v713 = vrcp.pop %v711
      %v714 = vmul.f32 %v703, %v712
      %v715 = vmul.f32 %v705, %v713
      %v716 = vpack.c.bf16 %v715, %v714
      %v717 = vunpack.c.h.b16 %v120
      %v718 = vunpack.c.h.b16 %v123
      %v719 = vpack.c.b16 %v718, %v717
      %v721 = vsel %vm182, %v716, 0
      %v724 = vand.u32 %v719, %v218
      %726 = vmatprep.subr.bf16.mxu0 0
      %727 = vmatpush1.bf16.msra.mxu0 0
      %728 = vmatprep.subr.bf16.mxu0 0
      %729 = vmatpush1.bf16.msra.mxu0 0
      %730 = vmatprep.subr.bf16.mxu0 0
      %731 = vmatpush1.bf16.msra.mxu0 0
      %732 = vmatprep.subr.bf16.mxu0 0
      %733 = vmatpush1.bf16.msra.mxu0 0
      %734 = vmatprep.subr.bf16.mxu0 0
      %735 = vmatpush1.bf16.msra.mxu0 0
      %736 = vmatprep.subr.bf16.mxu0 0
      %737 = vmatpush1.bf16.msra.mxu0 0
      %738 = vmatprep.subr.bf16.mxu0 0
      %739 = vmatpush1.bf16.msra.mxu0 0
      %740 = vmatprep.subr.bf16.mxu0 0
      %741 = vmatpush1.bf16.msra.mxu0 %v724
      %742 = vmatprep.subr.bf16.mxu0 0
      %743 = vmatpush2.bf16.msra.mxu0 0
      %744 = vmatprep.subr.bf16.mxu0 0
      %745 = vmatpush2.bf16.msra.mxu0 0
      %746 = vmatprep.subr.bf16.mxu0 0
      %747 = vmatpush2.bf16.msra.mxu0 0
      %748 = vmatprep.subr.bf16.mxu0 0
      %749 = vmatpush2.bf16.msra.mxu0 0
      %750 = vmatprep.subr.bf16.mxu0 0
      %751 = vmatpush2.bf16.msra.mxu0 0
      %752 = vmatprep.subr.bf16.mxu0 0
      %753 = vmatpush2.bf16.msra.mxu0 0
      %754 = vmatprep.subr.bf16.mxu0 0
      %755 = vmatpush2.bf16.msra.mxu0 0
      %756 = vmatprep.subr.bf16.mxu0 0
      %757 = vmatpush2.bf16.msra.mxu0 0
      %758 = vmatprep.mubr.bf16.mxu0 0
      %759 = vmatmul.mubr.bf16.gmra.mxu0 %v721
      %v760 = vpop.f32.mrf.mxu0
      %v761 = vadd.f32 0.0, %v760
      %v762 = vpop.f32.mrf.mxu0
      %v763 = vpop.f32.mrf.mxu0
      %v764 = vadd.f32 0.0, %v763
      %v765 = vpop.f32.mrf.mxu0
      %766 = vdwg.mxu0
      %767 = vrot.lane.b32.xlu0 %v118, 96
      %v768 = vpop.permute.xlu0 %767
      %769 = vrot.lane.b32.xlu0 %v121, 96
      %v770 = vpop.permute.xlu0 %769
      %v771 = vrot.slane %v768, 4
      %v772 = vrot.slane %v770, 4
      %v775 = vunpack.c.l.bf16 %v771
      %v776 = vunpack.c.l.bf16 %v772
      %v777 = vmul.f32 %v775, 0.17677669
      %v778 = vmul.f32 %v776, 0.17677669
      %v779 = vpack.c.bf16 %v778, %v777
      %780 = vrot.lane.b32.xlu0 %v646, 96
      %v781 = vpop.permute.xlu0 %780
      %v783 = vsel %vm134, %v779, 0
      %v786 = vsel %vm134, %v781, 0
      %788 = vmatprep.subr.bf16.mxu0 0
      %789 = vmatpush1.bf16.xpose.msra.mxu0 0
      %790 = vmatprep.subr.bf16.mxu0 0
      %791 = vmatpush1.bf16.xpose.msra.mxu0 0
      %792 = vmatprep.subr.bf16.mxu0 0
      %793 = vmatpush1.bf16.xpose.msra.mxu0 0
      %794 = vmatprep.subr.bf16.mxu0 0
      %795 = vmatpush1.bf16.xpose.msra.mxu0 0
      %796 = vmatprep.subr.bf16.mxu0 0
      %797 = vmatpush1.bf16.xpose.msra.mxu0 0
      %798 = vmatprep.subr.bf16.mxu0 0
      %799 = vmatpush1.bf16.xpose.msra.mxu0 0
      %800 = vmatprep.subr.bf16.mxu0 0
      %801 = vmatpush1.bf16.xpose.msra.mxu0 0
      %802 = vmatprep.subr.bf16.mxu0 0
      %803 = vmatpush1.bf16.xpose.msra.mxu0 %v786
      %804 = vmatprep.subr.bf16.mxu0 0
      %805 = vmatpush2.bf16.xpose.msra.mxu0 0
      %806 = vmatprep.subr.bf16.mxu0 0
      %807 = vmatpush2.bf16.xpose.msra.mxu0 0
      %808 = vmatprep.subr.bf16.mxu0 0
      %809 = vmatpush2.bf16.xpose.msra.mxu0 0
      %810 = vmatprep.subr.bf16.mxu0 0
      %811 = vmatpush2.bf16.xpose.msra.mxu0 0
      %812 = vmatprep.subr.bf16.mxu0 0
      %813 = vmatpush2.bf16.xpose.msra.mxu0 0
      %814 = vmatprep.subr.bf16.mxu0 0
      %815 = vmatpush2.bf16.xpose.msra.mxu0 0
      %816 = vmatprep.subr.bf16.mxu0 0
      %817 = vmatpush2.bf16.xpose.msra.mxu0 0
      %818 = vmatprep.subr.bf16.mxu0 0
      %819 = vmatpush2.bf16.xpose.msra.mxu0 0
      %820 = vmatprep.mubr.bf16.mxu0 0
      %821 = vmatmul.mubr.bf16.gmra.mxu0 %v783
      %v822 = vpop.f32.mrf.mxu0
      %v823 = vadd.f32 0.0, %v822
      %v824 = vpop.f32.mrf.mxu0
      %v825 = vpop.f32.mrf.mxu0
      %v826 = vadd.f32 0.0, %v825
      %v827 = vpop.f32.mrf.mxu0
      %828 = vdwg.mxu0
      %v829 = vsel %vm182, %v823, -inf
      %830 = vmax.xlane.f32.xlu0 %v829
      %v831 = vpop.xlane.xlu0 %830
      %v832 = vsel %vm186, %v826, -inf
      %833 = vmax.xlane.f32.xlu0 %v832
      %v834 = vpop.xlane.xlu0 %833
      %v835 = vsub.f32 %v823, %v831
      %v836 = vsub.f32 %v826, %v834
      %v837 = vmul.f32 %v835, 1.442695
      %v838 = vpow.pop %v837
      %v839 = vmul.f32 %v836, 1.442695
      %v840 = vpow.pop %v839
      %v841 = vsel %vm182, %v838, 0.0
      %842 = vadd.xlane.f32.xlu0 %v841
      %v843 = vpop.xlane.xlu0 %842
      %v844 = vsel %vm186, %v840, 0.0
      %845 = vadd.xlane.f32.xlu0 %v844
      %v846 = vpop.xlane.xlu0 %845
      %v847 = vrcp.pop %v843
      %v848 = vrcp.pop %v846
      %v849 = vmul.f32 %v838, %v847
      %v850 = vmul.f32 %v840, %v848
      %v851 = vpack.c.bf16 %v850, %v849
      %852 = vrot.lane.b32.xlu0 %v719, 96
      %v853 = vpop.permute.xlu0 %852
      %v855 = vsel %vm182, %v851, 0
      %v858 = vand.u32 %v853, %v218
      %860 = vmatprep.subr.bf16.mxu0 0
      %861 = vmatpush1.bf16.msra.mxu0 0
      %862 = vmatprep.subr.bf16.mxu0 0
      %863 = vmatpush1.bf16.msra.mxu0 0
      %864 = vmatprep.subr.bf16.mxu0 0
      %865 = vmatpush1.bf16.msra.mxu0 0
      %866 = vmatprep.subr.bf16.mxu0 0
      %867 = vmatpush1.bf16.msra.mxu0 0
      %868 = vmatprep.subr.bf16.mxu0 0
      %869 = vmatpush1.bf16.msra.mxu0 0
      %870 = vmatprep.subr.bf16.mxu0 0
      %871 = vmatpush1.bf16.msra.mxu0 0
      %872 = vmatprep.subr.bf16.mxu0 0
      %873 = vmatpush1.bf16.msra.mxu0 0
      %874 = vmatprep.subr.bf16.mxu0 0
      %875 = vmatpush1.bf16.msra.mxu0 %v858
      %876 = vmatprep.subr.bf16.mxu0 0
      %877 = vmatpush2.bf16.msra.mxu0 0
      %878 = vmatprep.subr.bf16.mxu0 0
      %879 = vmatpush2.bf16.msra.mxu0 0
      %880 = vmatprep.subr.bf16.mxu0 0
      %881 = vmatpush2.bf16.msra.mxu0 0
      %882 = vmatprep.subr.bf16.mxu0 0
      %883 = vmatpush2.bf16.msra.mxu0 0
      %884 = vmatprep.subr.bf16.mxu0 0
      %885 = vmatpush2.bf16.msra.mxu0 0
      %886 = vmatprep.subr.bf16.mxu0 0
      %887 = vmatpush2.bf16.msra.mxu0 0
      %888 = vmatprep.subr.bf16.mxu0 0
      %889 = vmatpush2.bf16.msra.mxu0 0
      %890 = vmatprep.subr.bf16.mxu0 0
      %891 = vmatpush2.bf16.msra.mxu0 0
      %892 = vmatprep.mubr.bf16.mxu0 0
      %893 = vmatmul.mubr.bf16.gmra.mxu0 %v855
      %v894 = vpop.f32.mrf.mxu0
      %v895 = vadd.f32 0.0, %v894
      %v896 = vpop.f32.mrf.mxu0
      %v897 = vpop.f32.mrf.mxu0
      %v898 = vadd.f32 0.0, %v897
      %v899 = vpop.f32.mrf.mxu0
      %900 = vdwg.mxu0
      %901 = vrot.lane.b32.xlu0 %v118, 64
      %v902 = vpop.permute.xlu0 %901
      %903 = vrot.lane.b32.xlu0 %v121, 64
      %v904 = vpop.permute.xlu0 %903
      %v905 = vrot.slane %v902, 4
      %v906 = vrot.slane %v904, 4
      %v909 = vunpack.c.l.bf16 %v905
      %v910 = vunpack.c.l.bf16 %v906
      %v911 = vmul.f32 %v909, 0.17677669
      %v912 = vmul.f32 %v910, 0.17677669
      %v913 = vpack.c.bf16 %v912, %v911
      %914 = vrot.lane.b32.xlu0 %v646, 64
      %v915 = vpop.permute.xlu0 %914
      %v917 = vsel %vm134, %v913, 0
      %v920 = vsel %vm134, %v915, 0
      %922 = vmatprep.subr.bf16.mxu0 0
      %923 = vmatpush1.bf16.xpose.msra.mxu0 0
      %924 = vmatprep.subr.bf16.mxu0 0
      %925 = vmatpush1.bf16.xpose.msra.mxu0 0
      %926 = vmatprep.subr.bf16.mxu0 0
      %927 = vmatpush1.bf16.xpose.msra.mxu0 0
      %928 = vmatprep.subr.bf16.mxu0 0
      %929 = vmatpush1.bf16.xpose.msra.mxu0 0
      %930 = vmatprep.subr.bf16.mxu0 0
      %931 = vmatpush1.bf16.xpose.msra.mxu0 0
      %932 = vmatprep.subr.bf16.mxu0 0
      %933 = vmatpush1.bf16.xpose.msra.mxu0 0
      %934 = vmatprep.subr.bf16.mxu0 0
      %935 = vmatpush1.bf16.xpose.msra.mxu0 0
      %936 = vmatprep.subr.bf16.mxu0 0
      %937 = vmatpush1.bf16.xpose.msra.mxu0 %v920
      %938 = vmatprep.subr.bf16.mxu0 0
      %939 = vmatpush2.bf16.xpose.msra.mxu0 0
      %940 = vmatprep.subr.bf16.mxu0 0
      %941 = vmatpush2.bf16.xpose.msra.mxu0 0
      %942 = vmatprep.subr.bf16.mxu0 0
      %943 = vmatpush2.bf16.xpose.msra.mxu0 0
      %944 = vmatprep.subr.bf16.mxu0 0
      %945 = vmatpush2.bf16.xpose.msra.mxu0 0
      %946 = vmatprep.subr.bf16.mxu0 0
      %947 = vmatpush2.bf16.xpose.msra.mxu0 0
      %948 = vmatprep.subr.bf16.mxu0 0
      %949 = vmatpush2.bf16.xpose.msra.mxu0 0
      %950 = vmatprep.subr.bf16.mxu0 0
      %951 = vmatpush2.bf16.xpose.msra.mxu0 0
      %952 = vmatprep.subr.bf16.mxu0 0
      %953 = vmatpush2.bf16.xpose.msra.mxu0 0
      %954 = vmatprep.mubr.bf16.mxu0 0
      %955 = vmatmul.mubr.bf16.gmra.mxu0 %v917
      %v956 = vpop.f32.mrf.mxu0
      %v957 = vadd.f32 0.0, %v956
      %v958 = vpop.f32.mrf.mxu0
      %v959 = vpop.f32.mrf.mxu0
      %v960 = vadd.f32 0.0, %v959
      %v961 = vpop.f32.mrf.mxu0
      %962 = vdwg.mxu0
      %v963 = vsel %vm182, %v957, -inf
      %964 = vmax.xlane.f32.xlu0 %v963
      %v965 = vpop.xlane.xlu0 %964
      %v966 = vsel %vm186, %v960, -inf
      %967 = vmax.xlane.f32.xlu0 %v966
      %v968 = vpop.xlane.xlu0 %967
      %v969 = vsub.f32 %v957, %v965
      %v970 = vsub.f32 %v960, %v968
      %v971 = vmul.f32 %v969, 1.442695
      %v972 = vpow.pop %v971
      %v973 = vmul.f32 %v970, 1.442695
      %v974 = vpow.pop %v973
      %v975 = vsel %vm182, %v972, 0.0
      %976 = vadd.xlane.f32.xlu0 %v975
      %v977 = vpop.xlane.xlu0 %976
      %v978 = vsel %vm186, %v974, 0.0
      %979 = vadd.xlane.f32.xlu0 %v978
      %v980 = vpop.xlane.xlu0 %979
      %v981 = vrcp.pop %v977
      %v982 = vrcp.pop %v980
      %v983 = vmul.f32 %v972, %v981
      %v984 = vmul.f32 %v974, %v982
      %v985 = vpack.c.bf16 %v984, %v983
      %986 = vrot.lane.b32.xlu0 %v719, 64
      %v987 = vpop.permute.xlu0 %986
      %v989 = vsel %vm182, %v985, 0
      %v992 = vand.u32 %v987, %v218
      %994 = vmatprep.subr.bf16.mxu0 0
      %995 = vmatpush1.bf16.msra.mxu0 0
      %996 = vmatprep.subr.bf16.mxu0 0
      %997 = vmatpush1.bf16.msra.mxu0 0
      %998 = vmatprep.subr.bf16.mxu0 0
      %999 = vmatpush1.bf16.msra.mxu0 0
      %1000 = vmatprep.subr.bf16.mxu0 0
      %1001 = vmatpush1.bf16.msra.mxu0 0
      %1002 = vmatprep.subr.bf16.mxu0 0
      %1003 = vmatpush1.bf16.msra.mxu0 0
      %1004 = vmatprep.subr.bf16.mxu0 0
      %1005 = vmatpush1.bf16.msra.mxu0 0
      %1006 = vmatprep.subr.bf16.mxu0 0
      %1007 = vmatpush1.bf16.msra.mxu0 0
      %1008 = vmatprep.subr.bf16.mxu0 0
      %1009 = vmatpush1.bf16.msra.mxu0 %v992
      %1010 = vmatprep.subr.bf16.mxu0 0
      %1011 = vmatpush2.bf16.msra.mxu0 0
      %1012 = vmatprep.subr.bf16.mxu0 0
      %1013 = vmatpush2.bf16.msra.mxu0 0
      %1014 = vmatprep.subr.bf16.mxu0 0
      %1015 = vmatpush2.bf16.msra.mxu0 0
      %1016 = vmatprep.subr.bf16.mxu0 0
      %1017 = vmatpush2.bf16.msra.mxu0 0
      %1018 = vmatprep.subr.bf16.mxu0 0
      %1019 = vmatpush2.bf16.msra.mxu0 0
      %1020 = vmatprep.subr.bf16.mxu0 0
      %1021 = vmatpush2.bf16.msra.mxu0 0
      %1022 = vmatprep.subr.bf16.mxu0 0
      %1023 = vmatpush2.bf16.msra.mxu0 0
      %1024 = vmatprep.subr.bf16.mxu0 0
      %1025 = vmatpush2.bf16.msra.mxu0 0
      %1026 = vmatprep.mubr.bf16.mxu0 0
      %1027 = vmatmul.mubr.bf16.gmra.mxu0 %v989
      %v1028 = vpop.f32.mrf.mxu0
      %v1029 = vadd.f32 0.0, %v1028
      %v1030 = vpop.f32.mrf.mxu0
      %v1031 = vpop.f32.mrf.mxu0
      %v1032 = vadd.f32 0.0, %v1031
      %v1033 = vpop.f32.mrf.mxu0
      %1034 = vdwg.mxu0
      %1035 = vrot.lane.b32.xlu0 %v118, 32
      %v1036 = vpop.permute.xlu0 %1035
      %1037 = vrot.lane.b32.xlu0 %v121, 32
      %v1038 = vpop.permute.xlu0 %1037
      %v1039 = vrot.slane %v1036, 4
      %v1040 = vrot.slane %v1038, 4
      %v1043 = vunpack.c.l.bf16 %v1039
      %v1044 = vunpack.c.l.bf16 %v1040
      %v1045 = vmul.f32 %v1043, 0.17677669
      %v1046 = vmul.f32 %v1044, 0.17677669
      %v1047 = vpack.c.bf16 %v1046, %v1045
      %1048 = vrot.lane.b32.xlu0 %v646, 32
      %v1049 = vpop.permute.xlu0 %1048
      %v1051 = vsel %vm134, %v1047, 0
      %v1054 = vsel %vm134, %v1049, 0
      %1056 = vmatprep.subr.bf16.mxu0 0
      %1057 = vmatpush1.bf16.xpose.msra.mxu0 0
      %1058 = vmatprep.subr.bf16.mxu0 0
      %1059 = vmatpush1.bf16.xpose.msra.mxu0 0
      %1060 = vmatprep.subr.bf16.mxu0 0
      %1061 = vmatpush1.bf16.xpose.msra.mxu0 0
      %1062 = vmatprep.subr.bf16.mxu0 0
      %1063 = vmatpush1.bf16.xpose.msra.mxu0 0
      %1064 = vmatprep.subr.bf16.mxu0 0
      %1065 = vmatpush1.bf16.xpose.msra.mxu0 0
      %1066 = vmatprep.subr.bf16.mxu0 0
      %1067 = vmatpush1.bf16.xpose.msra.mxu0 0
      %1068 = vmatprep.subr.bf16.mxu0 0
      %1069 = vmatpush1.bf16.xpose.msra.mxu0 0
      %1070 = vmatprep.subr.bf16.mxu0 0
      %1071 = vmatpush1.bf16.xpose.msra.mxu0 %v1054
      %1072 = vmatprep.subr.bf16.mxu0 0
      %1073 = vmatpush2.bf16.xpose.msra.mxu0 0
      %1074 = vmatprep.subr.bf16.mxu0 0
      %1075 = vmatpush2.bf16.xpose.msra.mxu0 0
      %1076 = vmatprep.subr.bf16.mxu0 0
      %1077 = vmatpush2.bf16.xpose.msra.mxu0 0
      %1078 = vmatprep.subr.bf16.mxu0 0
      %1079 = vmatpush2.bf16.xpose.msra.mxu0 0
      %1080 = vmatprep.subr.bf16.mxu0 0
      %1081 = vmatpush2.bf16.xpose.msra.mxu0 0
      %1082 = vmatprep.subr.bf16.mxu0 0
      %1083 = vmatpush2.bf16.xpose.msra.mxu0 0
      %1084 = vmatprep.subr.bf16.mxu0 0
      %1085 = vmatpush2.bf16.xpose.msra.mxu0 0
      %1086 = vmatprep.subr.bf16.mxu0 0
      %1087 = vmatpush2.bf16.xpose.msra.mxu0 0
      %1088 = vmatprep.mubr.bf16.mxu0 0
      %1089 = vmatmul.mubr.bf16.gmra.mxu0 %v1051
      %v1090 = vpop.f32.mrf.mxu0
      %v1091 = vadd.f32 0.0, %v1090
      %v1092 = vpop.f32.mrf.mxu0
      %v1093 = vpop.f32.mrf.mxu0
      %v1094 = vadd.f32 0.0, %v1093
      %v1095 = vpop.f32.mrf.mxu0
      %1096 = vdwg.mxu0
      %v1097 = vsel %vm182, %v1091, -inf
      %1098 = vmax.xlane.f32.xlu0 %v1097
      %v1099 = vpop.xlane.xlu0 %1098
      %v1100 = vsel %vm186, %v1094, -inf
      %1101 = vmax.xlane.f32.xlu0 %v1100
      %v1102 = vpop.xlane.xlu0 %1101
      %v1103 = vsub.f32 %v1091, %v1099
      %v1104 = vsub.f32 %v1094, %v1102
      %v1105 = vmul.f32 %v1103, 1.442695
      %v1106 = vpow.pop %v1105
      %v1107 = vmul.f32 %v1104, 1.442695
      %v1108 = vpow.pop %v1107
      %v1109 = vsel %vm182, %v1106, 0.0
      %1110 = vadd.xlane.f32.xlu0 %v1109
      %v1111 = vpop.xlane.xlu0 %1110
      %v1112 = vsel %vm186, %v1108, 0.0
      %1113 = vadd.xlane.f32.xlu0 %v1112
      %v1114 = vpop.xlane.xlu0 %1113
      %v1115 = vrcp.pop %v1111
      %v1116 = vrcp.pop %v1114
      %v1117 = vmul.f32 %v1106, %v1115
      %v1118 = vmul.f32 %v1108, %v1116
      %v1119 = vpack.c.bf16 %v1118, %v1117
      %1120 = vrot.lane.b32.xlu0 %v719, 32
      %v1121 = vpop.permute.xlu0 %1120
      %v1123 = vsel %vm182, %v1119, 0
      %v1126 = vand.u32 %v1121, %v218
      %1128 = vmatprep.subr.bf16.mxu0 0
      %1129 = vmatpush1.bf16.msra.mxu0 0
      %1130 = vmatprep.subr.bf16.mxu0 0
      %1131 = vmatpush1.bf16.msra.mxu0 0
      %1132 = vmatprep.subr.bf16.mxu0 0
      %1133 = vmatpush1.bf16.msra.mxu0 0
      %1134 = vmatprep.subr.bf16.mxu0 0
      %1135 = vmatpush1.bf16.msra.mxu0 0
      %1136 = vmatprep.subr.bf16.mxu0 0
      %1137 = vmatpush1.bf16.msra.mxu0 0
      %1138 = vmatprep.subr.bf16.mxu0 0
      %1139 = vmatpush1.bf16.msra.mxu0 0
      %1140 = vmatprep.subr.bf16.mxu0 0
      %1141 = vmatpush1.bf16.msra.mxu0 0
      %1142 = vmatprep.subr.bf16.mxu0 0
      %1143 = vmatpush1.bf16.msra.mxu0 %v1126
      %1144 = vmatprep.subr.bf16.mxu0 0
      %1145 = vmatpush2.bf16.msra.mxu0 0
      %1146 = vmatprep.subr.bf16.mxu0 0
      %1147 = vmatpush2.bf16.msra.mxu0 0
      %1148 = vmatprep.subr.bf16.mxu0 0
      %1149 = vmatpush2.bf16.msra.mxu0 0
      %1150 = vmatprep.subr.bf16.mxu0 0
      %1151 = vmatpush2.bf16.msra.mxu0 0
      %1152 = vmatprep.subr.bf16.mxu0 0
      %1153 = vmatpush2.bf16.msra.mxu0 0
      %1154 = vmatprep.subr.bf16.mxu0 0
      %1155 = vmatpush2.bf16.msra.mxu0 0
      %1156 = vmatprep.subr.bf16.mxu0 0
      %1157 = vmatpush2.bf16.msra.mxu0 0
      %1158 = vmatprep.subr.bf16.mxu0 0
      %1159 = vmatpush2.bf16.msra.mxu0 0
      %1160 = vmatprep.mubr.bf16.mxu0 0
      %1161 = vmatmul.mubr.bf16.gmra.mxu0 %v1123
      %v1162 = vpop.f32.mrf.mxu0
      %v1163 = vadd.f32 0.0, %v1162
      %v1164 = vpop.f32.mrf.mxu0
      %v1165 = vpop.f32.mrf.mxu0
      %v1166 = vadd.f32 0.0, %v1165
      %v1167 = vpop.f32.mrf.mxu0
      %1168 = vdwg.mxu0
      %1171 = vrot.lane.b32.xlu0 %v381, 32
      %v1172 = vpop.permute.xlu0 %1171
      %1173 = vrot.lane.b32.xlu0 %v384, 32
      %v1174 = vpop.permute.xlu0 %1173
      %1179 = vrot.lane.b32.xlu0 %v504, 64
      %v1180 = vpop.permute.xlu0 %1179
      %1181 = vrot.lane.b32.xlu0 %v507, 64
      %v1182 = vpop.permute.xlu0 %1181
      %1187 = vrot.lane.b32.xlu0 %v627, 96
      %v1188 = vpop.permute.xlu0 %1187
      %1189 = vrot.lane.b32.xlu0 %v630, 96
      %v1190 = vpop.permute.xlu0 %1189
      %1195 = vrot.lane.b32.xlu0 %v895, 32
      %v1196 = vpop.permute.xlu0 %1195
      %1197 = vrot.lane.b32.xlu0 %v898, 32
      %v1198 = vpop.permute.xlu0 %1197
      %1203 = vrot.lane.b32.xlu0 %v1029, 64
      %v1204 = vpop.permute.xlu0 %1203
      %1205 = vrot.lane.b32.xlu0 %v1032, 64
      %v1206 = vpop.permute.xlu0 %1205
      %1211 = vrot.lane.b32.xlu0 %v1163, 96
      %v1212 = vpop.permute.xlu0 %1211
      %1213 = vrot.lane.b32.xlu0 %v1166, 96
      %v1214 = vpop.permute.xlu0 %1213
      %v1217 = vsel %vm134, %v257, %v1172
      %v1218 = vsel %vm134, %v260, %v1174
      %vm1219 = vcmask 523264
      %v1220 = vsel %vm1219, %v1217, %v1180
      %v1221 = vsel %vm1219, %v1218, %v1182
      %vm1222 = vcmask 785408
      %v1223 = vsel %vm1222, %v1220, %v1188
      %v1224 = vsel %vm1222, %v1221, %v1190
      %v1225 = vsel %vm134, %v761, %v1196
      %v1226 = vsel %vm134, %v764, %v1198
      %v1227 = vsel %vm1219, %v1225, %v1204
      %v1228 = vsel %vm1219, %v1226, %v1206
      %v1229 = vsel %vm1222, %v1227, %v1212
      %v1230 = vsel %vm1222, %v1228, %v1214
      %v1231 = vpack.c.bf16 %v1224, %v1223
      %v1232 = vpack.c.bf16 %v1230, %v1229
      %v1235 = vunpack.c.l.b16 %v1231
      %v1236 = vunpack.c.l.b16 %v1232
      %v1237 = vunpack.c.h.b16 %v1231
      %v1238 = vunpack.c.h.b16 %v1232
      %v1239 = vpack.c.b16 %v1236, %v1235
      %v1240 = vpack.c.b16 %v1238, %v1237
      %1243 = vst [vmem:[%s116] sm:$0xff] %v1239
      %vm1244 = vcmask 1040384
      %vm1245 = vsmask.f32 256
      %vm1246 = vmand %vm1244, %vm1245
      %vm1247 = vcmask 1044484
      %vm1248 = vsmask.f32 4352
      %vm1249 = vmand %vm1247, %vm1248
      %vm1250 = vmor %vm1249, %vm1246
      %v1251 = vld [vmem:[%s116 + $0x8] sm:$0x11]
      %v1252 = vsel %vm1250, %v1240, %v1251
      %1253 = vst [vmem:[%s116 + $0x8] sm:$0x11] %v1252
      %p1254 = scmp.lt.s32.totalorder %s12, 1
      %s1255 = scalar_select %p1254, %s12, 1
      %s1256 = smul.addr %s1255, 4
      %s1257 = smul.addr %s1256, 4
      %s1258 = scalar_lea.vmem %s1, %s1257
      // Predicated region
      $region25: #{eeg_transformer_forward.7} parent=23 // pred_check
        %p1259 = pneg %p56
      $region26: #{eeg_transformer_forward.7} parent=23 // pred_check_branch
        %1261 = sbr.rel (%p1259) target = $region28
      $region27: #{eeg_transformer_forward.7} parent=23 // pred_region
        _
      $region28: #{eeg_transformer_forward.7} parent=23 // pred_fallthru
        _
    $region24: #{eeg_transformer_forward.7} parent=5 // pred_fallthru
      _
    %p1262 = scmp.le.s32.totalorder 2, %s7
    // Predicated region
    $region29: #{eeg_transformer_forward.7} parent=5 // pred_check
      %p1263 = pneg %p1262
    $region30: #{eeg_transformer_forward.7} parent=5 // pred_check_branch
      %1265 = sbr.rel (%p1263) target = $region32
    $region31: #{eeg_transformer_forward.7} parent=5 // pred_region
      %s1266 = ssub.s32 %s7, 2
      // Predicated region
      $region33: #{eeg_transformer_forward.7} parent=31 // pred_check
        %p1267 = pneg %p62
      $region34: #{eeg_transformer_forward.7} parent=31 // pred_check_branch
        %1269 = sbr.rel (%p1267) target = $region36
      $region35: #{eeg_transformer_forward.7} parent=31 // pred_region
        %p1270 = scmp.lt.s32.totalorder %s13, 1
        %s1271 = scalar_select %p1270, %s13, 1
        %s1272 = smul.addr %s1271, 4
        %s1273 = smul.addr %s1272, 4
        %s1274 = scalar_lea.vmem %s1, %s1273
      $region36: #{eeg_transformer_forward.7} parent=31 // pred_fallthru
        _
    $region32: #{eeg_transformer_forward.7} parent=5 // pred_fallthru
      _
  $region6: #{eeg_transformer_forward.7} parent=0 // loop_footer
    %s11 = sadd.s32 1, %s7
  $region7: #{eeg_transformer_forward.7} parent=0 // loop_footer_branch
    %6 = sbr.rel target = $region3
  $region8: #{eeg_transformer_forward.7} parent=0 // loop_exit
    _

// kernel: eeg_transformer_forward.9
$region0: #{eeg_transformer_forward.9}
  #allocation0 [shape = 'u32[]', space=smem, size = 0x4, offset = 0x4, fixed_abs, tag = 'smem constant byte address 0x4 - core index']
  #allocation1 [shape = 'u32[144,128]{1,0:T(1,128)}', space=vmem, size = 0x12000, scoped, tag = 'internal scratch']
  #allocation2 [shape = 'bf16[18,256]{1,0:T(8,128)(2,1)}', space=vmem, size = 0x3000, scoped, tag = 'scratch operand']
  %s0 = inlined_call_operand.vmem [shape: f32[18,256], index: 0, kind: input, shape index: {}]
  %s1 = inlined_call_operand.vmem [shape: f32[1,256], index: 1, kind: input, shape index: {}]
  %s2 = inlined_call_operand.vmem [shape: f32[1,256], index: 2, kind: input, shape index: {}]
  %s3 = inlined_call_operand.vmem [shape: bf16[256,1024], index: 3, kind: input, shape index: {}]
  %s4 = inlined_call_operand.vmem [shape: f32[1,1024], index: 4, kind: input, shape index: {}]
  %s5 = inlined_call_operand.vmem [shape: bf16[18,1024], index: 5, kind: output, shape index: {}]
  %s6 = sld [smem:[#allocation0]]
  $region34: #{eeg_transformer_forward.9} parent=0
    _
  %s8 = ssub.s32 1, %s6
  %s9 = scalar_select 0, %s8, %s6
  // Predicated region
  $region2: #{eeg_transformer_forward.9} parent=0 // pred_check
    _
  $region3: #{eeg_transformer_forward.9} parent=0 // pred_check_branch
    %11 = sbr.rel (0) target = $region5
  $region4: #{eeg_transformer_forward.9} parent=0 // pred_region
    _
  $region5: #{eeg_transformer_forward.9} parent=0 // pred_fallthru
    _
  // Predicated region
  $region6: #{eeg_transformer_forward.9} parent=0 // pred_check
    _
  $region7: #{eeg_transformer_forward.9} parent=0 // pred_check_branch
    %13 = sbr.rel (0) target = $region9
  $region8: #{eeg_transformer_forward.9} parent=0 // pred_region
    _
  $region9: #{eeg_transformer_forward.9} parent=0 // pred_fallthru
    _
  // Predicated region
  $region10: #{eeg_transformer_forward.9} parent=0 // pred_check
    _
  $region11: #{eeg_transformer_forward.9} parent=0 // pred_check_branch
    %15 = sbr.rel (0) target = $region13
  $region12: #{eeg_transformer_forward.9} parent=0 // pred_region
    _
  $region13: #{eeg_transformer_forward.9} parent=0 // pred_fallthru
    _
  // Predicated region
  $region14: #{eeg_transformer_forward.9} parent=0 // pred_check
    _
  $region15: #{eeg_transformer_forward.9} parent=0 // pred_check_branch
    %17 = sbr.rel (0) target = $region17
  $region16: #{eeg_transformer_forward.9} parent=0 // pred_region
    _
  $region17: #{eeg_transformer_forward.9} parent=0 // pred_fallthru
    _
  // Predicated region
  $region18: #{eeg_transformer_forward.9} parent=0 // pred_check
    _
  $region19: #{eeg_transformer_forward.9} parent=0 // pred_check_branch
    %19 = sbr.rel (0) target = $region21
  $region20: #{eeg_transformer_forward.9} parent=0 // pred_region
    _
  $region21: #{eeg_transformer_forward.9} parent=0 // pred_fallthru
    _
  %p20 = scmp.eq.s32.totalorder 0, 0
  // Predicated region
  $region22: #{eeg_transformer_forward.9} parent=0 // pred_check
    %p21 = pneg %p20
  $region23: #{eeg_transformer_forward.9} parent=0 // pred_check_branch
    %23 = sbr.rel (%p21) target = $region25
  $region24: #{eeg_transformer_forward.9} parent=0 // pred_region
    %v24 = vld [vmem:[%s0] sm:$0xff]
    %v25 = vld [vmem:[%s0 + $0x8] sm:$0xff]
    %v26 = vld [vmem:[%s0 + $0x10] sm:$0xff]
    %v27 = vld [vmem:[%s0 + $0x18] sm:$0xff]
    %v28 = vld [vmem:[%s0 + $0x20] sm:$0x3]
    %v29 = vld [vmem:[%s0 + $0x28] sm:$0x3]
    %v30 = vadd.f32 %v24, %v25
    %31 = vadd.xlane.f32.xlu0 %v30
    %v32 = vpop.xlane.xlu0 %31
    %v33 = vadd.f32 %v26, %v27
    %34 = vadd.xlane.f32.xlu0 %v33
    %v35 = vpop.xlane.xlu0 %34
    %vm36 = vcmask 1041408
    %v37 = vsel %vm36, %v28, 0.0
    %v38 = vsel %vm36, %v29, 0.0
    %v39 = vadd.f32 %v37, %v38
    %40 = vadd.xlane.f32.xlu0 %v39
    %v41 = vpop.xlane.xlu0 %40
    %v42 = vrcp.pop 256.0
    %v43 = vmul.f32 %v32, %v42
    %v44 = vmul.f32 %v35, %v42
    %v45 = vmul.f32 %v41, %v42
    %v46 = vsub.f32 %v24, %v43
    %v47 = vsub.f32 %v25, %v43
    %v48 = vsub.f32 %v26, %v44
    %v49 = vsub.f32 %v27, %v44
    %v50 = vsub.f32 %v28, %v45
    %v51 = vsub.f32 %v29, %v45
    %v52 = vmul.f32 %v46, %v46
    %v53 = vmul.f32 %v47, %v47
    %v54 = vmul.f32 %v48, %v48
    %v55 = vmul.f32 %v49, %v49
    %v56 = vmul.f32 %v50, %v50
    %v57 = vmul.f32 %v51, %v51
    %v58 = vadd.f32 %v52, %v53
    %59 = vadd.xlane.f32.xlu0 %v58
    %v60 = vpop.xlane.xlu0 %59
    %v61 = vadd.f32 %v54, %v55
    %62 = vadd.xlane.f32.xlu0 %v61
    %v63 = vpop.xlane.xlu0 %62
    %v64 = vsel %vm36, %v56, 0.0
    %v65 = vsel %vm36, %v57, 0.0
    %v66 = vadd.f32 %v64, %v65
    %67 = vadd.xlane.f32.xlu0 %v66
    %v68 = vpop.xlane.xlu0 %67
    %v69 = vmul.f32 %v60, %v42
    %v70 = vmul.f32 %v63, %v42
    %v71 = vmul.f32 %v68, %v42
    %v72 = vadd.f32 %v69, 1e-05
    %v73 = vadd.f32 %v70, 1e-05
    %v74 = vadd.f32 %v71, 1e-05
    %v75 = vrsqrt.pop %v72
    %v76 = vrsqrt.pop %v73
    %v77 = vrsqrt.pop %v74
    %v78 = vmul.f32 %v46, %v75
    %v79 = vmul.f32 %v47, %v75
    %v80 = vmul.f32 %v48, %v76
    %v81 = vmul.f32 %v49, %v76
    %v82 = vmul.f32 %v50, %v77
    %v83 = vmul.f32 %v51, %v77
    %v84 = vld [vmem:[%s1] sm:$0x3]
    %v86 = vlaneseq
    %v87 = vshrl.u32 %v86, 7
    %v88 = vsub.s32 0, %v87
    %v89 = vrot.slane %v84, %v88
    %v90 = vlaneseq
    %v91 = vshrl.u32 %v90, 7
    %v92 = vsub.s32 1, %v91
    %v93 = vrot.slane %v84, %v92
    %v96 = vmul.f32 %v78, %v89
    %v97 = vmul.f32 %v79, %v93
    %v98 = vmul.f32 %v80, %v89
    %v99 = vmul.f32 %v81, %v93
    %v100 = vmul.f32 %v82, %v89
    %v101 = vmul.f32 %v83, %v93
    %v102 = vld [vmem:[%s2] sm:$0x3]
    %v104 = vlaneseq
    %v105 = vshrl.u32 %v104, 7
    %v106 = vsub.s32 0, %v105
    %v107 = vrot.slane %v102, %v106
    %v108 = vlaneseq
    %v109 = vshrl.u32 %v108, 7
    %v110 = vsub.s32 1, %v109
    %v111 = vrot.slane %v102, %v110
    %v114 = vadd.f32 %v96, %v107
    %v115 = vadd.f32 %v97, %v111
    %v116 = vadd.f32 %v98, %v107
    %v117 = vadd.f32 %v99, %v111
    %v118 = vadd.f32 %v100, %v107
    %v119 = vadd.f32 %v101, %v111
    %v120 = vpack.c.bf16 %v116, %v114
    %v121 = vpack.c.bf16 %v117, %v115
    %v122 = vpack.c.bf16 %v118, %v118
    %v123 = vpack.c.bf16 %v119, %v119
    %v128 = vunpack.c.l.b16 %v120
    %v129 = vunpack.c.l.b16 %v121
    %v130 = vunpack.c.h.b16 %v120
    %v131 = vunpack.c.h.b16 %v121
    %v132 = vunpack.c.l.b16 %v122
    %v133 = vunpack.c.l.b16 %v123
    %v134 = vpack.c.b16 %v129, %v128
    %v135 = vpack.c.b16 %v131, %v130
    %v136 = vpack.c.b16 %v133, %v132
    %140 = vst [vmem:[#allocation2] sm:$0xff] %v134
    %141 = vst [vmem:[#allocation2 + $0x8] sm:$0xff] %v135
    %142 = vst [vmem:[#allocation2 + $0x10] sm:$0x11] %v136
  $region25: #{eeg_transformer_forward.9} parent=0 // pred_fallthru
    _
  %v143 = vld [vmem:[#allocation2] sm:$0xff]
  %v144 = vld [vmem:[#allocation2 + $0x8] sm:$0xff]
  %v145 = vld [vmem:[#allocation2 + $0x10] sm:$0x11]
  %v146 = vld [vmem:[%s3] sm:$0xff]
  %v147 = vld [vmem:[%s3 + $0x8] sm:$0xff]
  %v148 = vld [vmem:[%s3 + $0x10] sm:$0xff]
  %v149 = vld [vmem:[%s3 + $0x18] sm:$0xff]
  %v150 = vld [vmem:[%s3 + $0x20] sm:$0xff]
  %v151 = vld [vmem:[%s3 + $0x28] sm:$0xff]
  %v152 = vld [vmem:[%s3 + $0x30] sm:$0xff]
  %v153 = vld [vmem:[%s3 + $0x38] sm:$0xff]
  %v154 = vld [vmem:[%s3 + $0x40] sm:$0xff]
  %v155 = vld [vmem:[%s3 + $0x48] sm:$0xff]
  %v156 = vld [vmem:[%s3 + $0x50] sm:$0xff]
  %v157 = vld [vmem:[%s3 + $0x58] sm:$0xff]
  %v158 = vld [vmem:[%s3 + $0x60] sm:$0xff]
  %v159 = vld [vmem:[%s3 + $0x68] sm:$0xff]
  %v160 = vld [vmem:[%s3 + $0x70] sm:$0xff]
  %v161 = vld [vmem:[%s3 + $0x78] sm:$0xff]
  %v162 = vld [vmem:[%s3 + $0x80] sm:$0xff]
  %v163 = vld [vmem:[%s3 + $0x88] sm:$0xff]
  %v164 = vld [vmem:[%s3 + $0x90] sm:$0xff]
  %v165 = vld [vmem:[%s3 + $0x98] sm:$0xff]
  %v166 = vld [vmem:[%s3 + $0xa0] sm:$0xff]
  %v167 = vld [vmem:[%s3 + $0xa8] sm:$0xff]
  %v168 = vld [vmem:[%s3 + $0xb0] sm:$0xff]
  %v169 = vld [vmem:[%s3 + $0xb8] sm:$0xff]
  %v170 = vld [vmem:[%s3 + $0xc0] sm:$0xff]
  %v171 = vld [vmem:[%s3 + $0xc8] sm:$0xff]
  %v172 = vld [vmem:[%s3 + $0xd0] sm:$0xff]
  %v173 = vld [vmem:[%s3 + $0xd8] sm:$0xff]
  %v174 = vld [vmem:[%s3 + $0xe0] sm:$0xff]
  %v175 = vld [vmem:[%s3 + $0xe8] sm:$0xff]
  %v176 = vld [vmem:[%s3 + $0xf0] sm:$0xff]
  %v177 = vld [vmem:[%s3 + $0xf8] sm:$0xff]
  %v178 = vld [vmem:[%s3 + $0x100] sm:$0xff]
  %v179 = vld [vmem:[%s3 + $0x108] sm:$0xff]
  %v180 = vld [vmem:[%s3 + $0x110] sm:$0xff]
  %v181 = vld [vmem:[%s3 + $0x118] sm:$0xff]
  %v182 = vld [vmem:[%s3 + $0x120] sm:$0xff]
  %v183 = vld [vmem:[%s3 + $0x128] sm:$0xff]
  %v184 = vld [vmem:[%s3 + $0x130] sm:$0xff]
  %v185 = vld [vmem:[%s3 + $0x138] sm:$0xff]
  %v186 = vld [vmem:[%s3 + $0x140] sm:$0xff]
  %v187 = vld [vmem:[%s3 + $0x148] sm:$0xff]
  %v188 = vld [vmem:[%s3 + $0x150] sm:$0xff]
  %v189 = vld [vmem:[%s3 + $0x158] sm:$0xff]
  %v190 = vld [vmem:[%s3 + $0x160] sm:$0xff]
  %v191 = vld [vmem:[%s3 + $0x168] sm:$0xff]
  %v192 = vld [vmem:[%s3 + $0x170] sm:$0xff]
  %v193 = vld [vmem:[%s3 + $0x178] sm:$0xff]
  %v194 = vld [vmem:[%s3 + $0x180] sm:$0xff]
  %v195 = vld [vmem:[%s3 + $0x188] sm:$0xff]
  %v196 = vld [vmem:[%s3 + $0x190] sm:$0xff]
  %v197 = vld [vmem:[%s3 + $0x198] sm:$0xff]
  %v198 = vld [vmem:[%s3 + $0x1a0] sm:$0xff]
  %v199 = vld [vmem:[%s3 + $0x1a8] sm:$0xff]
  %v200 = vld [vmem:[%s3 + $0x1b0] sm:$0xff]
  %v201 = vld [vmem:[%s3 + $0x1b8] sm:$0xff]
  %v202 = vld [vmem:[%s3 + $0x1c0] sm:$0xff]
  %v203 = vld [vmem:[%s3 + $0x1c8] sm:$0xff]
  %v204 = vld [vmem:[%s3 + $0x1d0] sm:$0xff]
  %v205 = vld [vmem:[%s3 + $0x1d8] sm:$0xff]
  %v206 = vld [vmem:[%s3 + $0x1e0] sm:$0xff]
  %v207 = vld [vmem:[%s3 + $0x1e8] sm:$0xff]
  %v208 = vld [vmem:[%s3 + $0x1f0] sm:$0xff]
  %v209 = vld [vmem:[%s3 + $0x1f8] sm:$0xff]
  %v210 = vld [vmem:[%s3 + $0x200] sm:$0xff]
  %v211 = vld [vmem:[%s3 + $0x208] sm:$0xff]
  %v212 = vld [vmem:[%s3 + $0x210] sm:$0xff]
  %v213 = vld [vmem:[%s3 + $0x218] sm:$0xff]
  %v214 = vld [vmem:[%s3 + $0x220] sm:$0xff]
  %v215 = vld [vmem:[%s3 + $0x228] sm:$0xff]
  %v216 = vld [vmem:[%s3 + $0x230] sm:$0xff]
  %v217 = vld [vmem:[%s3 + $0x238] sm:$0xff]
  %v218 = vld [vmem:[%s3 + $0x240] sm:$0xff]
  %v219 = vld [vmem:[%s3 + $0x248] sm:$0xff]
  %v220 = vld [vmem:[%s3 + $0x250] sm:$0xff]
  %v221 = vld [vmem:[%s3 + $0x258] sm:$0xff]
  %v222 = vld [vmem:[%s3 + $0x260] sm:$0xff]
  %v223 = vld [vmem:[%s3 + $0x268] sm:$0xff]
  %v224 = vld [vmem:[%s3 + $0x270] sm:$0xff]
  %v225 = vld [vmem:[%s3 + $0x278] sm:$0xff]
  %v226 = vld [vmem:[%s3 + $0x280] sm:$0xff]
  %v227 = vld [vmem:[%s3 + $0x288] sm:$0xff]
  %v228 = vld [vmem:[%s3 + $0x290] sm:$0xff]
  %v229 = vld [vmem:[%s3 + $0x298] sm:$0xff]
  %v230 = vld [vmem:[%s3 + $0x2a0] sm:$0xff]
  %v231 = vld [vmem:[%s3 + $0x2a8] sm:$0xff]
  %v232 = vld [vmem:[%s3 + $0x2b0] sm:$0xff]
  %v233 = vld [vmem:[%s3 + $0x2b8] sm:$0xff]
  %v234 = vld [vmem:[%s3 + $0x2c0] sm:$0xff]
  %v235 = vld [vmem:[%s3 + $0x2c8] sm:$0xff]
  %v236 = vld [vmem:[%s3 + $0x2d0] sm:$0xff]
  %v237 = vld [vmem:[%s3 + $0x2d8] sm:$0xff]
  %v238 = vld [vmem:[%s3 + $0x2e0] sm:$0xff]
  %v239 = vld [vmem:[%s3 + $0x2e8] sm:$0xff]
  %v240 = vld [vmem:[%s3 + $0x2f0] sm:$0xff]
  %v241 = vld [vmem:[%s3 + $0x2f8] sm:$0xff]
  %v242 = vld [vmem:[%s3 + $0x300] sm:$0xff]
  %v243 = vld [vmem:[%s3 + $0x308] sm:$0xff]
  %v244 = vld [vmem:[%s3 + $0x310] sm:$0xff]
  %v245 = vld [vmem:[%s3 + $0x318] sm:$0xff]
  %v246 = vld [vmem:[%s3 + $0x320] sm:$0xff]
  %v247 = vld [vmem:[%s3 + $0x328] sm:$0xff]
  %v248 = vld [vmem:[%s3 + $0x330] sm:$0xff]
  %v249 = vld [vmem:[%s3 + $0x338] sm:$0xff]
  %v250 = vld [vmem:[%s3 + $0x340] sm:$0xff]
  %v251 = vld [vmem:[%s3 + $0x348] sm:$0xff]
  %v252 = vld [vmem:[%s3 + $0x350] sm:$0xff]
  %v253 = vld [vmem:[%s3 + $0x358] sm:$0xff]
  %v254 = vld [vmem:[%s3 + $0x360] sm:$0xff]
  %v255 = vld [vmem:[%s3 + $0x368] sm:$0xff]
  %v256 = vld [vmem:[%s3 + $0x370] sm:$0xff]
  %v257 = vld [vmem:[%s3 + $0x378] sm:$0xff]
  %v258 = vld [vmem:[%s3 + $0x380] sm:$0xff]
  %v259 = vld [vmem:[%s3 + $0x388] sm:$0xff]
  %v260 = vld [vmem:[%s3 + $0x390] sm:$0xff]
  %v261 = vld [vmem:[%s3 + $0x398] sm:$0xff]
  %v262 = vld [vmem:[%s3 + $0x3a0] sm:$0xff]
  %v263 = vld [vmem:[%s3 + $0x3a8] sm:$0xff]
  %v264 = vld [vmem:[%s3 + $0x3b0] sm:$0xff]
  %v265 = vld [vmem:[%s3 + $0x3b8] sm:$0xff]
  %v266 = vld [vmem:[%s3 + $0x3c0] sm:$0xff]
  %v267 = vld [vmem:[%s3 + $0x3c8] sm:$0xff]
  %v268 = vld [vmem:[%s3 + $0x3d0] sm:$0xff]
  %v269 = vld [vmem:[%s3 + $0x3d8] sm:$0xff]
  %v270 = vld [vmem:[%s3 + $0x3e0] sm:$0xff]
  %v271 = vld [vmem:[%s3 + $0x3e8] sm:$0xff]
  %v272 = vld [vmem:[%s3 + $0x3f0] sm:$0xff]
  %v273 = vld [vmem:[%s3 + $0x3f8] sm:$0xff]
  %v274 = vld [vmem:[%s4] sm:$0xff]
  %v276 = vlaneseq
  %v277 = vshrl.u32 %v276, 7
  %v278 = vsub.s32 0, %v277
  %v279 = vrot.slane %v274, %v278
  %v280 = vlaneseq
  %v281 = vshrl.u32 %v280, 7
  %v282 = vsub.s32 1, %v281
  %v283 = vrot.slane %v274, %v282
  %v284 = vlaneseq
  %v285 = vshrl.u32 %v284, 7
  %v286 = vsub.s32 2, %v285
  %v287 = vrot.slane %v274, %v286
  %v288 = vlaneseq
  %v289 = vshrl.u32 %v288, 7
  %v290 = vsub.s32 3, %v289
  %v291 = vrot.slane %v274, %v290
  %v292 = vlaneseq
  %v293 = vshrl.u32 %v292, 7
  %v294 = vsub.s32 4, %v293
  %v295 = vrot.slane %v274, %v294
  %v296 = vlaneseq
  %v297 = vshrl.u32 %v296, 7
  %v298 = vsub.s32 5, %v297
  %v299 = vrot.slane %v274, %v298
  %v300 = vlaneseq
  %v301 = vshrl.u32 %v300, 7
  %v302 = vsub.s32 6, %v301
  %v303 = vrot.slane %v274, %v302
  %v304 = vlaneseq
  %v305 = vshrl.u32 %v304, 7
  %v306 = vsub.s32 7, %v305
  %v307 = vrot.slane %v274, %v306
  %v319 = vunpack.c.l.b16 %v143
  %v320 = vunpack.c.h.b16 %v143
  %v321 = vunpack.c.l.b16 %v144
  %v322 = vunpack.c.h.b16 %v144
  %v323 = vunpack.c.l.b16 %v145
  %v324 = vunpack.c.h.b16 %v145
  %v325 = vpack.c.b16 %v321, %v319
  %v326 = vpack.c.b16 %v322, %v320
  %v327 = vpack.c.b16 %v323, %v323
  %v328 = vpack.c.b16 %v324, %v324
  %v461 = vunpack.c.l.b16 %v146
  %v462 = vunpack.c.h.b16 %v146
  %v463 = vunpack.c.l.b16 %v147
  %v464 = vunpack.c.h.b16 %v147
  %v465 = vunpack.c.l.b16 %v148
  %v466 = vunpack.c.h.b16 %v148
  %v467 = vunpack.c.l.b16 %v149
  %v468 = vunpack.c.h.b16 %v149
  %v469 = vunpack.c.l.b16 %v150
  %v470 = vunpack.c.h.b16 %v150
  %v471 = vunpack.c.l.b16 %v151
  %v472 = vunpack.c.h.b16 %v151
  %v473 = vunpack.c.l.b16 %v152
  %v474 = vunpack.c.h.b16 %v152
  %v475 = vunpack.c.l.b16 %v153
  %v476 = vunpack.c.h.b16 %v153
  %v477 = vunpack.c.l.b16 %v154
  %v478 = vunpack.c.h.b16 %v154
  %v479 = vunpack.c.l.b16 %v155
  %v480 = vunpack.c.h.b16 %v155
  %v481 = vunpack.c.l.b16 %v156
  %v482 = vunpack.c.h.b16 %v156
  %v483 = vunpack.c.l.b16 %v157
  %v484 = vunpack.c.h.b16 %v157
  %v485 = vunpack.c.l.b16 %v158
  %v486 = vunpack.c.h.b16 %v158
  %v487 = vunpack.c.l.b16 %v159
  %v488 = vunpack.c.h.b16 %v159
  %v489 = vunpack.c.l.b16 %v160
  %v490 = vunpack.c.h.b16 %v160
  %v491 = vunpack.c.l.b16 %v161
  %v492 = vunpack.c.h.b16 %v161
  %v493 = vunpack.c.l.b16 %v162
  %v494 = vunpack.c.h.b16 %v162
  %v495 = vunpack.c.l.b16 %v163
  %v496 = vunpack.c.h.b16 %v163
  %v497 = vunpack.c.l.b16 %v164
  %v498 = vunpack.c.h.b16 %v164
  %v499 = vunpack.c.l.b16 %v165
  %v500 = vunpack.c.h.b16 %v165
  %v501 = vunpack.c.l.b16 %v166
  %v502 = vunpack.c.h.b16 %v166
  %v503 = vunpack.c.l.b16 %v167
  %v504 = vunpack.c.h.b16 %v167
  %v505 = vunpack.c.l.b16 %v168
  %v506 = vunpack.c.h.b16 %v168
  %v507 = vunpack.c.l.b16 %v169
  %v508 = vunpack.c.h.b16 %v169
  %v509 = vunpack.c.l.b16 %v170
  %v510 = vunpack.c.h.b16 %v170
  %v511 = vunpack.c.l.b16 %v171
  %v512 = vunpack.c.h.b16 %v171
  %v513 = vunpack.c.l.b16 %v172
  %v514 = vunpack.c.h.b16 %v172
  %v515 = vunpack.c.l.b16 %v173
  %v516 = vunpack.c.h.b16 %v173
  %v517 = vunpack.c.l.b16 %v174
  %v518 = vunpack.c.h.b16 %v174
  %v519 = vunpack.c.l.b16 %v175
  %v520 = vunpack.c.h.b16 %v175
  %v521 = vunpack.c.l.b16 %v176
  %v522 = vunpack.c.h.b16 %v176
  %v523 = vunpack.c.l.b16 %v177
  %v524 = vunpack.c.h.b16 %v177
  %v525 = vunpack.c.l.b16 %v178
  %v526 = vunpack.c.h.b16 %v178
  %v527 = vunpack.c.l.b16 %v179
  %v528 = vunpack.c.h.b16 %v179
  %v529 = vunpack.c.l.b16 %v180
  %v530 = vunpack.c.h.b16 %v180
  %v531 = vunpack.c.l.b16 %v181
  %v532 = vunpack.c.h.b16 %v181
  %v533 = vunpack.c.l.b16 %v182
  %v534 = vunpack.c.h.b16 %v182
  %v535 = vunpack.c.l.b16 %v183
  %v536 = vunpack.c.h.b16 %v183
  %v537 = vunpack.c.l.b16 %v184
  %v538 = vunpack.c.h.b16 %v184
  %v539 = vunpack.c.l.b16 %v185
  %v540 = vunpack.c.h.b16 %v185
  %v541 = vunpack.c.l.b16 %v186
  %v542 = vunpack.c.h.b16 %v186
  %v543 = vunpack.c.l.b16 %v187
  %v544 = vunpack.c.h.b16 %v187
  %v545 = vunpack.c.l.b16 %v188
  %v546 = vunpack.c.h.b16 %v188
  %v547 = vunpack.c.l.b16 %v189
  %v548 = vunpack.c.h.b16 %v189
  %v549 = vunpack.c.l.b16 %v190
  %v550 = vunpack.c.h.b16 %v190
  %v551 = vunpack.c.l.b16 %v191
  %v552 = vunpack.c.h.b16 %v191
  %v553 = vunpack.c.l.b16 %v192
  %v554 = vunpack.c.h.b16 %v192
  %v555 = vunpack.c.l.b16 %v193
  %v556 = vunpack.c.h.b16 %v193
  %v557 = vunpack.c.l.b16 %v194
  %v558 = vunpack.c.h.b16 %v194
  %v559 = vunpack.c.l.b16 %v195
  %v560 = vunpack.c.h.b16 %v195
  %v561 = vunpack.c.l.b16 %v196
  %v562 = vunpack.c.h.b16 %v196
  %v563 = vunpack.c.l.b16 %v197
  %v564 = vunpack.c.h.b16 %v197
  %v565 = vunpack.c.l.b16 %v198
  %v566 = vunpack.c.h.b16 %v198
  %v567 = vunpack.c.l.b16 %v199
  %v568 = vunpack.c.h.b16 %v199
  %v569 = vunpack.c.l.b16 %v200
  %v570 = vunpack.c.h.b16 %v200
  %v571 = vunpack.c.l.b16 %v201
  %v572 = vunpack.c.h.b16 %v201
  %v573 = vunpack.c.l.b16 %v202
  %v574 = vunpack.c.h.b16 %v202
  %v575 = vunpack.c.l.b16 %v203
  %v576 = vunpack.c.h.b16 %v203
  %v577 = vunpack.c.l.b16 %v204
  %v578 = vunpack.c.h.b16 %v204
  %v579 = vunpack.c.l.b16 %v205
  %v580 = vunpack.c.h.b16 %v205
  %v581 = vunpack.c.l.b16 %v206
  %v582 = vunpack.c.h.b16 %v206
  %v583 = vunpack.c.l.b16 %v207
  %v584 = vunpack.c.h.b16 %v207
  %v585 = vunpack.c.l.b16 %v208
  %v586 = vunpack.c.h.b16 %v208
  %v587 = vunpack.c.l.b16 %v209
  %v588 = vunpack.c.h.b16 %v209
  %v589 = vunpack.c.l.b16 %v210
  %v590 = vunpack.c.h.b16 %v210
  %v591 = vunpack.c.l.b16 %v211
  %v592 = vunpack.c.h.b16 %v211
  %v593 = vunpack.c.l.b16 %v212
  %v594 = vunpack.c.h.b16 %v212
  %v595 = vunpack.c.l.b16 %v213
  %v596 = vunpack.c.h.b16 %v213
  %v597 = vunpack.c.l.b16 %v214
  %v598 = vunpack.c.h.b16 %v214
  %v599 = vunpack.c.l.b16 %v215
  %v600 = vunpack.c.h.b16 %v215
  %v601 = vunpack.c.l.b16 %v216
  %v602 = vunpack.c.h.b16 %v216
  %v603 = vunpack.c.l.b16 %v217
  %v604 = vunpack.c.h.b16 %v217
  %v605 = vunpack.c.l.b16 %v218
  %v606 = vunpack.c.h.b16 %v218
  %v607 = vunpack.c.l.b16 %v219
  %v608 = vunpack.c.h.b16 %v219
  %v609 = vunpack.c.l.b16 %v220
  %v610 = vunpack.c.h.b16 %v220
  %v611 = vunpack.c.l.b16 %v221
  %v612 = vunpack.c.h.b16 %v221
  %v613 = vunpack.c.l.b16 %v222
  %v614 = vunpack.c.h.b16 %v222
  %v615 = vunpack.c.l.b16 %v223
  %v616 = vunpack.c.h.b16 %v223
  %v617 = vunpack.c.l.b16 %v224
  %v618 = vunpack.c.h.b16 %v224
  %v619 = vunpack.c.l.b16 %v225
  %v620 = vunpack.c.h.b16 %v225
  %v621 = vunpack.c.l.b16 %v226
  %v622 = vunpack.c.h.b16 %v226
  %v623 = vunpack.c.l.b16 %v227
  %v624 = vunpack.c.h.b16 %v227
  %v625 = vunpack.c.l.b16 %v228
  %v626 = vunpack.c.h.b16 %v228
  %v627 = vunpack.c.l.b16 %v229
  %v628 = vunpack.c.h.b16 %v229
  %v629 = vunpack.c.l.b16 %v230
  %v630 = vunpack.c.h.b16 %v230
  %v631 = vunpack.c.l.b16 %v231
  %v632 = vunpack.c.h.b16 %v231
  %v633 = vunpack.c.l.b16 %v232
  %v634 = vunpack.c.h.b16 %v232
  %v635 = vunpack.c.l.b16 %v233
  %v636 = vunpack.c.h.b16 %v233
  %v637 = vunpack.c.l.b16 %v234
  %v638 = vunpack.c.h.b16 %v234
  %v639 = vunpack.c.l.b16 %v235
  %v640 = vunpack.c.h.b16 %v235
  %v641 = vunpack.c.l.b16 %v236
  %v642 = vunpack.c.h.b16 %v236
  %v643 = vunpack.c.l.b16 %v237
  %v644 = vunpack.c.h.b16 %v237
  %v645 = vunpack.c.l.b16 %v238
  %v646 = vunpack.c.h.b16 %v238
  %v647 = vunpack.c.l.b16 %v239
  %v648 = vunpack.c.h.b16 %v239
  %v649 = vunpack.c.l.b16 %v240
  %v650 = vunpack.c.h.b16 %v240
  %v651 = vunpack.c.l.b16 %v241
  %v652 = vunpack.c.h.b16 %v241
  %v653 = vunpack.c.l.b16 %v242
  %v654 = vunpack.c.h.b16 %v242
  %v655 = vunpack.c.l.b16 %v243
  %v656 = vunpack.c.h.b16 %v243
  %v657 = vunpack.c.l.b16 %v244
  %v658 = vunpack.c.h.b16 %v244
  %v659 = vunpack.c.l.b16 %v245
  %v660 = vunpack.c.h.b16 %v245
  %v661 = vunpack.c.l.b16 %v246
  %v662 = vunpack.c.h.b16 %v246
  %v663 = vunpack.c.l.b16 %v247
  %v664 = vunpack.c.h.b16 %v247
  %v665 = vunpack.c.l.b16 %v248
  %v666 = vunpack.c.h.b16 %v248
  %v667 = vunpack.c.l.b16 %v249
  %v668 = vunpack.c.h.b16 %v249
  %v669 = vunpack.c.l.b16 %v250
  %v670 = vunpack.c.h.b16 %v250
  %v671 = vunpack.c.l.b16 %v251
  %v672 = vunpack.c.h.b16 %v251
  %v673 = vunpack.c.l.b16 %v252
  %v674 = vunpack.c.h.b16 %v252
  %v675 = vunpack.c.l.b16 %v253
  %v676 = vunpack.c.h.b16 %v253
  %v677 = vunpack.c.l.b16 %v254
  %v678 = vunpack.c.h.b16 %v254
  %v679 = vunpack.c.l.b16 %v255
  %v680 = vunpack.c.h.b16 %v255
  %v681 = vunpack.c.l.b16 %v256
  %v682 = vunpack.c.h.b16 %v256
  %v683 = vunpack.c.l.b16 %v257
  %v684 = vunpack.c.h.b16 %v257
  %v685 = vunpack.c.l.b16 %v258
  %v686 = vunpack.c.h.b16 %v258
  %v687 = vunpack.c.l.b16 %v259
  %v688 = vunpack.c.h.b16 %v259
  %v689 = vunpack.c.l.b16 %v260
  %v690 = vunpack.c.h.b16 %v260
  %v691 = vunpack.c.l.b16 %v261
  %v692 = vunpack.c.h.b16 %v261
  %v693 = vunpack.c.l.b16 %v262
  %v694 = vunpack.c.h.b16 %v262
  %v695 = vunpack.c.l.b16 %v263
  %v696 = vunpack.c.h.b16 %v263
  %v697 = vunpack.c.l.b16 %v264
  %v698 = vunpack.c.h.b16 %v264
  %v699 = vunpack.c.l.b16 %v265
  %v700 = vunpack.c.h.b16 %v265
  %v701 = vunpack.c.l.b16 %v266
  %v702 = vunpack.c.h.b16 %v266
  %v703 = vunpack.c.l.b16 %v267
  %v704 = vunpack.c.h.b16 %v267
  %v705 = vunpack.c.l.b16 %v268
  %v706 = vunpack.c.h.b16 %v268
  %v707 = vunpack.c.l.b16 %v269
  %v708 = vunpack.c.h.b16 %v269
  %v709 = vunpack.c.l.b16 %v270
  %v710 = vunpack.c.h.b16 %v270
  %v711 = vunpack.c.l.b16 %v271
  %v712 = vunpack.c.h.b16 %v271
  %v713 = vunpack.c.l.b16 %v272
  %v714 = vunpack.c.h.b16 %v272
  %v715 = vunpack.c.l.b16 %v273
  %v716 = vunpack.c.h.b16 %v273
  %v717 = vpack.c.b16 %v469, %v461
  %v718 = vpack.c.b16 %v470, %v462
  %v719 = vpack.c.b16 %v471, %v463
  %v720 = vpack.c.b16 %v472, %v464
  %v721 = vpack.c.b16 %v473, %v465
  %v722 = vpack.c.b16 %v474, %v466
  %v723 = vpack.c.b16 %v475, %v467
  %v724 = vpack.c.b16 %v476, %v468
  %v725 = vpack.c.b16 %v485, %v477
  %v726 = vpack.c.b16 %v486, %v478
  %v727 = vpack.c.b16 %v487, %v479
  %v728 = vpack.c.b16 %v488, %v480
  %v729 = vpack.c.b16 %v489, %v481
  %v730 = vpack.c.b16 %v490, %v482
  %v731 = vpack.c.b16 %v491, %v483
  %v732 = vpack.c.b16 %v492, %v484
  %v733 = vpack.c.b16 %v501, %v493
  %v734 = vpack.c.b16 %v502, %v494
  %v735 = vpack.c.b16 %v503, %v495
  %v736 = vpack.c.b16 %v504, %v496
  %v737 = vpack.c.b16 %v505, %v497
  %v738 = vpack.c.b16 %v506, %v498
  %v739 = vpack.c.b16 %v507, %v499
  %v740 = vpack.c.b16 %v508, %v500
  %v741 = vpack.c.b16 %v517, %v509
  %v742 = vpack.c.b16 %v518, %v510
  %v743 = vpack.c.b16 %v519, %v511
  %v744 = vpack.c.b16 %v520, %v512
  %v745 = vpack.c.b16 %v521, %v513
  %v746 = vpack.c.b16 %v522, %v514
  %v747 = vpack.c.b16 %v523, %v515
  %v748 = vpack.c.b16 %v524, %v516
  %v749 = vpack.c.b16 %v533, %v525
  %v750 = vpack.c.b16 %v534, %v526
  %v751 = vpack.c.b16 %v535, %v527
  %v752 = vpack.c.b16 %v536, %v528
  %v753 = vpack.c.b16 %v537, %v529
  %v754 = vpack.c.b16 %v538, %v530
  %v755 = vpack.c.b16 %v539, %v531
  %v756 = vpack.c.b16 %v540, %v532
  %v757 = vpack.c.b16 %v549, %v541
  %v758 = vpack.c.b16 %v550, %v542
  %v759 = vpack.c.b16 %v551, %v543
  %v760 = vpack.c.b16 %v552, %v544
  %v761 = vpack.c.b16 %v553, %v545
  %v762 = vpack.c.b16 %v554, %v546
  %v763 = vpack.c.b16 %v555, %v547
  %v764 = vpack.c.b16 %v556, %v548
  %v765 = vpack.c.b16 %v565, %v557
  %v766 = vpack.c.b16 %v566, %v558
  %v767 = vpack.c.b16 %v567, %v559
  %v768 = vpack.c.b16 %v568, %v560
  %v769 = vpack.c.b16 %v569, %v561
  %v770 = vpack.c.b16 %v570, %v562
  %v771 = vpack.c.b16 %v571, %v563
  %v772 = vpack.c.b16 %v572, %v564
  %v773 = vpack.c.b16 %v581, %v573
  %v774 = vpack.c.b16 %v582, %v574
  %v775 = vpack.c.b16 %v583, %v575
  %v776 = vpack.c.b16 %v584, %v576
  %v777 = vpack.c.b16 %v585, %v577
  %v778 = vpack.c.b16 %v586, %v578
  %v779 = vpack.c.b16 %v587, %v579
  %v780 = vpack.c.b16 %v588, %v580
  %v781 = vpack.c.b16 %v597, %v589
  %v782 = vpack.c.b16 %v598, %v590
  %v783 = vpack.c.b16 %v599, %v591
  %v784 = vpack.c.b16 %v600, %v592
  %v785 = vpack.c.b16 %v601, %v593
  %v786 = vpack.c.b16 %v602, %v594
  %v787 = vpack.c.b16 %v603, %v595
  %v788 = vpack.c.b16 %v604, %v596
  %v789 = vpack.c.b16 %v613, %v605
  %v790 = vpack.c.b16 %v614, %v606
  %v791 = vpack.c.b16 %v615, %v607
  %v792 = vpack.c.b16 %v616, %v608
  %v793 = vpack.c.b16 %v617, %v609
  %v794 = vpack.c.b16 %v618, %v610
  %v795 = vpack.c.b16 %v619, %v611
  %v796 = vpack.c.b16 %v620, %v612
  %v797 = vpack.c.b16 %v629, %v621
  %v798 = vpack.c.b16 %v630, %v622
  %v799 = vpack.c.b16 %v631, %v623
  %v800 = vpack.c.b16 %v632, %v624
  %v801 = vpack.c.b16 %v633, %v625
  %v802 = vpack.c.b16 %v634, %v626
  %v803 = vpack.c.b16 %v635, %v627
  %v804 = vpack.c.b16 %v636, %v628
  %v805 = vpack.c.b16 %v645, %v637
  %v806 = vpack.c.b16 %v646, %v638
  %v807 = vpack.c.b16 %v647, %v639
  %v808 = vpack.c.b16 %v648, %v640
  %v809 = vpack.c.b16 %v649, %v641
  %v810 = vpack.c.b16 %v650, %v642
  %v811 = vpack.c.b16 %v651, %v643
  %v812 = vpack.c.b16 %v652, %v644
  %v813 = vpack.c.b16 %v661, %v653
  %v814 = vpack.c.b16 %v662, %v654
  %v815 = vpack.c.b16 %v663, %v655
  %v816 = vpack.c.b16 %v664, %v656
  %v817 = vpack.c.b16 %v665, %v657
  %v818 = vpack.c.b16 %v666, %v658
  %v819 = vpack.c.b16 %v667, %v659
  %v820 = vpack.c.b16 %v668, %v660
  %v821 = vpack.c.b16 %v677, %v669
  %v822 = vpack.c.b16 %v678, %v670
  %v823 = vpack.c.b16 %v679, %v671
  %v824 = vpack.c.b16 %v680, %v672
  %v825 = vpack.c.b16 %v681, %v673
  %v826 = vpack.c.b16 %v682, %v674
  %v827 = vpack.c.b16 %v683, %v675
  %v828 = vpack.c.b16 %v684, %v676
  %v829 = vpack.c.b16 %v693, %v685
  %v830 = vpack.c.b16 %v694, %v686
  %v831 = vpack.c.b16 %v695, %v687
  %v832 = vpack.c.b16 %v696, %v688
  %v833 = vpack.c.b16 %v697, %v689
  %v834 = vpack.c.b16 %v698, %v690
  %v835 = vpack.c.b16 %v699, %v691
  %v836 = vpack.c.b16 %v700, %v692
  %v837 = vpack.c.b16 %v709, %v701
  %v838 = vpack.c.b16 %v710, %v702
  %v839 = vpack.c.b16 %v711, %v703
  %v840 = vpack.c.b16 %v712, %v704
  %v841 = vpack.c.b16 %v713, %v705
  %v842 = vpack.c.b16 %v714, %v706
  %v843 = vpack.c.b16 %v715, %v707
  %v844 = vpack.c.b16 %v716, %v708
  %973 = vmatprep.subr.bf16.mxu0 %v774
  %974 = vmatpush1.bf16.msra.mxu0 %v773
  %975 = vmatprep.subr.bf16.mxu0 %v766
  %976 = vmatpush1.bf16.msra.mxu0 %v765
  %977 = vmatprep.subr.bf16.mxu0 %v758
  %978 = vmatpush1.bf16.msra.mxu0 %v757
  %979 = vmatprep.subr.bf16.mxu0 %v750
  %980 = vmatpush1.bf16.msra.mxu0 %v749
  %981 = vmatprep.subr.bf16.mxu0 %v742
  %982 = vmatpush1.bf16.msra.mxu0 %v741
  %983 = vmatprep.subr.bf16.mxu0 %v734
  %984 = vmatpush1.bf16.msra.mxu0 %v733
  %985 = vmatprep.subr.bf16.mxu0 %v726
  %986 = vmatpush1.bf16.msra.mxu0 %v725
  %987 = vmatprep.subr.bf16.mxu0 %v718
  %988 = vmatpush1.bf16.msra.mxu0 %v717
  %989 = vmatprep.subr.bf16.mxu0 %v838
  %990 = vmatpush2.bf16.msra.mxu0 %v837
  %991 = vmatprep.subr.bf16.mxu0 %v830
  %992 = vmatpush2.bf16.msra.mxu0 %v829
  %993 = vmatprep.subr.bf16.mxu0 %v822
  %994 = vmatpush2.bf16.msra.mxu0 %v821
  %995 = vmatprep.subr.bf16.mxu0 %v814
  %996 = vmatpush2.bf16.msra.mxu0 %v813
  %997 = vmatprep.subr.bf16.mxu0 %v806
  %998 = vmatpush2.bf16.msra.mxu0 %v805
  %999 = vmatprep.subr.bf16.mxu0 %v798
  %1000 = vmatpush2.bf16.msra.mxu0 %v797
  %1001 = vmatprep.subr.bf16.mxu0 %v790
  %1002 = vmatpush2.bf16.msra.mxu0 %v789
  %1003 = vmatprep.subr.bf16.mxu0 %v782
  %1004 = vmatpush2.bf16.msra.mxu0 %v781
  %1005 = vmatprep.mubr.bf16.mxu0 %v326
  %1006 = vmatmul.mubr.bf16.gmra.mxu0 %v325
  %v1007 = vpop.f32.mrf.mxu0
  %v1008 = vadd.f32 %v279, %v1007
  %v1009 = vpop.f32.mrf.mxu0
  %v1010 = vadd.f32 %v283, %v1009
  %v1011 = vpop.f32.mrf.mxu0
  %v1012 = vadd.f32 %v279, %v1011
  %v1013 = vpop.f32.mrf.mxu0
  %v1014 = vadd.f32 %v283, %v1013
  %1015 = vmatprep.mubr.bf16.mxu0 %v328
  %1016 = vmatmul.mubr.bf16.gmra.mxu0 %v327
  %v1017 = vpop.f32.mrf.mxu0
  %v1018 = vadd.f32 %v279, %v1017
  %v1019 = vpop.f32.mrf.mxu0
  %v1020 = vadd.f32 %v283, %v1019
  %v1021 = vpop.f32.mrf.mxu0
  %v1022 = vpop.f32.mrf.mxu0
  %1023 = vdwg.mxu0
  %1024 = vmatprep.subr.bf16.mxu0 %v776
  %1025 = vmatpush1.bf16.msra.mxu0 %v775
  %1026 = vmatprep.subr.bf16.mxu0 %v768
  %1027 = vmatpush1.bf16.msra.mxu0 %v767
  %1028 = vmatprep.subr.bf16.mxu0 %v760
  %1029 = vmatpush1.bf16.msra.mxu0 %v759
  %1030 = vmatprep.subr.bf16.mxu0 %v752
  %1031 = vmatpush1.bf16.msra.mxu0 %v751
  %1032 = vmatprep.subr.bf16.mxu0 %v744
  %1033 = vmatpush1.bf16.msra.mxu0 %v743
  %1034 = vmatprep.subr.bf16.mxu0 %v736
  %1035 = vmatpush1.bf16.msra.mxu0 %v735
  %1036 = vmatprep.subr.bf16.mxu0 %v728
  %1037 = vmatpush1.bf16.msra.mxu0 %v727
  %1038 = vmatprep.subr.bf16.mxu0 %v720
  %1039 = vmatpush1.bf16.msra.mxu0 %v719
  %1040 = vmatprep.subr.bf16.mxu0 %v840
  %1041 = vmatpush2.bf16.msra.mxu0 %v839
  %1042 = vmatprep.subr.bf16.mxu0 %v832
  %1043 = vmatpush2.bf16.msra.mxu0 %v831
  %1044 = vmatprep.subr.bf16.mxu0 %v824
  %1045 = vmatpush2.bf16.msra.mxu0 %v823
  %1046 = vmatprep.subr.bf16.mxu0 %v816
  %1047 = vmatpush2.bf16.msra.mxu0 %v815
  %1048 = vmatprep.subr.bf16.mxu0 %v808
  %1049 = vmatpush2.bf16.msra.mxu0 %v807
  %1050 = vmatprep.subr.bf16.mxu0 %v800
  %1051 = vmatpush2.bf16.msra.mxu0 %v799
  %1052 = vmatprep.subr.bf16.mxu0 %v792
  %1053 = vmatpush2.bf16.msra.mxu0 %v791
  %1054 = vmatprep.subr.bf16.mxu0 %v784
  %1055 = vmatpush2.bf16.msra.mxu0 %v783
  %1056 = vmatprep.mubr.bf16.mxu0 %v326
  %1057 = vmatmul.mubr.bf16.gmra.mxu0 %v325
  %v1058 = vpop.f32.mrf.mxu0
  %v1059 = vadd.f32 %v287, %v1058
  %v1060 = vpop.f32.mrf.mxu0
  %v1061 = vadd.f32 %v291, %v1060
  %v1062 = vpop.f32.mrf.mxu0
  %v1063 = vadd.f32 %v287, %v1062
  %v1064 = vpop.f32.mrf.mxu0
  %v1065 = vadd.f32 %v291, %v1064
  %1066 = vmatprep.mubr.bf16.mxu0 %v328
  %1067 = vmatmul.mubr.bf16.gmra.mxu0 %v327
  %v1068 = vpop.f32.mrf.mxu0
  %v1069 = vadd.f32 %v287, %v1068
  %v1070 = vpop.f32.mrf.mxu0
  %v1071 = vadd.f32 %v291, %v1070
  %v1072 = vpop.f32.mrf.mxu0
  %v1073 = vpop.f32.mrf.mxu0
  %1074 = vdwg.mxu0
  %1075 = vmatprep.subr.bf16.mxu0 %v778
  %1076 = vmatpush1.bf16.msra.mxu0 %v777
  %1077 = vmatprep.subr.bf16.mxu0 %v770
  %1078 = vmatpush1.bf16.msra.mxu0 %v769
  %1079 = vmatprep.subr.bf16.mxu0 %v762
  %1080 = vmatpush1.bf16.msra.mxu0 %v761
  %1081 = vmatprep.subr.bf16.mxu0 %v754
  %1082 = vmatpush1.bf16.msra.mxu0 %v753
  %1083 = vmatprep.subr.bf16.mxu0 %v746
  %1084 = vmatpush1.bf16.msra.mxu0 %v745
  %1085 = vmatprep.subr.bf16.mxu0 %v738
  %1086 = vmatpush1.bf16.msra.mxu0 %v737
  %1087 = vmatprep.subr.bf16.mxu0 %v730
  %1088 = vmatpush1.bf16.msra.mxu0 %v729
  %1089 = vmatprep.subr.bf16.mxu0 %v722
  %1090 = vmatpush1.bf16.msra.mxu0 %v721
  %1091 = vmatprep.subr.bf16.mxu0 %v842
  %1092 = vmatpush2.bf16.msra.mxu0 %v841
  %1093 = vmatprep.subr.bf16.mxu0 %v834
  %1094 = vmatpush2.bf16.msra.mxu0 %v833
  %1095 = vmatprep.subr.bf16.mxu0 %v826
  %1096 = vmatpush2.bf16.msra.mxu0 %v825
  %1097 = vmatprep.subr.bf16.mxu0 %v818
  %1098 = vmatpush2.bf16.msra.mxu0 %v817
  %1099 = vmatprep.subr.bf16.mxu0 %v810
  %1100 = vmatpush2.bf16.msra.mxu0 %v809
  %1101 = vmatprep.subr.bf16.mxu0 %v802
  %1102 = vmatpush2.bf16.msra.mxu0 %v801
  %1103 = vmatprep.subr.bf16.mxu0 %v794
  %1104 = vmatpush2.bf16.msra.mxu0 %v793
  %1105 = vmatprep.subr.bf16.mxu0 %v786
  %1106 = vmatpush2.bf16.msra.mxu0 %v785
  %1107 = vmatprep.mubr.bf16.mxu0 %v326
  %1108 = vmatmul.mubr.bf16.gmra.mxu0 %v325
  %v1109 = vpop.f32.mrf.mxu0
  %v1110 = vadd.f32 %v295, %v1109
  %v1111 = vpop.f32.mrf.mxu0
  %v1112 = vadd.f32 %v299, %v1111
  %v1113 = vpop.f32.mrf.mxu0
  %v1114 = vadd.f32 %v295, %v1113
  %v1115 = vpop.f32.mrf.mxu0
  %v1116 = vadd.f32 %v299, %v1115
  %1117 = vmatprep.mubr.bf16.mxu0 %v328
  %1118 = vmatmul.mubr.bf16.gmra.mxu0 %v327
  %v1119 = vpop.f32.mrf.mxu0
  %v1120 = vadd.f32 %v295, %v1119
  %v1121 = vpop.f32.mrf.mxu0
  %v1122 = vadd.f32 %v299, %v1121
  %v1123 = vpop.f32.mrf.mxu0
  %v1124 = vpop.f32.mrf.mxu0
  %1125 = vdwg.mxu0
  %1126 = vmatprep.subr.bf16.mxu0 %v780
  %1127 = vmatpush1.bf16.msra.mxu0 %v779
  %1128 = vmatprep.subr.bf16.mxu0 %v772
  %1129 = vmatpush1.bf16.msra.mxu0 %v771
  %1130 = vmatprep.subr.bf16.mxu0 %v764
  %1131 = vmatpush1.bf16.msra.mxu0 %v763
  %1132 = vmatprep.subr.bf16.mxu0 %v756
  %1133 = vmatpush1.bf16.msra.mxu0 %v755
  %1134 = vmatprep.subr.bf16.mxu0 %v748
  %1135 = vmatpush1.bf16.msra.mxu0 %v747
  %1136 = vmatprep.subr.bf16.mxu0 %v740
  %1137 = vmatpush1.bf16.msra.mxu0 %v739
  %1138 = vmatprep.subr.bf16.mxu0 %v732
  %1139 = vmatpush1.bf16.msra.mxu0 %v731
  %1140 = vmatprep.subr.bf16.mxu0 %v724
  %1141 = vmatpush1.bf16.msra.mxu0 %v723
  %1142 = vmatprep.subr.bf16.mxu0 %v844
  %1143 = vmatpush2.bf16.msra.mxu0 %v843
  %1144 = vmatprep.subr.bf16.mxu0 %v836
  %1145 = vmatpush2.bf16.msra.mxu0 %v835
  %1146 = vmatprep.subr.bf16.mxu0 %v828
  %1147 = vmatpush2.bf16.msra.mxu0 %v827
  %1148 = vmatprep.subr.bf16.mxu0 %v820
  %1149 = vmatpush2.bf16.msra.mxu0 %v819
  %1150 = vmatprep.subr.bf16.mxu0 %v812
  %1151 = vmatpush2.bf16.msra.mxu0 %v811
  %1152 = vmatprep.subr.bf16.mxu0 %v804
  %1153 = vmatpush2.bf16.msra.mxu0 %v803
  %1154 = vmatprep.subr.bf16.mxu0 %v796
  %1155 = vmatpush2.bf16.msra.mxu0 %v795
  %1156 = vmatprep.subr.bf16.mxu0 %v788
  %1157 = vmatpush2.bf16.msra.mxu0 %v787
  %1158 = vmatprep.mubr.bf16.mxu0 %v326
  %1159 = vmatmul.mubr.bf16.gmra.mxu0 %v325
  %v1160 = vpop.f32.mrf.mxu0
  %v1161 = vadd.f32 %v303, %v1160
  %v1162 = vpop.f32.mrf.mxu0
  %v1163 = vadd.f32 %v307, %v1162
  %v1164 = vpop.f32.mrf.mxu0
  %v1165 = vadd.f32 %v303, %v1164
  %v1166 = vpop.f32.mrf.mxu0
  %v1167 = vadd.f32 %v307, %v1166
  %1168 = vmatprep.mubr.bf16.mxu0 %v328
  %1169 = vmatmul.mubr.bf16.gmra.mxu0 %v327
  %v1170 = vpop.f32.mrf.mxu0
  %v1171 = vadd.f32 %v303, %v1170
  %v1172 = vpop.f32.mrf.mxu0
  %v1173 = vadd.f32 %v307, %v1172
  %v1174 = vpop.f32.mrf.mxu0
  %v1175 = vpop.f32.mrf.mxu0
  %1176 = vdwg.mxu0
  %v1177 = vmul.f32 %v1008, 0.5
  %v1178 = vmul.f32 %v1010, 0.5
  %v1179 = vmul.f32 %v1059, 0.5
  %v1180 = vmul.f32 %v1061, 0.5
  %v1181 = vmul.f32 %v1110, 0.5
  %v1182 = vmul.f32 %v1112, 0.5
  %v1183 = vmul.f32 %v1161, 0.5
  %v1184 = vmul.f32 %v1163, 0.5
  %v1185 = vmul.f32 %v1012, 0.5
  %v1186 = vmul.f32 %v1014, 0.5
  %v1187 = vmul.f32 %v1063, 0.5
  %v1188 = vmul.f32 %v1065, 0.5
  %v1189 = vmul.f32 %v1114, 0.5
  %v1190 = vmul.f32 %v1116, 0.5
  %v1191 = vmul.f32 %v1165, 0.5
  %v1192 = vmul.f32 %v1167, 0.5
  %v1193 = vmul.f32 %v1018, 0.5
  %v1194 = vmul.f32 %v1020, 0.5
  %v1195 = vmul.f32 %v1069, 0.5
  %v1196 = vmul.f32 %v1071, 0.5
  %v1197 = vmul.f32 %v1120, 0.5
  %v1198 = vmul.f32 %v1122, 0.5
  %v1199 = vmul.f32 %v1171, 0.5
  %v1200 = vmul.f32 %v1173, 0.5
  %v1201 = vmul.f32 %v1008, 0.70710677
  %v1202 = vmul.f32 %v1010, 0.70710677
  %v1203 = vmul.f32 %v1059, 0.70710677
  %v1204 = vmul.f32 %v1061, 0.70710677
  %v1205 = vmul.f32 %v1110, 0.70710677
  %v1206 = vmul.f32 %v1112, 0.70710677
  %v1207 = vmul.f32 %v1161, 0.70710677
  %v1208 = vmul.f32 %v1163, 0.70710677
  %v1209 = vmul.f32 %v1012, 0.70710677
  %v1210 = vmul.f32 %v1014, 0.70710677
  %v1211 = vmul.f32 %v1063, 0.70710677
  %v1212 = vmul.f32 %v1065, 0.70710677
  %v1213 = vmul.f32 %v1114, 0.70710677
  %v1214 = vmul.f32 %v1116, 0.70710677
  %v1215 = vmul.f32 %v1165, 0.70710677
  %v1216 = vmul.f32 %v1167, 0.70710677
  %v1217 = vmul.f32 %v1018, 0.70710677
  %v1218 = vmul.f32 %v1020, 0.70710677
  %v1219 = vmul.f32 %v1069, 0.70710677
  %v1220 = vmul.f32 %v1071, 0.70710677
  %v1221 = vmul.f32 %v1120, 0.70710677
  %v1222 = vmul.f32 %v1122, 0.70710677
  %v1223 = vmul.f32 %v1171, 0.70710677
  %v1224 = vmul.f32 %v1173, 0.70710677
  %v1225 = verf.f32.pop %v1201
  %v1226 = verf.f32.pop %v1202
  %v1227 = verf.f32.pop %v1203
  %v1228 = verf.f32.pop %v1204
  %v1229 = verf.f32.pop %v1205
  %v1230 = verf.f32.pop %v1206
  %v1231 = verf.f32.pop %v1207
  %v1232 = verf.f32.pop %v1208
  %v1233 = verf.f32.pop %v1209
  %v1234 = verf.f32.pop %v1210
  %v1235 = verf.f32.pop %v1211
  %v1236 = verf.f32.pop %v1212
  %v1237 = verf.f32.pop %v1213
  %v1238 = verf.f32.pop %v1214
  %v1239 = verf.f32.pop %v1215
  %v1240 = verf.f32.pop %v1216
  %v1241 = verf.f32.pop %v1217
  %v1242 = verf.f32.pop %v1218
  %v1243 = verf.f32.pop %v1219
  %v1244 = verf.f32.pop %v1220
  %v1245 = verf.f32.pop %v1221
  %v1246 = verf.f32.pop %v1222
  %v1247 = verf.f32.pop %v1223
  %v1248 = verf.f32.pop %v1224
  %v1249 = vadd.f32 %v1225, 1.0
  %v1250 = vadd.f32 %v1226, 1.0
  %v1251 = vadd.f32 %v1227, 1.0
  %v1252 = vadd.f32 %v1228, 1.0
  %v1253 = vadd.f32 %v1229, 1.0
  %v1254 = vadd.f32 %v1230, 1.0
  %v1255 = vadd.f32 %v1231, 1.0
  %v1256 = vadd.f32 %v1232, 1.0
  %v1257 = vadd.f32 %v1233, 1.0
  %v1258 = vadd.f32 %v1234, 1.0
  %v1259 = vadd.f32 %v1235, 1.0
  %v1260 = vadd.f32 %v1236, 1.0
  %v1261 = vadd.f32 %v1237, 1.0
  %v1262 = vadd.f32 %v1238, 1.0
  %v1263 = vadd.f32 %v1239, 1.0
  %v1264 = vadd.f32 %v1240, 1.0
  %v1265 = vadd.f32 %v1241, 1.0
  %v1266 = vadd.f32 %v1242, 1.0
  %v1267 = vadd.f32 %v1243, 1.0
  %v1268 = vadd.f32 %v1244, 1.0
  %v1269 = vadd.f32 %v1245, 1.0
  %v1270 = vadd.f32 %v1246, 1.0
  %v1271 = vadd.f32 %v1247, 1.0
  %v1272 = vadd.f32 %v1248, 1.0
  %v1273 = vmul.f32 %v1177, %v1249
  %v1274 = vmul.f32 %v1178, %v1250
  %v1275 = vmul.f32 %v1179, %v1251
  %v1276 = vmul.f32 %v1180, %v1252
  %v1277 = vmul.f32 %v1181, %v1253
  %v1278 = vmul.f32 %v1182, %v1254
  %v1279 = vmul.f32 %v1183, %v1255
  %v1280 = vmul.f32 %v1184, %v1256
  %v1281 = vmul.f32 %v1185, %v1257
  %v1282 = vmul.f32 %v1186, %v1258
  %v1283 = vmul.f32 %v1187, %v1259
  %v1284 = vmul.f32 %v1188, %v1260
  %v1285 = vmul.f32 %v1189, %v1261
  %v1286 = vmul.f32 %v1190, %v1262
  %v1287 = vmul.f32 %v1191, %v1263
  %v1288 = vmul.f32 %v1192, %v1264
  %v1289 = vmul.f32 %v1193, %v1265
  %v1290 = vmul.f32 %v1194, %v1266
  %v1291 = vmul.f32 %v1195, %v1267
  %v1292 = vmul.f32 %v1196, %v1268
  %v1293 = vmul.f32 %v1197, %v1269
  %v1294 = vmul.f32 %v1198, %v1270
  %v1295 = vmul.f32 %v1199, %v1271
  %v1296 = vmul.f32 %v1200, %v1272
  %v1297 = vpack.c.bf16 %v1281, %v1273
  %v1298 = vpack.c.bf16 %v1282, %v1274
  %v1299 = vpack.c.bf16 %v1283, %v1275
  %v1300 = vpack.c.bf16 %v1284, %v1276
  %v1301 = vpack.c.bf16 %v1285, %v1277
  %v1302 = vpack.c.bf16 %v1286, %v1278
  %v1303 = vpack.c.bf16 %v1287, %v1279
  %v1304 = vpack.c.bf16 %v1288, %v1280
  %v1305 = vpack.c.bf16 %v1289, %v1289
  %v1306 = vpack.c.bf16 %v1290, %v1290
  %v1307 = vpack.c.bf16 %v1291, %v1291
  %v1308 = vpack.c.bf16 %v1292, %v1292
  %v1309 = vpack.c.bf16 %v1293, %v1293
  %v1310 = vpack.c.bf16 %v1294, %v1294
  %v1311 = vpack.c.bf16 %v1295, %v1295
  %v1312 = vpack.c.bf16 %v1296, %v1296
  %v1329 = vunpack.c.l.b16 %v1297
  %v1330 = vunpack.c.l.b16 %v1298
  %v1331 = vunpack.c.l.b16 %v1299
  %v1332 = vunpack.c.l.b16 %v1300
  %v1333 = vunpack.c.l.b16 %v1301
  %v1334 = vunpack.c.l.b16 %v1302
  %v1335 = vunpack.c.l.b16 %v1303
  %v1336 = vunpack.c.l.b16 %v1304
  %v1337 = vunpack.c.h.b16 %v1297
  %v1338 = vunpack.c.h.b16 %v1298
  %v1339 = vunpack.c.h.b16 %v1299
  %v1340 = vunpack.c.h.b16 %v1300
  %v1341 = vunpack.c.h.b16 %v1301
  %v1342 = vunpack.c.h.b16 %v1302
  %v1343 = vunpack.c.h.b16 %v1303
  %v1344 = vunpack.c.h.b16 %v1304
  %v1345 = vunpack.c.l.b16 %v1305
  %v1346 = vunpack.c.l.b16 %v1306
  %v1347 = vunpack.c.l.b16 %v1307
  %v1348 = vunpack.c.l.b16 %v1308
  %v1349 = vunpack.c.l.b16 %v1309
  %v1350 = vunpack.c.l.b16 %v1310
  %v1351 = vunpack.c.l.b16 %v1311
  %v1352 = vunpack.c.l.b16 %v1312
  %v1353 = vpack.c.b16 %v1330, %v1329
  %v1354 = vpack.c.b16 %v1332, %v1331
  %v1355 = vpack.c.b16 %v1334, %v1333
  %v1356 = vpack.c.b16 %v1336, %v1335
  %v1357 = vpack.c.b16 %v1338, %v1337
  %v1358 = vpack.c.b16 %v1340, %v1339
  %v1359 = vpack.c.b16 %v1342, %v1341
  %v1360 = vpack.c.b16 %v1344, %v1343
  %v1361 = vpack.c.b16 %v1346, %v1345
  %v1362 = vpack.c.b16 %v1348, %v1347
  %v1363 = vpack.c.b16 %v1350, %v1349
  %v1364 = vpack.c.b16 %v1352, %v1351
  %1377 = vst [vmem:[%s5] sm:$0xff] %v1353
  %1378 = vst [vmem:[%s5 + $0x8] sm:$0xff] %v1354
  %1379 = vst [vmem:[%s5 + $0x10] sm:$0xff] %v1355
  %1380 = vst [vmem:[%s5 + $0x18] sm:$0xff] %v1356
  %1381 = vst [vmem:[%s5 + $0x20] sm:$0xff] %v1357
  %1382 = vst [vmem:[%s5 + $0x28] sm:$0xff] %v1358
  %1383 = vst [vmem:[%s5 + $0x30] sm:$0xff] %v1359
  %1384 = vst [vmem:[%s5 + $0x38] sm:$0xff] %v1360
  %1385 = vst [vmem:[%s5 + $0x40] sm:$0x11] %v1361
  %1386 = vst [vmem:[%s5 + $0x48] sm:$0x11] %v1362
  %1387 = vst [vmem:[%s5 + $0x50] sm:$0x11] %v1363
  %1388 = vst [vmem:[%s5 + $0x58] sm:$0x11] %v1364
  // Predicated region
  $region26: #{eeg_transformer_forward.9} parent=0 // pred_check
    _
  $region27: #{eeg_transformer_forward.9} parent=0 // pred_check_branch
    %1390 = sbr.rel (0) target = $region29
  $region28: #{eeg_transformer_forward.9} parent=0 // pred_region
    _
  $region29: #{eeg_transformer_forward.9} parent=0 // pred_fallthru
    _
  // Predicated region
  $region30: #{eeg_transformer_forward.9} parent=0 // pred_check
    _
  $region31: #{eeg_transformer_forward.9} parent=0 // pred_check_branch
    %1392 = sbr.rel (0) target = $region33
  $region32: #{eeg_transformer_forward.9} parent=0 // pred_region
    _
  $region33: #{eeg_transformer_forward.9} parent=0 // pred_fallthru
    _

// kernel: eeg_transformer_forward.11
$region0: #{eeg_transformer_forward.11}
  #allocation0 [shape = 'u32[]', space=smem, size = 0x4, offset = 0x4, fixed_abs, tag = 'smem constant byte address 0x4 - core index']
  #allocation1 [shape = 'u32[144,128]{1,0:T(1,128)}', space=vmem, size = 0x12000, scoped, tag = 'internal scratch']
  %s0 = inlined_call_operand.vmem [shape: bf16[2,256], index: 0, kind: input, shape index: {}]
  %s1 = inlined_call_operand.vmem [shape: bf16[256,128], index: 1, kind: input, shape index: {}]
  %s2 = inlined_call_operand.vmem [shape: f32[1,128], index: 2, kind: input, shape index: {}]
  %s3 = inlined_call_operand.hbm [shape: f32[2,128], index: 3, kind: output, shape index: {}]
  %s4 = sld [smem:[#allocation0]]
  $region22: #{eeg_transformer_forward.11} parent=0
    _
  %s6 = ssub.s32 1, %s4
  %s7 = scalar_select 0, %s6, %s4
  $region1: #{eeg_transformer_forward.11} parent=0
    #allocation2 [shape = 'u8[1024]{0}', space=vmem, size = 0x400, scoped, tag = 'output window, operand 0, single buffered']
    #allocation3 [shape = 's32[1]{0}', space=sflag, size = 0x4, scoped, tag = 'scoped memory for eeg_transformer_forward.11']
    %8 = vsyncpa [#allocation3], 0
    // Predicated region
    $region2: #{eeg_transformer_forward.11} parent=1 // pred_check
      _
    $region3: #{eeg_transformer_forward.11} parent=1 // pred_check_branch
      %10 = sbr.rel (0) target = $region5
    $region4: #{eeg_transformer_forward.11} parent=1 // pred_region
      _
    $region5: #{eeg_transformer_forward.11} parent=1 // pred_fallthru
      _
    // Predicated region
    $region6: #{eeg_transformer_forward.11} parent=1 // pred_check
      _
    $region7: #{eeg_transformer_forward.11} parent=1 // pred_check_branch
      %12 = sbr.rel (0) target = $region9
    $region8: #{eeg_transformer_forward.11} parent=1 // pred_region
      _
    $region9: #{eeg_transformer_forward.11} parent=1 // pred_fallthru
      _
    // Predicated region
    $region10: #{eeg_transformer_forward.11} parent=1 // pred_check
      _
    $region11: #{eeg_transformer_forward.11} parent=1 // pred_check_branch
      %14 = sbr.rel (0) target = $region13
    $region12: #{eeg_transformer_forward.11} parent=1 // pred_region
      _
    $region13: #{eeg_transformer_forward.11} parent=1 // pred_fallthru
      _
    %v16 = vld [vmem:[%s0] sm:$0x3]
    %v17 = vld [vmem:[%s1] sm:$0xf]
    %v18 = vld [vmem:[%s1 + $0x4] sm:$0xf]
    %v19 = vld [vmem:[%s1 + $0x8] sm:$0xf]
    %v20 = vld [vmem:[%s1 + $0xc] sm:$0xf]
    %v21 = vld [vmem:[%s1 + $0x10] sm:$0xf]
    %v22 = vld [vmem:[%s1 + $0x14] sm:$0xf]
    %v23 = vld [vmem:[%s1 + $0x18] sm:$0xf]
    %v24 = vld [vmem:[%s1 + $0x1c] sm:$0xf]
    %v25 = vld [vmem:[%s1 + $0x20] sm:$0xf]
    %v26 = vld [vmem:[%s1 + $0x24] sm:$0xf]
    %v27 = vld [vmem:[%s1 + $0x28] sm:$0xf]
    %v28 = vld [vmem:[%s1 + $0x2c] sm:$0xf]
    %v29 = vld [vmem:[%s1 + $0x30] sm:$0xf]
    %v30 = vld [vmem:[%s1 + $0x34] sm:$0xf]
    %v31 = vld [vmem:[%s1 + $0x38] sm:$0xf]
    %v32 = vld [vmem:[%s1 + $0x3c] sm:$0xf]
    %v33 = vld [vmem:[%s1 + $0x40] sm:$0xf]
    %v34 = vld [vmem:[%s1 + $0x44] sm:$0xf]
    %v35 = vld [vmem:[%s1 + $0x48] sm:$0xf]
    %v36 = vld [vmem:[%s1 + $0x4c] sm:$0xf]
    %v37 = vld [vmem:[%s1 + $0x50] sm:$0xf]
    %v38 = vld [vmem:[%s1 + $0x54] sm:$0xf]
    %v39 = vld [vmem:[%s1 + $0x58] sm:$0xf]
    %v40 = vld [vmem:[%s1 + $0x5c] sm:$0xf]
    %v41 = vld [vmem:[%s1 + $0x60] sm:$0xf]
    %v42 = vld [vmem:[%s1 + $0x64] sm:$0xf]
    %v43 = vld [vmem:[%s1 + $0x68] sm:$0xf]
    %v44 = vld [vmem:[%s1 + $0x6c] sm:$0xf]
    %v45 = vld [vmem:[%s1 + $0x70] sm:$0xf]
    %v46 = vld [vmem:[%s1 + $0x74] sm:$0xf]
    %v47 = vld [vmem:[%s1 + $0x78] sm:$0xf]
    %v48 = vld [vmem:[%s1 + $0x7c] sm:$0xf]
    %v49 = vld [vmem:[%s2] sm:$0x1]
    %v51 = vlaneseq
    %v52 = vshrl.u32 %v51, 7
    %v53 = vsub.s32 0, %v52
    %v54 = vrot.slane %v49, %v53
    %v58 = vunpack.c.l.s4 1966171168
    %v59 = vunpack.c.0.s8 %v58
    %v60 = vlaneseq
    %v61 = vshrl.u32 %v60, 7
    %v62 = vsub.s32 %v59, %v61
    %v63 = vrot.slane %v16, %v62
    %v64 = vcombine.high %v63, %v63
    %v66 = vunpack.c.l.s4 1966171168
    %v67 = vunpack.c.0.s8 %v66
    %v68 = vlaneseq
    %v69 = vshrl.u32 %v68, 7
    %v70 = vsub.s32 %v67, %v69
    %v71 = vrot.slane %v63, %v70
    %v73 = vunpack.c.l.s4 1966171168
    %v74 = vunpack.c.0.s8 %v73
    %v75 = vlaneseq
    %v76 = vshrl.u32 %v75, 7
    %v77 = vsub.s32 %v74, %v76
    %v78 = vrot.slane %v64, %v77
    %v113 = vunpack.c.l.b16 %v17
    %v114 = vunpack.c.l.b16 %v18
    %v115 = vunpack.c.l.b16 %v19
    %v116 = vunpack.c.l.b16 %v20
    %v117 = vunpack.c.l.b16 %v21
    %v118 = vunpack.c.l.b16 %v22
    %v119 = vunpack.c.l.b16 %v23
    %v120 = vunpack.c.l.b16 %v24
    %v121 = vunpack.c.l.b16 %v25
    %v122 = vunpack.c.l.b16 %v26
    %v123 = vunpack.c.l.b16 %v27
    %v124 = vunpack.c.l.b16 %v28
    %v125 = vunpack.c.l.b16 %v29
    %v126 = vunpack.c.l.b16 %v30
    %v127 = vunpack.c.l.b16 %v31
    %v128 = vunpack.c.l.b16 %v32
    %v129 = vunpack.c.l.b16 %v33
    %v130 = vunpack.c.l.b16 %v34
    %v131 = vunpack.c.l.b16 %v35
    %v132 = vunpack.c.l.b16 %v36
    %v133 = vunpack.c.l.b16 %v37
    %v134 = vunpack.c.l.b16 %v38
    %v135 = vunpack.c.l.b16 %v39
    %v136 = vunpack.c.l.b16 %v40
    %v137 = vunpack.c.l.b16 %v41
    %v138 = vunpack.c.l.b16 %v42
    %v139 = vunpack.c.l.b16 %v43
    %v140 = vunpack.c.l.b16 %v44
    %v141 = vunpack.c.l.b16 %v45
    %v142 = vunpack.c.l.b16 %v46
    %v143 = vunpack.c.l.b16 %v47
    %v144 = vunpack.c.l.b16 %v48
    %v145 = vpack.c.b16 %v114, %v113
    %v146 = vpack.c.b16 %v116, %v115
    %v147 = vpack.c.b16 %v118, %v117
    %v148 = vpack.c.b16 %v120, %v119
    %v149 = vpack.c.b16 %v122, %v121
    %v150 = vpack.c.b16 %v124, %v123
    %v151 = vpack.c.b16 %v126, %v125
    %v152 = vpack.c.b16 %v128, %v127
    %v153 = vpack.c.b16 %v130, %v129
    %v154 = vpack.c.b16 %v132, %v131
    %v155 = vpack.c.b16 %v134, %v133
    %v156 = vpack.c.b16 %v136, %v135
    %v157 = vpack.c.b16 %v138, %v137
    %v158 = vpack.c.b16 %v140, %v139
    %v159 = vpack.c.b16 %v142, %v141
    %v160 = vpack.c.b16 %v144, %v143
    %177 = vmatprep.subr.bf16.mxu0 0
    %178 = vmatpush1.bf16.msra.mxu0 %v152
    %179 = vmatprep.subr.bf16.mxu0 0
    %180 = vmatpush1.bf16.msra.mxu0 %v151
    %181 = vmatprep.subr.bf16.mxu0 0
    %182 = vmatpush1.bf16.msra.mxu0 %v150
    %183 = vmatprep.subr.bf16.mxu0 0
    %184 = vmatpush1.bf16.msra.mxu0 %v149
    %185 = vmatprep.subr.bf16.mxu0 0
    %186 = vmatpush1.bf16.msra.mxu0 %v148
    %187 = vmatprep.subr.bf16.mxu0 0
    %188 = vmatpush1.bf16.msra.mxu0 %v147
    %189 = vmatprep.subr.bf16.mxu0 0
    %190 = vmatpush1.bf16.msra.mxu0 %v146
    %191 = vmatprep.subr.bf16.mxu0 0
    %192 = vmatpush1.bf16.msra.mxu0 %v145
    %193 = vmatprep.subr.bf16.mxu0 0
    %194 = vmatpush2.bf16.msra.mxu0 %v160
    %195 = vmatprep.subr.bf16.mxu0 0
    %196 = vmatpush2.bf16.msra.mxu0 %v159
    %197 = vmatprep.subr.bf16.mxu0 0
    %198 = vmatpush2.bf16.msra.mxu0 %v158
    %199 = vmatprep.subr.bf16.mxu0 0
    %200 = vmatpush2.bf16.msra.mxu0 %v157
    %201 = vmatprep.subr.bf16.mxu0 0
    %202 = vmatpush2.bf16.msra.mxu0 %v156
    %203 = vmatprep.subr.bf16.mxu0 0
    %204 = vmatpush2.bf16.msra.mxu0 %v155
    %205 = vmatprep.subr.bf16.mxu0 0
    %206 = vmatpush2.bf16.msra.mxu0 %v154
    %207 = vmatprep.subr.bf16.mxu0 0
    %208 = vmatpush2.bf16.msra.mxu0 %v153
    %209 = vmatprep.mubr.bf16.mxu0 %v78
    %210 = vmatmul.mubr.bf16.gmra.mxu0 %v71
    %v211 = vpop.f32.mrf.mxu0
    %v212 = vadd.f32 %v54, %v211
    %v213 = vpop.f32.mrf.mxu0
    %v214 = vpop.f32.mrf.mxu0
    %v215 = vpop.f32.mrf.mxu0
    %216 = vdwg.mxu0
    %217 = vst [vmem:[#allocation2] sm:$0x3] %v212
    // Predicated region
    $region14: #{eeg_transformer_forward.11} parent=1 // pred_check
      _
    $region15: #{eeg_transformer_forward.11} parent=1 // pred_check_branch
      %219 = sbr.rel (0) target = $region17
    $region16: #{eeg_transformer_forward.11} parent=1 // pred_region
      %s221 = ssub.s32 32, 32
      %222 = vsyncadd [#allocation3], %s221
      %s224 = sshll.u32 [#allocation2], 4
      %s225 = int_to_ptr.vmem [resolvable:$true] %s224
      %227 = dma.vmem_to_hbm [thread:$0]  %s225, 32, %s3, [#allocation3]
    $region17: #{eeg_transformer_forward.11} parent=1 // pred_fallthru
      _
    // Predicated region
    $region18: #{eeg_transformer_forward.11} parent=1 // pred_check
      _
    $region19: #{eeg_transformer_forward.11} parent=1 // pred_check_branch
      %229 = sbr.rel (0) target = $region21
    $region20: #{eeg_transformer_forward.11} parent=1 // pred_region
      %230 = dma.done [#allocation3], 32
    $region21: #{eeg_transformer_forward.11} parent=1 // pred_fallthru
      _
    %231 = vsyncpa [#allocation3], 1

// kernel: eeg_transformer_forward.10
$region0: #{eeg_transformer_forward.10}
  #allocation0 [shape = 'u32[]', space=smem, size = 0x4, offset = 0x4, fixed_abs, tag = 'smem constant byte address 0x4 - core index']
  #allocation1 [shape = 'u32[144,128]{1,0:T(1,128)}', space=vmem, size = 0x12000, scoped, tag = 'internal scratch']
  %s0 = inlined_call_operand.vmem [shape: bf16[18,1024], index: 0, kind: input, shape index: {}]
  %s1 = inlined_call_operand.vmem [shape: bf16[1024,256], index: 1, kind: input, shape index: {}]
  %s2 = inlined_call_operand.vmem [shape: f32[1,256], index: 2, kind: input, shape index: {}]
  %s3 = inlined_call_operand.vmem [shape: f32[18,256], index: 3, kind: input, shape index: {}]
  %s4 = inlined_call_operand.vmem [shape: f32[18,256], index: 4, kind: output, shape index: {}]
  %s5 = sld [smem:[#allocation0]]
  $region26: #{eeg_transformer_forward.10} parent=0
    _
  %s7 = ssub.s32 1, %s5
  %s8 = scalar_select 0, %s7, %s5
  // Predicated region
  $region2: #{eeg_transformer_forward.10} parent=0 // pred_check
    _
  $region3: #{eeg_transformer_forward.10} parent=0 // pred_check_branch
    %10 = sbr.rel (0) target = $region5
  $region4: #{eeg_transformer_forward.10} parent=0 // pred_region
    _
  $region5: #{eeg_transformer_forward.10} parent=0 // pred_fallthru
    _
  // Predicated region
  $region6: #{eeg_transformer_forward.10} parent=0 // pred_check
    _
  $region7: #{eeg_transformer_forward.10} parent=0 // pred_check_branch
    %12 = sbr.rel (0) target = $region9
  $region8: #{eeg_transformer_forward.10} parent=0 // pred_region
    _
  $region9: #{eeg_transformer_forward.10} parent=0 // pred_fallthru
    _
  // Predicated region
  $region10: #{eeg_transformer_forward.10} parent=0 // pred_check
    _
  $region11: #{eeg_transformer_forward.10} parent=0 // pred_check_branch
    %14 = sbr.rel (0) target = $region13
  $region12: #{eeg_transformer_forward.10} parent=0 // pred_region
    _
  $region13: #{eeg_transformer_forward.10} parent=0 // pred_fallthru
    _
  // Predicated region
  $region14: #{eeg_transformer_forward.10} parent=0 // pred_check
    _
  $region15: #{eeg_transformer_forward.10} parent=0 // pred_check_branch
    %16 = sbr.rel (0) target = $region17
  $region16: #{eeg_transformer_forward.10} parent=0 // pred_region
    _
  $region17: #{eeg_transformer_forward.10} parent=0 // pred_fallthru
    _
  %v17 = vld [vmem:[%s0] sm:$0xff]
  %v18 = vld [vmem:[%s0 + $0x8] sm:$0xff]
  %v19 = vld [vmem:[%s0 + $0x10] sm:$0xff]
  %v20 = vld [vmem:[%s0 + $0x18] sm:$0xff]
  %v21 = vld [vmem:[%s0 + $0x20] sm:$0xff]
  %v22 = vld [vmem:[%s0 + $0x28] sm:$0xff]
  %v23 = vld [vmem:[%s0 + $0x30] sm:$0xff]
  %v24 = vld [vmem:[%s0 + $0x38] sm:$0xff]
  %v25 = vld [vmem:[%s0 + $0x40] sm:$0x11]
  %v26 = vld [vmem:[%s0 + $0x48] sm:$0x11]
  %v27 = vld [vmem:[%s0 + $0x50] sm:$0x11]
  %v28 = vld [vmem:[%s0 + $0x58] sm:$0x11]
  %v29 = vld [vmem:[%s1] sm:$0xff]
  %v30 = vld [vmem:[%s1 + $0x8] sm:$0xff]
  %v31 = vld [vmem:[%s1 + $0x10] sm:$0xff]
  %v32 = vld [vmem:[%s1 + $0x18] sm:$0xff]
  %v33 = vld [vmem:[%s1 + $0x20] sm:$0xff]
  %v34 = vld [vmem:[%s1 + $0x28] sm:$0xff]
  %v35 = vld [vmem:[%s1 + $0x30] sm:$0xff]
  %v36 = vld [vmem:[%s1 + $0x38] sm:$0xff]
  %v37 = vld [vmem:[%s1 + $0x40] sm:$0xff]
  %v38 = vld [vmem:[%s1 + $0x48] sm:$0xff]
  %v39 = vld [vmem:[%s1 + $0x50] sm:$0xff]
  %v40 = vld [vmem:[%s1 + $0x58] sm:$0xff]
  %v41 = vld [vmem:[%s1 + $0x60] sm:$0xff]
  %v42 = vld [vmem:[%s1 + $0x68] sm:$0xff]
  %v43 = vld [vmem:[%s1 + $0x70] sm:$0xff]
  %v44 = vld [vmem:[%s1 + $0x78] sm:$0xff]
  %v45 = vld [vmem:[%s1 + $0x80] sm:$0xff]
  %v46 = vld [vmem:[%s1 + $0x88] sm:$0xff]
  %v47 = vld [vmem:[%s1 + $0x90] sm:$0xff]
  %v48 = vld [vmem:[%s1 + $0x98] sm:$0xff]
  %v49 = vld [vmem:[%s1 + $0xa0] sm:$0xff]
  %v50 = vld [vmem:[%s1 + $0xa8] sm:$0xff]
  %v51 = vld [vmem:[%s1 + $0xb0] sm:$0xff]
  %v52 = vld [vmem:[%s1 + $0xb8] sm:$0xff]
  %v53 = vld [vmem:[%s1 + $0xc0] sm:$0xff]
  %v54 = vld [vmem:[%s1 + $0xc8] sm:$0xff]
  %v55 = vld [vmem:[%s1 + $0xd0] sm:$0xff]
  %v56 = vld [vmem:[%s1 + $0xd8] sm:$0xff]
  %v57 = vld [vmem:[%s1 + $0xe0] sm:$0xff]
  %v58 = vld [vmem:[%s1 + $0xe8] sm:$0xff]
  %v59 = vld [vmem:[%s1 + $0xf0] sm:$0xff]
  %v60 = vld [vmem:[%s1 + $0xf8] sm:$0xff]
  %v61 = vld [vmem:[%s1 + $0x100] sm:$0xff]
  %v62 = vld [vmem:[%s1 + $0x108] sm:$0xff]
  %v63 = vld [vmem:[%s1 + $0x110] sm:$0xff]
  %v64 = vld [vmem:[%s1 + $0x118] sm:$0xff]
  %v65 = vld [vmem:[%s1 + $0x120] sm:$0xff]
  %v66 = vld [vmem:[%s1 + $0x128] sm:$0xff]
  %v67 = vld [vmem:[%s1 + $0x130] sm:$0xff]
  %v68 = vld [vmem:[%s1 + $0x138] sm:$0xff]
  %v69 = vld [vmem:[%s1 + $0x140] sm:$0xff]
  %v70 = vld [vmem:[%s1 + $0x148] sm:$0xff]
  %v71 = vld [vmem:[%s1 + $0x150] sm:$0xff]
  %v72 = vld [vmem:[%s1 + $0x158] sm:$0xff]
  %v73 = vld [vmem:[%s1 + $0x160] sm:$0xff]
  %v74 = vld [vmem:[%s1 + $0x168] sm:$0xff]
  %v75 = vld [vmem:[%s1 + $0x170] sm:$0xff]
  %v76 = vld [vmem:[%s1 + $0x178] sm:$0xff]
  %v77 = vld [vmem:[%s1 + $0x180] sm:$0xff]
  %v78 = vld [vmem:[%s1 + $0x188] sm:$0xff]
  %v79 = vld [vmem:[%s1 + $0x190] sm:$0xff]
  %v80 = vld [vmem:[%s1 + $0x198] sm:$0xff]
  %v81 = vld [vmem:[%s1 + $0x1a0] sm:$0xff]
  %v82 = vld [vmem:[%s1 + $0x1a8] sm:$0xff]
  %v83 = vld [vmem:[%s1 + $0x1b0] sm:$0xff]
  %v84 = vld [vmem:[%s1 + $0x1b8] sm:$0xff]
  %v85 = vld [vmem:[%s1 + $0x1c0] sm:$0xff]
  %v86 = vld [vmem:[%s1 + $0x1c8] sm:$0xff]
  %v87 = vld [vmem:[%s1 + $0x1d0] sm:$0xff]
  %v88 = vld [vmem:[%s1 + $0x1d8] sm:$0xff]
  %v89 = vld [vmem:[%s1 + $0x1e0] sm:$0xff]
  %v90 = vld [vmem:[%s1 + $0x1e8] sm:$0xff]
  %v91 = vld [vmem:[%s1 + $0x1f0] sm:$0xff]
  %v92 = vld [vmem:[%s1 + $0x1f8] sm:$0xff]
  %v93 = vld [vmem:[%s1 + $0x200] sm:$0xff]
  %v94 = vld [vmem:[%s1 + $0x208] sm:$0xff]
  %v95 = vld [vmem:[%s1 + $0x210] sm:$0xff]
  %v96 = vld [vmem:[%s1 + $0x218] sm:$0xff]
  %v97 = vld [vmem:[%s1 + $0x220] sm:$0xff]
  %v98 = vld [vmem:[%s1 + $0x228] sm:$0xff]
  %v99 = vld [vmem:[%s1 + $0x230] sm:$0xff]
  %v100 = vld [vmem:[%s1 + $0x238] sm:$0xff]
  %v101 = vld [vmem:[%s1 + $0x240] sm:$0xff]
  %v102 = vld [vmem:[%s1 + $0x248] sm:$0xff]
  %v103 = vld [vmem:[%s1 + $0x250] sm:$0xff]
  %v104 = vld [vmem:[%s1 + $0x258] sm:$0xff]
  %v105 = vld [vmem:[%s1 + $0x260] sm:$0xff]
  %v106 = vld [vmem:[%s1 + $0x268] sm:$0xff]
  %v107 = vld [vmem:[%s1 + $0x270] sm:$0xff]
  %v108 = vld [vmem:[%s1 + $0x278] sm:$0xff]
  %v109 = vld [vmem:[%s1 + $0x280] sm:$0xff]
  %v110 = vld [vmem:[%s1 + $0x288] sm:$0xff]
  %v111 = vld [vmem:[%s1 + $0x290] sm:$0xff]
  %v112 = vld [vmem:[%s1 + $0x298] sm:$0xff]
  %v113 = vld [vmem:[%s1 + $0x2a0] sm:$0xff]
  %v114 = vld [vmem:[%s1 + $0x2a8] sm:$0xff]
  %v115 = vld [vmem:[%s1 + $0x2b0] sm:$0xff]
  %v116 = vld [vmem:[%s1 + $0x2b8] sm:$0xff]
  %v117 = vld [vmem:[%s1 + $0x2c0] sm:$0xff]
  %v118 = vld [vmem:[%s1 + $0x2c8] sm:$0xff]
  %v119 = vld [vmem:[%s1 + $0x2d0] sm:$0xff]
  %v120 = vld [vmem:[%s1 + $0x2d8] sm:$0xff]
  %v121 = vld [vmem:[%s1 + $0x2e0] sm:$0xff]
  %v122 = vld [vmem:[%s1 + $0x2e8] sm:$0xff]
  %v123 = vld [vmem:[%s1 + $0x2f0] sm:$0xff]
  %v124 = vld [vmem:[%s1 + $0x2f8] sm:$0xff]
  %v125 = vld [vmem:[%s1 + $0x300] sm:$0xff]
  %v126 = vld [vmem:[%s1 + $0x308] sm:$0xff]
  %v127 = vld [vmem:[%s1 + $0x310] sm:$0xff]
  %v128 = vld [vmem:[%s1 + $0x318] sm:$0xff]
  %v129 = vld [vmem:[%s1 + $0x320] sm:$0xff]
  %v130 = vld [vmem:[%s1 + $0x328] sm:$0xff]
  %v131 = vld [vmem:[%s1 + $0x330] sm:$0xff]
  %v132 = vld [vmem:[%s1 + $0x338] sm:$0xff]
  %v133 = vld [vmem:[%s1 + $0x340] sm:$0xff]
  %v134 = vld [vmem:[%s1 + $0x348] sm:$0xff]
  %v135 = vld [vmem:[%s1 + $0x350] sm:$0xff]
  %v136 = vld [vmem:[%s1 + $0x358] sm:$0xff]
  %v137 = vld [vmem:[%s1 + $0x360] sm:$0xff]
  %v138 = vld [vmem:[%s1 + $0x368] sm:$0xff]
  %v139 = vld [vmem:[%s1 + $0x370] sm:$0xff]
  %v140 = vld [vmem:[%s1 + $0x378] sm:$0xff]
  %v141 = vld [vmem:[%s1 + $0x380] sm:$0xff]
  %v142 = vld [vmem:[%s1 + $0x388] sm:$0xff]
  %v143 = vld [vmem:[%s1 + $0x390] sm:$0xff]
  %v144 = vld [vmem:[%s1 + $0x398] sm:$0xff]
  %v145 = vld [vmem:[%s1 + $0x3a0] sm:$0xff]
  %v146 = vld [vmem:[%s1 + $0x3a8] sm:$0xff]
  %v147 = vld [vmem:[%s1 + $0x3b0] sm:$0xff]
  %v148 = vld [vmem:[%s1 + $0x3b8] sm:$0xff]
  %v149 = vld [vmem:[%s1 + $0x3c0] sm:$0xff]
  %v150 = vld [vmem:[%s1 + $0x3c8] sm:$0xff]
  %v151 = vld [vmem:[%s1 + $0x3d0] sm:$0xff]
  %v152 = vld [vmem:[%s1 + $0x3d8] sm:$0xff]
  %v153 = vld [vmem:[%s1 + $0x3e0] sm:$0xff]
  %v154 = vld [vmem:[%s1 + $0x3e8] sm:$0xff]
  %v155 = vld [vmem:[%s1 + $0x3f0] sm:$0xff]
  %v156 = vld [vmem:[%s1 + $0x3f8] sm:$0xff]
  %v157 = vld [vmem:[%s2] sm:$0x3]
  %v159 = vlaneseq
  %v160 = vshrl.u32 %v159, 7
  %v161 = vsub.s32 0, %v160
  %v162 = vrot.slane %v157, %v161
  %v163 = vlaneseq
  %v164 = vshrl.u32 %v163, 7
  %v165 = vsub.s32 1, %v164
  %v166 = vrot.slane %v157, %v165
  %v181 = vunpack.c.l.b16 %v17
  %v182 = vunpack.c.h.b16 %v17
  %v183 = vunpack.c.l.b16 %v18
  %v184 = vunpack.c.h.b16 %v18
  %v185 = vunpack.c.l.b16 %v19
  %v186 = vunpack.c.h.b16 %v19
  %v187 = vunpack.c.l.b16 %v20
  %v188 = vunpack.c.h.b16 %v20
  %v189 = vunpack.c.l.b16 %v21
  %v190 = vunpack.c.h.b16 %v21
  %v191 = vunpack.c.l.b16 %v22
  %v192 = vunpack.c.h.b16 %v22
  %v193 = vunpack.c.l.b16 %v23
  %v194 = vunpack.c.h.b16 %v23
  %v195 = vunpack.c.l.b16 %v24
  %v196 = vunpack.c.h.b16 %v24
  %v197 = vunpack.c.l.b16 %v25
  %v198 = vunpack.c.h.b16 %v25
  %v199 = vunpack.c.l.b16 %v26
  %v200 = vunpack.c.h.b16 %v26
  %v201 = vunpack.c.l.b16 %v27
  %v202 = vunpack.c.h.b16 %v27
  %v203 = vunpack.c.l.b16 %v28
  %v204 = vunpack.c.h.b16 %v28
  %v205 = vpack.c.b16 %v189, %v181
  %v206 = vpack.c.b16 %v190, %v182
  %v207 = vpack.c.b16 %v191, %v183
  %v208 = vpack.c.b16 %v192, %v184
  %v209 = vpack.c.b16 %v193, %v185
  %v210 = vpack.c.b16 %v194, %v186
  %v211 = vpack.c.b16 %v195, %v187
  %v212 = vpack.c.b16 %v196, %v188
  %v213 = vpack.c.b16 %v197, %v197
  %v214 = vpack.c.b16 %v198, %v198
  %v215 = vpack.c.b16 %v199, %v199
  %v216 = vpack.c.b16 %v200, %v200
  %v217 = vpack.c.b16 %v201, %v201
  %v218 = vpack.c.b16 %v202, %v202
  %v219 = vpack.c.b16 %v203, %v203
  %v220 = vpack.c.b16 %v204, %v204
  %v365 = vunpack.c.l.b16 %v29
  %v366 = vunpack.c.h.b16 %v29
  %v367 = vunpack.c.l.b16 %v30
  %v368 = vunpack.c.h.b16 %v30
  %v369 = vunpack.c.l.b16 %v31
  %v370 = vunpack.c.h.b16 %v31
  %v371 = vunpack.c.l.b16 %v32
  %v372 = vunpack.c.h.b16 %v32
  %v373 = vunpack.c.l.b16 %v33
  %v374 = vunpack.c.h.b16 %v33
  %v375 = vunpack.c.l.b16 %v34
  %v376 = vunpack.c.h.b16 %v34
  %v377 = vunpack.c.l.b16 %v35
  %v378 = vunpack.c.h.b16 %v35
  %v379 = vunpack.c.l.b16 %v36
  %v380 = vunpack.c.h.b16 %v36
  %v381 = vunpack.c.l.b16 %v37
  %v382 = vunpack.c.h.b16 %v37
  %v383 = vunpack.c.l.b16 %v38
  %v384 = vunpack.c.h.b16 %v38
  %v385 = vunpack.c.l.b16 %v39
  %v386 = vunpack.c.h.b16 %v39
  %v387 = vunpack.c.l.b16 %v40
  %v388 = vunpack.c.h.b16 %v40
  %v389 = vunpack.c.l.b16 %v41
  %v390 = vunpack.c.h.b16 %v41
  %v391 = vunpack.c.l.b16 %v42
  %v392 = vunpack.c.h.b16 %v42
  %v393 = vunpack.c.l.b16 %v43
  %v394 = vunpack.c.h.b16 %v43
  %v395 = vunpack.c.l.b16 %v44
  %v396 = vunpack.c.h.b16 %v44
  %v397 = vunpack.c.l.b16 %v45
  %v398 = vunpack.c.h.b16 %v45
  %v399 = vunpack.c.l.b16 %v46
  %v400 = vunpack.c.h.b16 %v46
  %v401 = vunpack.c.l.b16 %v47
  %v402 = vunpack.c.h.b16 %v47
  %v403 = vunpack.c.l.b16 %v48
  %v404 = vunpack.c.h.b16 %v48
  %v405 = vunpack.c.l.b16 %v49
  %v406 = vunpack.c.h.b16 %v49
  %v407 = vunpack.c.l.b16 %v50
  %v408 = vunpack.c.h.b16 %v50
  %v409 = vunpack.c.l.b16 %v51
  %v410 = vunpack.c.h.b16 %v51
  %v411 = vunpack.c.l.b16 %v52
  %v412 = vunpack.c.h.b16 %v52
  %v413 = vunpack.c.l.b16 %v53
  %v414 = vunpack.c.h.b16 %v53
  %v415 = vunpack.c.l.b16 %v54
  %v416 = vunpack.c.h.b16 %v54
  %v417 = vunpack.c.l.b16 %v55
  %v418 = vunpack.c.h.b16 %v55
  %v419 = vunpack.c.l.b16 %v56
  %v420 = vunpack.c.h.b16 %v56
  %v421 = vunpack.c.l.b16 %v57
  %v422 = vunpack.c.h.b16 %v57
  %v423 = vunpack.c.l.b16 %v58
  %v424 = vunpack.c.h.b16 %v58
  %v425 = vunpack.c.l.b16 %v59
  %v426 = vunpack.c.h.b16 %v59
  %v427 = vunpack.c.l.b16 %v60
  %v428 = vunpack.c.h.b16 %v60
  %v429 = vunpack.c.l.b16 %v61
  %v430 = vunpack.c.h.b16 %v61
  %v431 = vunpack.c.l.b16 %v62
  %v432 = vunpack.c.h.b16 %v62
  %v433 = vunpack.c.l.b16 %v63
  %v434 = vunpack.c.h.b16 %v63
  %v435 = vunpack.c.l.b16 %v64
  %v436 = vunpack.c.h.b16 %v64
  %v437 = vunpack.c.l.b16 %v65
  %v438 = vunpack.c.h.b16 %v65
  %v439 = vunpack.c.l.b16 %v66
  %v440 = vunpack.c.h.b16 %v66
  %v441 = vunpack.c.l.b16 %v67
  %v442 = vunpack.c.h.b16 %v67
  %v443 = vunpack.c.l.b16 %v68
  %v444 = vunpack.c.h.b16 %v68
  %v445 = vunpack.c.l.b16 %v69
  %v446 = vunpack.c.h.b16 %v69
  %v447 = vunpack.c.l.b16 %v70
  %v448 = vunpack.c.h.b16 %v70
  %v449 = vunpack.c.l.b16 %v71
  %v450 = vunpack.c.h.b16 %v71
  %v451 = vunpack.c.l.b16 %v72
  %v452 = vunpack.c.h.b16 %v72
  %v453 = vunpack.c.l.b16 %v73
  %v454 = vunpack.c.h.b16 %v73
  %v455 = vunpack.c.l.b16 %v74
  %v456 = vunpack.c.h.b16 %v74
  %v457 = vunpack.c.l.b16 %v75
  %v458 = vunpack.c.h.b16 %v75
  %v459 = vunpack.c.l.b16 %v76
  %v460 = vunpack.c.h.b16 %v76
  %v461 = vunpack.c.l.b16 %v77
  %v462 = vunpack.c.h.b16 %v77
  %v463 = vunpack.c.l.b16 %v78
  %v464 = vunpack.c.h.b16 %v78
  %v465 = vunpack.c.l.b16 %v79
  %v466 = vunpack.c.h.b16 %v79
  %v467 = vunpack.c.l.b16 %v80
  %v468 = vunpack.c.h.b16 %v80
  %v469 = vunpack.c.l.b16 %v81
  %v470 = vunpack.c.h.b16 %v81
  %v471 = vunpack.c.l.b16 %v82
  %v472 = vunpack.c.h.b16 %v82
  %v473 = vunpack.c.l.b16 %v83
  %v474 = vunpack.c.h.b16 %v83
  %v475 = vunpack.c.l.b16 %v84
  %v476 = vunpack.c.h.b16 %v84
  %v477 = vunpack.c.l.b16 %v85
  %v478 = vunpack.c.h.b16 %v85
  %v479 = vunpack.c.l.b16 %v86
  %v480 = vunpack.c.h.b16 %v86
  %v481 = vunpack.c.l.b16 %v87
  %v482 = vunpack.c.h.b16 %v87
  %v483 = vunpack.c.l.b16 %v88
  %v484 = vunpack.c.h.b16 %v88
  %v485 = vunpack.c.l.b16 %v89
  %v486 = vunpack.c.h.b16 %v89
  %v487 = vunpack.c.l.b16 %v90
  %v488 = vunpack.c.h.b16 %v90
  %v489 = vunpack.c.l.b16 %v91
  %v490 = vunpack.c.h.b16 %v91
  %v491 = vunpack.c.l.b16 %v92
  %v492 = vunpack.c.h.b16 %v92
  %v493 = vunpack.c.l.b16 %v93
  %v494 = vunpack.c.h.b16 %v93
  %v495 = vunpack.c.l.b16 %v94
  %v496 = vunpack.c.h.b16 %v94
  %v497 = vunpack.c.l.b16 %v95
  %v498 = vunpack.c.h.b16 %v95
  %v499 = vunpack.c.l.b16 %v96
  %v500 = vunpack.c.h.b16 %v96
  %v501 = vunpack.c.l.b16 %v97
  %v502 = vunpack.c.h.b16 %v97
  %v503 = vunpack.c.l.b16 %v98
  %v504 = vunpack.c.h.b16 %v98
  %v505 = vunpack.c.l.b16 %v99
  %v506 = vunpack.c.h.b16 %v99
  %v507 = vunpack.c.l.b16 %v100
  %v508 = vunpack.c.h.b16 %v100
  %v509 = vunpack.c.l.b16 %v101
  %v510 = vunpack.c.h.b16 %v101
  %v511 = vunpack.c.l.b16 %v102
  %v512 = vunpack.c.h.b16 %v102
  %v513 = vunpack.c.l.b16 %v103
  %v514 = vunpack.c.h.b16 %v103
  %v515 = vunpack.c.l.b16 %v104
  %v516 = vunpack.c.h.b16 %v104
  %v517 = vunpack.c.l.b16 %v105
  %v518 = vunpack.c.h.b16 %v105
  %v519 = vunpack.c.l.b16 %v106
  %v520 = vunpack.c.h.b16 %v106
  %v521 = vunpack.c.l.b16 %v107
  %v522 = vunpack.c.h.b16 %v107
  %v523 = vunpack.c.l.b16 %v108
  %v524 = vunpack.c.h.b16 %v108
  %v525 = vunpack.c.l.b16 %v109
  %v526 = vunpack.c.h.b16 %v109
  %v527 = vunpack.c.l.b16 %v110
  %v528 = vunpack.c.h.b16 %v110
  %v529 = vunpack.c.l.b16 %v111
  %v530 = vunpack.c.h.b16 %v111
  %v531 = vunpack.c.l.b16 %v112
  %v532 = vunpack.c.h.b16 %v112
  %v533 = vunpack.c.l.b16 %v113
  %v534 = vunpack.c.h.b16 %v113
  %v535 = vunpack.c.l.b16 %v114
  %v536 = vunpack.c.h.b16 %v114
  %v537 = vunpack.c.l.b16 %v115
  %v538 = vunpack.c.h.b16 %v115
  %v539 = vunpack.c.l.b16 %v116
  %v540 = vunpack.c.h.b16 %v116
  %v541 = vunpack.c.l.b16 %v117
  %v542 = vunpack.c.h.b16 %v117
  %v543 = vunpack.c.l.b16 %v118
  %v544 = vunpack.c.h.b16 %v118
  %v545 = vunpack.c.l.b16 %v119
  %v546 = vunpack.c.h.b16 %v119
  %v547 = vunpack.c.l.b16 %v120
  %v548 = vunpack.c.h.b16 %v120
  %v549 = vunpack.c.l.b16 %v121
  %v550 = vunpack.c.h.b16 %v121
  %v551 = vunpack.c.l.b16 %v122
  %v552 = vunpack.c.h.b16 %v122
  %v553 = vunpack.c.l.b16 %v123
  %v554 = vunpack.c.h.b16 %v123
  %v555 = vunpack.c.l.b16 %v124
  %v556 = vunpack.c.h.b16 %v124
  %v557 = vunpack.c.l.b16 %v125
  %v558 = vunpack.c.h.b16 %v125
  %v559 = vunpack.c.l.b16 %v126
  %v560 = vunpack.c.h.b16 %v126
  %v561 = vunpack.c.l.b16 %v127
  %v562 = vunpack.c.h.b16 %v127
  %v563 = vunpack.c.l.b16 %v128
  %v564 = vunpack.c.h.b16 %v128
  %v565 = vunpack.c.l.b16 %v129
  %v566 = vunpack.c.h.b16 %v129
  %v567 = vunpack.c.l.b16 %v130
  %v568 = vunpack.c.h.b16 %v130
  %v569 = vunpack.c.l.b16 %v131
  %v570 = vunpack.c.h.b16 %v131
  %v571 = vunpack.c.l.b16 %v132
  %v572 = vunpack.c.h.b16 %v132
  %v573 = vunpack.c.l.b16 %v133
  %v574 = vunpack.c.h.b16 %v133
  %v575 = vunpack.c.l.b16 %v134
  %v576 = vunpack.c.h.b16 %v134
  %v577 = vunpack.c.l.b16 %v135
  %v578 = vunpack.c.h.b16 %v135
  %v579 = vunpack.c.l.b16 %v136
  %v580 = vunpack.c.h.b16 %v136
  %v581 = vunpack.c.l.b16 %v137
  %v582 = vunpack.c.h.b16 %v137
  %v583 = vunpack.c.l.b16 %v138
  %v584 = vunpack.c.h.b16 %v138
  %v585 = vunpack.c.l.b16 %v139
  %v586 = vunpack.c.h.b16 %v139
  %v587 = vunpack.c.l.b16 %v140
  %v588 = vunpack.c.h.b16 %v140
  %v589 = vunpack.c.l.b16 %v141
  %v590 = vunpack.c.h.b16 %v141
  %v591 = vunpack.c.l.b16 %v142
  %v592 = vunpack.c.h.b16 %v142
  %v593 = vunpack.c.l.b16 %v143
  %v594 = vunpack.c.h.b16 %v143
  %v595 = vunpack.c.l.b16 %v144
  %v596 = vunpack.c.h.b16 %v144
  %v597 = vunpack.c.l.b16 %v145
  %v598 = vunpack.c.h.b16 %v145
  %v599 = vunpack.c.l.b16 %v146
  %v600 = vunpack.c.h.b16 %v146
  %v601 = vunpack.c.l.b16 %v147
  %v602 = vunpack.c.h.b16 %v147
  %v603 = vunpack.c.l.b16 %v148
  %v604 = vunpack.c.h.b16 %v148
  %v605 = vunpack.c.l.b16 %v149
  %v606 = vunpack.c.h.b16 %v149
  %v607 = vunpack.c.l.b16 %v150
  %v608 = vunpack.c.h.b16 %v150
  %v609 = vunpack.c.l.b16 %v151
  %v610 = vunpack.c.h.b16 %v151
  %v611 = vunpack.c.l.b16 %v152
  %v612 = vunpack.c.h.b16 %v152
  %v613 = vunpack.c.l.b16 %v153
  %v614 = vunpack.c.h.b16 %v153
  %v615 = vunpack.c.l.b16 %v154
  %v616 = vunpack.c.h.b16 %v154
  %v617 = vunpack.c.l.b16 %v155
  %v618 = vunpack.c.h.b16 %v155
  %v619 = vunpack.c.l.b16 %v156
  %v620 = vunpack.c.h.b16 %v156
  %v621 = vpack.c.b16 %v367, %v365
  %v622 = vpack.c.b16 %v368, %v366
  %v623 = vpack.c.b16 %v371, %v369
  %v624 = vpack.c.b16 %v372, %v370
  %v625 = vpack.c.b16 %v375, %v373
  %v626 = vpack.c.b16 %v376, %v374
  %v627 = vpack.c.b16 %v379, %v377
  %v628 = vpack.c.b16 %v380, %v378
  %v629 = vpack.c.b16 %v383, %v381
  %v630 = vpack.c.b16 %v384, %v382
  %v631 = vpack.c.b16 %v387, %v385
  %v632 = vpack.c.b16 %v388, %v386
  %v633 = vpack.c.b16 %v391, %v389
  %v634 = vpack.c.b16 %v392, %v390
  %v635 = vpack.c.b16 %v395, %v393
  %v636 = vpack.c.b16 %v396, %v394
  %v637 = vpack.c.b16 %v399, %v397
  %v638 = vpack.c.b16 %v400, %v398
  %v639 = vpack.c.b16 %v403, %v401
  %v640 = vpack.c.b16 %v404, %v402
  %v641 = vpack.c.b16 %v407, %v405
  %v642 = vpack.c.b16 %v408, %v406
  %v643 = vpack.c.b16 %v411, %v409
  %v644 = vpack.c.b16 %v412, %v410
  %v645 = vpack.c.b16 %v415, %v413
  %v646 = vpack.c.b16 %v416, %v414
  %v647 = vpack.c.b16 %v419, %v417
  %v648 = vpack.c.b16 %v420, %v418
  %v649 = vpack.c.b16 %v423, %v421
  %v650 = vpack.c.b16 %v424, %v422
  %v651 = vpack.c.b16 %v427, %v425
  %v652 = vpack.c.b16 %v428, %v426
  %v653 = vpack.c.b16 %v431, %v429
  %v654 = vpack.c.b16 %v432, %v430
  %v655 = vpack.c.b16 %v435, %v433
  %v656 = vpack.c.b16 %v436, %v434
  %v657 = vpack.c.b16 %v439, %v437
  %v658 = vpack.c.b16 %v440, %v438
  %v659 = vpack.c.b16 %v443, %v441
  %v660 = vpack.c.b16 %v444, %v442
  %v661 = vpack.c.b16 %v447, %v445
  %v662 = vpack.c.b16 %v448, %v446
  %v663 = vpack.c.b16 %v451, %v449
  %v664 = vpack.c.b16 %v452, %v450
  %v665 = vpack.c.b16 %v455, %v453
  %v666 = vpack.c.b16 %v456, %v454
  %v667 = vpack.c.b16 %v459, %v457
  %v668 = vpack.c.b16 %v460, %v458
  %v669 = vpack.c.b16 %v463, %v461
  %v670 = vpack.c.b16 %v464, %v462
  %v671 = vpack.c.b16 %v467, %v465
  %v672 = vpack.c.b16 %v468, %v466
  %v673 = vpack.c.b16 %v471, %v469
  %v674 = vpack.c.b16 %v472, %v470
  %v675 = vpack.c.b16 %v475, %v473
  %v676 = vpack.c.b16 %v476, %v474
  %v677 = vpack.c.b16 %v479, %v477
  %v678 = vpack.c.b16 %v480, %v478
  %v679 = vpack.c.b16 %v483, %v481
  %v680 = vpack.c.b16 %v484, %v482
  %v681 = vpack.c.b16 %v487, %v485
  %v682 = vpack.c.b16 %v488, %v486
  %v683 = vpack.c.b16 %v491, %v489
  %v684 = vpack.c.b16 %v492, %v490
  %v685 = vpack.c.b16 %v495, %v493
  %v686 = vpack.c.b16 %v496, %v494
  %v687 = vpack.c.b16 %v499, %v497
  %v688 = vpack.c.b16 %v500, %v498
  %v689 = vpack.c.b16 %v503, %v501
  %v690 = vpack.c.b16 %v504, %v502
  %v691 = vpack.c.b16 %v507, %v505
  %v692 = vpack.c.b16 %v508, %v506
  %v693 = vpack.c.b16 %v511, %v509
  %v694 = vpack.c.b16 %v512, %v510
  %v695 = vpack.c.b16 %v515, %v513
  %v696 = vpack.c.b16 %v516, %v514
  %v697 = vpack.c.b16 %v519, %v517
  %v698 = vpack.c.b16 %v520, %v518
  %v699 = vpack.c.b16 %v523, %v521
  %v700 = vpack.c.b16 %v524, %v522
  %v701 = vpack.c.b16 %v527, %v525
  %v702 = vpack.c.b16 %v528, %v526
  %v703 = vpack.c.b16 %v531, %v529
  %v704 = vpack.c.b16 %v532, %v530
  %v705 = vpack.c.b16 %v535, %v533
  %v706 = vpack.c.b16 %v536, %v534
  %v707 = vpack.c.b16 %v539, %v537
  %v708 = vpack.c.b16 %v540, %v538
  %v709 = vpack.c.b16 %v543, %v541
  %v710 = vpack.c.b16 %v544, %v542
  %v711 = vpack.c.b16 %v547, %v545
  %v712 = vpack.c.b16 %v548, %v546
  %v713 = vpack.c.b16 %v551, %v549
  %v714 = vpack.c.b16 %v552, %v550
  %v715 = vpack.c.b16 %v555, %v553
  %v716 = vpack.c.b16 %v556, %v554
  %v717 = vpack.c.b16 %v559, %v557
  %v718 = vpack.c.b16 %v560, %v558
  %v719 = vpack.c.b16 %v563, %v561
  %v720 = vpack.c.b16 %v564, %v562
  %v721 = vpack.c.b16 %v567, %v565
  %v722 = vpack.c.b16 %v568, %v566
  %v723 = vpack.c.b16 %v571, %v569
  %v724 = vpack.c.b16 %v572, %v570
  %v725 = vpack.c.b16 %v575, %v573
  %v726 = vpack.c.b16 %v576, %v574
  %v727 = vpack.c.b16 %v579, %v577
  %v728 = vpack.c.b16 %v580, %v578
  %v729 = vpack.c.b16 %v583, %v581
  %v730 = vpack.c.b16 %v584, %v582
  %v731 = vpack.c.b16 %v587, %v585
  %v732 = vpack.c.b16 %v588, %v586
  %v733 = vpack.c.b16 %v591, %v589
  %v734 = vpack.c.b16 %v592, %v590
  %v735 = vpack.c.b16 %v595, %v593
  %v736 = vpack.c.b16 %v596, %v594
  %v737 = vpack.c.b16 %v599, %v597
  %v738 = vpack.c.b16 %v600, %v598
  %v739 = vpack.c.b16 %v603, %v601
  %v740 = vpack.c.b16 %v604, %v602
  %v741 = vpack.c.b16 %v607, %v605
  %v742 = vpack.c.b16 %v608, %v606
  %v743 = vpack.c.b16 %v611, %v609
  %v744 = vpack.c.b16 %v612, %v610
  %v745 = vpack.c.b16 %v615, %v613
  %v746 = vpack.c.b16 %v616, %v614
  %v747 = vpack.c.b16 %v619, %v617
  %v748 = vpack.c.b16 %v620, %v618
  %877 = vmatprep.subr.bf16.mxu0 %v636
  %878 = vmatpush1.bf16.msra.mxu0 %v635
  %879 = vmatprep.subr.bf16.mxu0 %v634
  %880 = vmatpush1.bf16.msra.mxu0 %v633
  %881 = vmatprep.subr.bf16.mxu0 %v632
  %882 = vmatpush1.bf16.msra.mxu0 %v631
  %883 = vmatprep.subr.bf16.mxu0 %v630
  %884 = vmatpush1.bf16.msra.mxu0 %v629
  %885 = vmatprep.subr.bf16.mxu0 %v628
  %886 = vmatpush1.bf16.msra.mxu0 %v627
  %887 = vmatprep.subr.bf16.mxu0 %v626
  %888 = vmatpush1.bf16.msra.mxu0 %v625
  %889 = vmatprep.subr.bf16.mxu0 %v624
  %890 = vmatpush1.bf16.msra.mxu0 %v623
  %891 = vmatprep.subr.bf16.mxu0 %v622
  %892 = vmatpush1.bf16.msra.mxu0 %v621
  %893 = vmatprep.subr.bf16.mxu0 %v652
  %894 = vmatpush2.bf16.msra.mxu0 %v651
  %895 = vmatprep.subr.bf16.mxu0 %v650
  %896 = vmatpush2.bf16.msra.mxu0 %v649
  %897 = vmatprep.subr.bf16.mxu0 %v648
  %898 = vmatpush2.bf16.msra.mxu0 %v647
  %899 = vmatprep.subr.bf16.mxu0 %v646
  %900 = vmatpush2.bf16.msra.mxu0 %v645
  %901 = vmatprep.subr.bf16.mxu0 %v644
  %902 = vmatpush2.bf16.msra.mxu0 %v643
  %903 = vmatprep.subr.bf16.mxu0 %v642
  %904 = vmatpush2.bf16.msra.mxu0 %v641
  %905 = vmatprep.subr.bf16.mxu0 %v640
  %906 = vmatpush2.bf16.msra.mxu0 %v639
  %907 = vmatprep.subr.bf16.mxu0 %v638
  %908 = vmatpush2.bf16.msra.mxu0 %v637
  %909 = vmatprep.mubr.bf16.mxu0 %v206
  %910 = vmatmul.mubr.bf16.gmra.mxu0 %v205
  %v911 = vpop.f32.mrf.mxu0
  %v912 = vadd.f32 %v162, %v911
  %v913 = vpop.f32.mrf.mxu0
  %v914 = vadd.f32 %v166, %v913
  %v915 = vpop.f32.mrf.mxu0
  %v916 = vadd.f32 %v162, %v915
  %v917 = vpop.f32.mrf.mxu0
  %v918 = vadd.f32 %v166, %v917
  %919 = vmatprep.mubr.bf16.mxu0 %v214
  %920 = vmatmul.mubr.bf16.gmra.mxu0 %v213
  %v921 = vpop.f32.mrf.mxu0
  %v922 = vadd.f32 %v162, %v921
  %v923 = vpop.f32.mrf.mxu0
  %v924 = vadd.f32 %v166, %v923
  %v925 = vpop.f32.mrf.mxu0
  %v926 = vpop.f32.mrf.mxu0
  %927 = vdwg.mxu0
  %928 = vmatprep.subr.bf16.mxu0 %v668
  %929 = vmatpush1.bf16.msra.mxu0 %v667
  %930 = vmatprep.subr.bf16.mxu0 %v666
  %931 = vmatpush1.bf16.msra.mxu0 %v665
  %932 = vmatprep.subr.bf16.mxu0 %v664
  %933 = vmatpush1.bf16.msra.mxu0 %v663
  %934 = vmatprep.subr.bf16.mxu0 %v662
  %935 = vmatpush1.bf16.msra.mxu0 %v661
  %936 = vmatprep.subr.bf16.mxu0 %v660
  %937 = vmatpush1.bf16.msra.mxu0 %v659
  %938 = vmatprep.subr.bf16.mxu0 %v658
  %939 = vmatpush1.bf16.msra.mxu0 %v657
  %940 = vmatprep.subr.bf16.mxu0 %v656
  %941 = vmatpush1.bf16.msra.mxu0 %v655
  %942 = vmatprep.subr.bf16.mxu0 %v654
  %943 = vmatpush1.bf16.msra.mxu0 %v653
  %944 = vmatprep.subr.bf16.mxu0 %v684
  %945 = vmatpush2.bf16.msra.mxu0 %v683
  %946 = vmatprep.subr.bf16.mxu0 %v682
  %947 = vmatpush2.bf16.msra.mxu0 %v681
  %948 = vmatprep.subr.bf16.mxu0 %v680
  %949 = vmatpush2.bf16.msra.mxu0 %v679
  %950 = vmatprep.subr.bf16.mxu0 %v678
  %951 = vmatpush2.bf16.msra.mxu0 %v677
  %952 = vmatprep.subr.bf16.mxu0 %v676
  %953 = vmatpush2.bf16.msra.mxu0 %v675
  %954 = vmatprep.subr.bf16.mxu0 %v674
  %955 = vmatpush2.bf16.msra.mxu0 %v673
  %956 = vmatprep.subr.bf16.mxu0 %v672
  %957 = vmatpush2.bf16.msra.mxu0 %v671
  %958 = vmatprep.subr.bf16.mxu0 %v670
  %959 = vmatpush2.bf16.msra.mxu0 %v669
  %960 = vmatprep.mubr.bf16.mxu0 %v208
  %961 = vmatmul.mubr.bf16.gmra.mxu0 %v207
  %v962 = vpop.f32.mrf.mxu0
  %v963 = vadd.f32 %v912, %v962
  %v964 = vpop.f32.mrf.mxu0
  %v965 = vadd.f32 %v914, %v964
  %v966 = vpop.f32.mrf.mxu0
  %v967 = vadd.f32 %v916, %v966
  %v968 = vpop.f32.mrf.mxu0
  %v969 = vadd.f32 %v918, %v968
  %970 = vmatprep.mubr.bf16.mxu0 %v216
  %971 = vmatmul.mubr.bf16.gmra.mxu0 %v215
  %v972 = vpop.f32.mrf.mxu0
  %v973 = vadd.f32 %v922, %v972
  %v974 = vpop.f32.mrf.mxu0
  %v975 = vadd.f32 %v924, %v974
  %v976 = vpop.f32.mrf.mxu0
  %v977 = vpop.f32.mrf.mxu0
  %978 = vdwg.mxu0
  %979 = vmatprep.subr.bf16.mxu0 %v700
  %980 = vmatpush1.bf16.msra.mxu0 %v699
  %981 = vmatprep.subr.bf16.mxu0 %v698
  %982 = vmatpush1.bf16.msra.mxu0 %v697
  %983 = vmatprep.subr.bf16.mxu0 %v696
  %984 = vmatpush1.bf16.msra.mxu0 %v695
  %985 = vmatprep.subr.bf16.mxu0 %v694
  %986 = vmatpush1.bf16.msra.mxu0 %v693
  %987 = vmatprep.subr.bf16.mxu0 %v692
  %988 = vmatpush1.bf16.msra.mxu0 %v691
  %989 = vmatprep.subr.bf16.mxu0 %v690
  %990 = vmatpush1.bf16.msra.mxu0 %v689
  %991 = vmatprep.subr.bf16.mxu0 %v688
  %992 = vmatpush1.bf16.msra.mxu0 %v687
  %993 = vmatprep.subr.bf16.mxu0 %v686
  %994 = vmatpush1.bf16.msra.mxu0 %v685
  %995 = vmatprep.subr.bf16.mxu0 %v716
  %996 = vmatpush2.bf16.msra.mxu0 %v715
  %997 = vmatprep.subr.bf16.mxu0 %v714
  %998 = vmatpush2.bf16.msra.mxu0 %v713
  %999 = vmatprep.subr.bf16.mxu0 %v712
  %1000 = vmatpush2.bf16.msra.mxu0 %v711
  %1001 = vmatprep.subr.bf16.mxu0 %v710
  %1002 = vmatpush2.bf16.msra.mxu0 %v709
  %1003 = vmatprep.subr.bf16.mxu0 %v708
  %1004 = vmatpush2.bf16.msra.mxu0 %v707
  %1005 = vmatprep.subr.bf16.mxu0 %v706
  %1006 = vmatpush2.bf16.msra.mxu0 %v705
  %1007 = vmatprep.subr.bf16.mxu0 %v704
  %1008 = vmatpush2.bf16.msra.mxu0 %v703
  %1009 = vmatprep.subr.bf16.mxu0 %v702
  %1010 = vmatpush2.bf16.msra.mxu0 %v701
  %1011 = vmatprep.mubr.bf16.mxu0 %v210
  %1012 = vmatmul.mubr.bf16.gmra.mxu0 %v209
  %v1013 = vpop.f32.mrf.mxu0
  %v1014 = vadd.f32 %v963, %v1013
  %v1015 = vpop.f32.mrf.mxu0
  %v1016 = vadd.f32 %v965, %v1015
  %v1017 = vpop.f32.mrf.mxu0
  %v1018 = vadd.f32 %v967, %v1017
  %v1019 = vpop.f32.mrf.mxu0
  %v1020 = vadd.f32 %v969, %v1019
  %1021 = vmatprep.mubr.bf16.mxu0 %v218
  %1022 = vmatmul.mubr.bf16.gmra.mxu0 %v217
  %v1023 = vpop.f32.mrf.mxu0
  %v1024 = vadd.f32 %v973, %v1023
  %v1025 = vpop.f32.mrf.mxu0
  %v1026 = vadd.f32 %v975, %v1025
  %v1027 = vpop.f32.mrf.mxu0
  %v1028 = vpop.f32.mrf.mxu0
  %1029 = vdwg.mxu0
  %1030 = vmatprep.subr.bf16.mxu0 %v732
  %1031 = vmatpush1.bf16.msra.mxu0 %v731
  %1032 = vmatprep.subr.bf16.mxu0 %v730
  %1033 = vmatpush1.bf16.msra.mxu0 %v729
  %1034 = vmatprep.subr.bf16.mxu0 %v728
  %1035 = vmatpush1.bf16.msra.mxu0 %v727
  %1036 = vmatprep.subr.bf16.mxu0 %v726
  %1037 = vmatpush1.bf16.msra.mxu0 %v725
  %1038 = vmatprep.subr.bf16.mxu0 %v724
  %1039 = vmatpush1.bf16.msra.mxu0 %v723
  %1040 = vmatprep.subr.bf16.mxu0 %v722
  %1041 = vmatpush1.bf16.msra.mxu0 %v721
  %1042 = vmatprep.subr.bf16.mxu0 %v720
  %1043 = vmatpush1.bf16.msra.mxu0 %v719
  %1044 = vmatprep.subr.bf16.mxu0 %v718
  %1045 = vmatpush1.bf16.msra.mxu0 %v717
  %1046 = vmatprep.subr.bf16.mxu0 %v748
  %1047 = vmatpush2.bf16.msra.mxu0 %v747
  %1048 = vmatprep.subr.bf16.mxu0 %v746
  %1049 = vmatpush2.bf16.msra.mxu0 %v745
  %1050 = vmatprep.subr.bf16.mxu0 %v744
  %1051 = vmatpush2.bf16.msra.mxu0 %v743
  %1052 = vmatprep.subr.bf16.mxu0 %v742
  %1053 = vmatpush2.bf16.msra.mxu0 %v741
  %1054 = vmatprep.subr.bf16.mxu0 %v740
  %1055 = vmatpush2.bf16.msra.mxu0 %v739
  %1056 = vmatprep.subr.bf16.mxu0 %v738
  %1057 = vmatpush2.bf16.msra.mxu0 %v737
  %1058 = vmatprep.subr.bf16.mxu0 %v736
  %1059 = vmatpush2.bf16.msra.mxu0 %v735
  %1060 = vmatprep.subr.bf16.mxu0 %v734
  %1061 = vmatpush2.bf16.msra.mxu0 %v733
  %1062 = vmatprep.mubr.bf16.mxu0 %v212
  %1063 = vmatmul.mubr.bf16.gmra.mxu0 %v211
  %v1064 = vpop.f32.mrf.mxu0
  %v1065 = vadd.f32 %v1014, %v1064
  %v1066 = vpop.f32.mrf.mxu0
  %v1067 = vadd.f32 %v1016, %v1066
  %v1068 = vpop.f32.mrf.mxu0
  %v1069 = vadd.f32 %v1018, %v1068
  %v1070 = vpop.f32.mrf.mxu0
  %v1071 = vadd.f32 %v1020, %v1070
  %1072 = vmatprep.mubr.bf16.mxu0 %v220
  %1073 = vmatmul.mubr.bf16.gmra.mxu0 %v219
  %v1074 = vpop.f32.mrf.mxu0
  %v1075 = vadd.f32 %v1024, %v1074
  %v1076 = vpop.f32.mrf.mxu0
  %v1077 = vadd.f32 %v1026, %v1076
  %v1078 = vpop.f32.mrf.mxu0
  %v1079 = vpop.f32.mrf.mxu0
  %1080 = vdwg.mxu0
  %v1081 = vld [vmem:[%s3] sm:$0xff]
  %v1082 = vld [vmem:[%s3 + $0x8] sm:$0xff]
  %v1083 = vld [vmem:[%s3 + $0x10] sm:$0xff]
  %v1084 = vld [vmem:[%s3 + $0x18] sm:$0xff]
  %v1085 = vld [vmem:[%s3 + $0x20] sm:$0x3]
  %v1086 = vld [vmem:[%s3 + $0x28] sm:$0x3]
  %v1087 = vadd.f32 %v1065, %v1081
  %v1088 = vadd.f32 %v1067, %v1082
  %v1089 = vadd.f32 %v1069, %v1083
  %v1090 = vadd.f32 %v1071, %v1084
  %v1091 = vadd.f32 %v1075, %v1085
  %v1092 = vadd.f32 %v1077, %v1086
  %1093 = vst [vmem:[%s4] sm:$0xff] %v1087
  %1094 = vst [vmem:[%s4 + $0x8] sm:$0xff] %v1088
  %1095 = vst [vmem:[%s4 + $0x10] sm:$0xff] %v1089
  %1096 = vst [vmem:[%s4 + $0x18] sm:$0xff] %v1090
  %1097 = vst [vmem:[%s4 + $0x20] sm:$0x3] %v1091
  %1098 = vst [vmem:[%s4 + $0x28] sm:$0x3] %v1092
  // Predicated region
  $region18: #{eeg_transformer_forward.10} parent=0 // pred_check
    _
  $region19: #{eeg_transformer_forward.10} parent=0 // pred_check_branch
    %1100 = sbr.rel (0) target = $region21
  $region20: #{eeg_transformer_forward.10} parent=0 // pred_region
    _
  $region21: #{eeg_transformer_forward.10} parent=0 // pred_fallthru
    _
  // Predicated region
  $region22: #{eeg_transformer_forward.10} parent=0 // pred_check
    _
  $region23: #{eeg_transformer_forward.10} parent=0 // pred_check_branch
    %1102 = sbr.rel (0) target = $region25
  $region24: #{eeg_transformer_forward.10} parent=0 // pred_region
    _
  $region25: #{eeg_transformer_forward.10} parent=0 // pred_fallthru
    _

</llo_original>
